<compile_context>
chip_gen: v6e
topology: v6e:2x2x1
jax: 0.10.0
libtpu: 0.0.40
codegen_flags: <defaults>
</compile_context>

<pallas_src>
import functools

import jax
import jax.numpy as jnp
from jax.experimental import pallas as pl
from jax.experimental.pallas import tpu as pltpu


def _gin_vnode_kernel(gin_eps,
                      adj_ref, xk_ref, xi_ref, vn_ref,
                      w1_ref, b1_ref, w2_ref, b2_ref,
                      out_ref, acc_ref):
    # adj_ref: [BM, BK] bf16   adjacency tile (rows i, cols k)
    # xk_ref:  [BK, D]  f32    node features (message source for this K tile)
    # xi_ref:  [BM, D]  f32    node features (residual rows for this row tile)
    # vn_ref:  [1, D]   f32    virtualnode embedding (0 at init)
    # w1_ref:  [D, 2D], b1_ref: [1, 2D]   GIN mlp Linear1 with BN1 folded in
    # w2_ref:  [2D, E], b2_ref: [1, E]    GIN mlp Linear2 with outer BN folded in
    # out_ref: [BM, E]  f32    node representation tile
    # acc_ref: [BM, D]  f32    aggregation accumulator (resident across k)
    k = pl.program_id(1)

    @pl.when(k == 0)
    def _():
        acc_ref[...] = jnp.zeros_like(acc_ref)

    # GIN message + add-aggregate:  agg_i += sum_j A[i,j] * relu(x_j + vn)
    msg = jnp.maximum(xk_ref[...] + vn_ref[...], 0.0)
    acc_ref[...] += jnp.dot(adj_ref[...].astype(jnp.float32), msg,
                            preferred_element_type=jnp.float32)

    @pl.when(k == pl.num_programs(1) - 1)
    def _():
        h0 = xi_ref[...] + vn_ref[...]
        z = (1.0 + gin_eps) * h0 + acc_ref[...]                  # GIN combine
        h = jnp.dot(z, w1_ref[...],
                    preferred_element_type=jnp.float32) + b1_ref[...]
        h = jnp.maximum(h, 0.0)                                  # BN1 folded; ReLU
        h = jnp.dot(h, w2_ref[...],
                    preferred_element_type=jnp.float32) + b2_ref[...]
        out_ref[...] = h                                         # BN2 folded; dropout=identity


def gnn_node_virtualnode_forward(x, adj_bf16, vn, w1f, b1f, w2f, b2f,
                                 *, gin_eps=0.0, bm=512, bk=512):
    """x: [N, D] f32, adj_bf16: [N, N] bf16 (binary), vn: [1, D] f32,
    w1f: [D, H] / b1f: [1, H], w2f: [H, E] / b2f: [1, E] with eval-BN folded in."""
    n, d = x.shape
    h = w1f.shape[1]
    e = w2f.shape[1]
    assert vn.shape == (1, d), "num_layers=1 / encode_raw=False requires input_dim == emb_dim"
    bm = min(bm, n)
    bk = min(bk, n)
    assert n % bm == 0 and n % bk == 0, "N must be divisible by the tile sizes"
    grid = (n // bm, n // bk)

    kernel = functools.partial(_gin_vnode_kernel, float(gin_eps))

    return pl.pallas_call(
        kernel,
        out_shape=jax.ShapeDtypeStruct((n, e), jnp.float32),
        grid_spec=pltpu.PrefetchScalarGridSpec(
            num_scalar_prefetch=0,
            grid=grid,
            in_specs=[
                pl.BlockSpec((bm, bk), lambda i, k: (i, k)),   # adj tile (bf16 stream)
                pl.BlockSpec((bk, d), lambda i, k: (k, 0)),    # x as message source
                pl.BlockSpec((bm, d), lambda i, k: (i, 0)),    # x as residual rows
                pl.BlockSpec((1, d), lambda i, k: (0, 0)),     # virtualnode embedding
                pl.BlockSpec((d, h), lambda i, k: (0, 0)),     # W1 (BN1 folded)
                pl.BlockSpec((1, h), lambda i, k: (0, 0)),     # b1 (BN1 folded)
                pl.BlockSpec((h, e), lambda i, k: (0, 0)),     # W2 (BN2 folded)
                pl.BlockSpec((1, e), lambda i, k: (0, 0)),     # b2 (BN2 folded)
            ],
            out_specs=pl.BlockSpec((bm, e), lambda i, k: (i, 0)),
            scratch_shapes=[pltpu.VMEM((bm, d), jnp.float32)],
        ),
        compiler_params=pltpu.CompilerParams(
            dimension_semantics=("parallel", "arbitrary"),
            vmem_limit_bytes=32 * 1024 * 1024,
        ),
    )(adj_bf16, x, x, vn, w1f, b1f, w2f, b2f)


def fold_linear_bn(w, b, gamma, beta, mean, var, eps=1e-5):
    """Fold eval-mode BatchNorm1d into the preceding Linear: y = (xW+b) folded-affine."""
    scale = gamma / jnp.sqrt(var + eps)
    w_f = w * scale[None, :]
    b_f = (b - mean) * scale + beta
    return w_f, b_f.reshape(1, -1)


def reference_forward(x, adj, vn, w1, b1, g1, be1, m1, v1,
                      w2, b2, g2, be2, m2, v2, gin_eps):
    """Pure-JAX f32 reference for GNNNodeVirtualnode (1 GIN layer, eval)."""
    h0 = x + vn
    msg = jnp.maximum(h0, 0.0)
    agg = adj @ msg
    z = (1.0 + gin_eps) * h0 + agg
    hh = z @ w1 + b1
    hh = (hh - m1) / jnp.sqrt(v1 + 1e-5) * g1 + be1
    hh = jnp.maximum(hh, 0.0)
    hh = hh @ w2 + b2
    hh = (hh - m2) / jnp.sqrt(v2 + 1e-5) * g2 + be2
    return hh  # last layer: dropout only (eval => identity); JK='last'


if __name__ == "__main__":
    # Small deterministic config: N nodes, input_dim == emb_dim (required when the
    # virtualnode embedding is added to raw x with num_layers=1 / encode_raw=False).
    N = 1024          # number of nodes  -> grid (2, 2) with 512x512 tiles
    D = 128           # input_dim == emb_dim
    H = 2 * D         # hidden width of the GIN MLP
    GIN_EPS = 0.0     # GINConv.eps initialized to 0

    key = jax.random.PRNGKey(0)
    (k_x, k_a, k_w1, k_b1, k_g1, k_be1, k_m1, k_v1,
     k_w2, k_b2, k_g2, k_be2, k_m2, k_v2) = jax.random.split(key, 14)

    x = jax.random.normal(k_x, (N, D), dtype=jnp.float32)

    # Symmetric binary adjacency, no self loops, ~2% density. Binary => bf16 exact.
    logits = jax.random.uniform(k_a, (N, N), dtype=jnp.float32)
    adj = (logits < 0.02).astype(jnp.float32)
    adj = jnp.maximum(adj, adj.T)
    adj = adj * (1.0 - jnp.eye(N, dtype=jnp.float32))
    adj_bf16 = adj.astype(jnp.bfloat16)

    # Virtualnode embedding: Embedding(1, emb_dim) init constant 0.
    vn = jnp.zeros((1, D), dtype=jnp.float32)

    # GIN mlp parameters (Linear(D,2D) + BN(2D) + ReLU + Linear(2D,D)) and outer BN(D).
    w1 = jax.random.normal(k_w1, (D, H), dtype=jnp.float32) / jnp.sqrt(D)
    b1 = jax.random.normal(k_b1, (H,), dtype=jnp.float32) * 0.1
    g1 = 1.0 + 0.1 * jax.random.normal(k_g1, (H,), dtype=jnp.float32)
    be1 = 0.1 * jax.random.normal(k_be1, (H,), dtype=jnp.float32)
    m1 = 0.1 * jax.random.normal(k_m1, (H,), dtype=jnp.float32)
    v1 = jax.random.uniform(k_v1, (H,), dtype=jnp.float32, minval=0.5, maxval=1.5)

    w2 = jax.random.normal(k_w2, (H, D), dtype=jnp.float32) / jnp.sqrt(H)
    b2 = jax.random.normal(k_b2, (D,), dtype=jnp.float32) * 0.1
    g2 = 1.0 + 0.1 * jax.random.normal(k_g2, (D,), dtype=jnp.float32)
    be2 = 0.1 * jax.random.normal(k_be2, (D,), dtype=jnp.float32)
    m2 = 0.1 * jax.random.normal(k_m2, (D,), dtype=jnp.float32)
    v2 = jax.random.uniform(k_v2, (D,), dtype=jnp.float32, minval=0.5, maxval=1.5)

    # Parameter-only preprocessing: fold eval-mode BNs into the adjacent Linears.
    w1f, b1f = fold_linear_bn(w1, b1, g1, be1, m1, v1)
    w2f, b2f = fold_linear_bn(w2, b2, g2, be2, m2, v2)

    out = gnn_node_virtualnode_forward(x, adj_bf16, vn, w1f, b1f, w2f, b2f,
                                       gin_eps=GIN_EPS, bm=512, bk=512)
    out = jax.block_until_ready(out)

    ref = reference_forward(x, adj, vn, w1, b1, g1, be1, m1, v1,
                            w2, b2, g2, be2, m2, v2, GIN_EPS)

    assert out.shape == (N, D)
    # Tolerance covers matmul-precision / accumulation-order differences between the
    # tiled Pallas kernel and the XLA reference.
    assert jnp.allclose(out, ref, rtol=2e-2, atol=2e-2), float(jnp.max(jnp.abs(out - ref)))

    print("KERNEL_OK")
</pallas_src>

<mosaic_0001>
module attributes {stable_mosaic.version = 11 : i64} {
  func.func @_gin_vnode_kernel(%arg0: i32, %arg1: i32, %arg2: memref<512x512xbf16, #tpu.memory_space<vmem>>, %arg3: memref<512x128xf32, #tpu.memory_space<vmem>>, %arg4: memref<512x128xf32, #tpu.memory_space<vmem>>, %arg5: memref<1x128xf32, #tpu.memory_space<vmem>>, %arg6: memref<128x256xf32, #tpu.memory_space<vmem>>, %arg7: memref<1x256xf32, #tpu.memory_space<vmem>>, %arg8: memref<256x128xf32, #tpu.memory_space<vmem>>, %arg9: memref<1x128xf32, #tpu.memory_space<vmem>>, %arg10: memref<512x128xf32, #tpu.memory_space<vmem>>, %arg11: memref<512x128xf32, #tpu.memory_space<vmem>>) attributes {dimension_semantics = [#tpu.dimension_semantics<parallel>, #tpu.dimension_semantics<arbitrary>], iteration_bounds = array<i64: 2, 2>, scalar_prefetch = 0 : i64, scratch_operands = 1 : i64, tpu.core_type = #tpu.core_type<tc>, window_params = [{transform_indices = @transform_0, window_bounds = array<i64: 512, 512>}, {transform_indices = @transform_1, window_bounds = array<i64: 512, 128>}, {transform_indices = @transform_2, window_bounds = array<i64: 512, 128>}, {pipeline_mode = #tpu.pipeline_mode<synchronous>, transform_indices = @transform_3, window_bounds = array<i64: 1, 128>}, {pipeline_mode = #tpu.pipeline_mode<synchronous>, transform_indices = @transform_4, window_bounds = array<i64: 128, 256>}, {pipeline_mode = #tpu.pipeline_mode<synchronous>, transform_indices = @transform_5, window_bounds = array<i64: 1, 256>}, {pipeline_mode = #tpu.pipeline_mode<synchronous>, transform_indices = @transform_6, window_bounds = array<i64: 256, 128>}, {pipeline_mode = #tpu.pipeline_mode<synchronous>, transform_indices = @transform_7, window_bounds = array<i64: 1, 128>}, {transform_indices = @transform_8, window_bounds = array<i64: 512, 128>}]} {
    %c0_i32 = arith.constant 0 : i32
    %0 = arith.cmpi eq, %arg1, %c0_i32 : i32
    %1 = arith.extui %0 : i1 to i32
    %c0_i32_0 = arith.constant 0 : i32
    %2 = arith.cmpi ne, %1, %c0_i32_0 : i32
    scf.if %2 {
      %cst_12 = arith.constant 0.000000e+00 : f32
      %18 = vector.broadcast %cst_12 : f32 to vector<512x128xf32>
      %c0_13 = arith.constant 0 : index
      %c0_14 = arith.constant 0 : index
      %19 = vector.load %arg11[%c0_13, %c0_14] : memref<512x128xf32, #tpu.memory_space<vmem>>, vector<512x128xf32>
      tpu.vector_store %arg11[%c0_13, %c0_14], %18 {strides = array<i32>} : memref<512x128xf32, #tpu.memory_space<vmem>>, vector<512x128xf32>,
    } else {
    }
    %c0 = arith.constant 0 : index
    %c0_1 = arith.constant 0 : index
    %3 = vector.load %arg3[%c0, %c0_1] : memref<512x128xf32, #tpu.memory_space<vmem>>, vector<512x128xf32>
    %c0_2 = arith.constant 0 : index
    %c0_3 = arith.constant 0 : index
    %4 = vector.load %arg5[%c0_2, %c0_3] : memref<1x128xf32, #tpu.memory_space<vmem>>, vector<1x128xf32>
    %5 = vector.broadcast %4 : vector<1x128xf32> to vector<512x128xf32>
    %6 = arith.addf %3, %5 : vector<512x128xf32>
    %cst = arith.constant 0.000000e+00 : f32
    %7 = vector.broadcast %cst : f32 to vector<512x128xf32>
    %8 = arith.maximumf %6, %7 : vector<512x128xf32>
    %c0_4 = arith.constant 0 : index
    %c0_5 = arith.constant 0 : index
    %9 = vector.load %arg11[%c0_4, %c0_5] : memref<512x128xf32, #tpu.memory_space<vmem>>, vector<512x128xf32>
    %c0_6 = arith.constant 0 : index
    %c0_7 = arith.constant 0 : index
    %10 = vector.load %arg2[%c0_6, %c0_7] : memref<512x512xbf16, #tpu.memory_space<vmem>>, vector<512x512xbf16>
    %11 = arith.extf %10 : vector<512x512xbf16> to vector<512x512xf32>
    %cst_8 = arith.constant dense<0.000000e+00> : vector<512x128xf32>
    %12 = tpu.matmul %11, %8, %cst_8 {dimension_numbers = #tpu.dot_dimension_numbers<[1], [0], [0], [1], [0, 0, 1, 1], [], []>} : vector<512x512xf32>, vector<512x128xf32>, vector<512x128xf32> -> vector<512x128xf32>
    %13 = arith.addf %9, %12 : vector<512x128xf32>
    %c0_9 = arith.constant 0 : index
    %c0_10 = arith.constant 0 : index
    %14 = vector.load %arg11[%c0_9, %c0_10] : memref<512x128xf32, #tpu.memory_space<vmem>>, vector<512x128xf32>
    tpu.vector_store %arg11[%c0_9, %c0_10], %13 {strides = array<i32>} : memref<512x128xf32, #tpu.memory_space<vmem>>, vector<512x128xf32>,
    %c1_i32 = arith.constant 1 : i32
    %15 = arith.cmpi eq, %arg1, %c1_i32 : i32
    %16 = arith.extui %15 : i1 to i32
    %c0_i32_11 = arith.constant 0 : i32
    %17 = arith.cmpi ne, %16, %c0_i32_11 : i32
    scf.if %17 {
      %c0_12 = arith.constant 0 : index
      %c0_13 = arith.constant 0 : index
      %18 = vector.load %arg4[%c0_12, %c0_13] : memref<512x128xf32, #tpu.memory_space<vmem>>, vector<512x128xf32>
      %c0_14 = arith.constant 0 : index
      %c0_15 = arith.constant 0 : index
      %19 = vector.load %arg5[%c0_14, %c0_15] : memref<1x128xf32, #tpu.memory_space<vmem>>, vector<1x128xf32>
      %20 = vector.broadcast %19 : vector<1x128xf32> to vector<512x128xf32>
      %21 = arith.addf %18, %20 : vector<512x128xf32>
      %cst_16 = arith.constant 1.000000e+00 : f32
      %22 = vector.broadcast %cst_16 : f32 to vector<512x128xf32>
      %23 = arith.mulf %22, %21 : vector<512x128xf32>
      %c0_17 = arith.constant 0 : index
      %c0_18 = arith.constant 0 : index
      %24 = vector.load %arg11[%c0_17, %c0_18] : memref<512x128xf32, #tpu.memory_space<vmem>>, vector<512x128xf32>
      %25 = arith.addf %23, %24 : vector<512x128xf32>
      %c0_19 = arith.constant 0 : index
      %c0_20 = arith.constant 0 : index
      %26 = vector.load %arg6[%c0_19, %c0_20] : memref<128x256xf32, #tpu.memory_space<vmem>>, vector<128x256xf32>
      %cst_21 = arith.constant dense<0.000000e+00> : vector<512x256xf32>
      %27 = tpu.matmul %25, %26, %cst_21 {dimension_numbers = #tpu.dot_dimension_numbers<[1], [0], [0], [1], [0, 0, 1, 1], [], []>} : vector<512x128xf32>, vector<128x256xf32>, vector<512x256xf32> -> vector<512x256xf32>
      %c0_22 = arith.constant 0 : index
      %c0_23 = arith.constant 0 : index
      %28 = vector.load %arg7[%c0_22, %c0_23] : memref<1x256xf32, #tpu.memory_space<vmem>>, vector<1x256xf32>
      %29 = vector.broadcast %28 : vector<1x256xf32> to vector<512x256xf32>
      %30 = arith.addf %27, %29 : vector<512x256xf32>
      %cst_24 = arith.constant 0.000000e+00 : f32
      %31 = vector.broadcast %cst_24 : f32 to vector<512x256xf32>
      %32 = arith.maximumf %30, %31 : vector<512x256xf32>
      %c0_25 = arith.constant 0 : index
      %c0_26 = arith.constant 0 : index
      %33 = vector.load %arg8[%c0_25, %c0_26] : memref<256x128xf32, #tpu.memory_space<vmem>>, vector<256x128xf32>
      %cst_27 = arith.constant dense<0.000000e+00> : vector<512x128xf32>
      %34 = tpu.matmul %32, %33, %cst_27 {dimension_numbers = #tpu.dot_dimension_numbers<[1], [0], [0], [1], [0, 0, 1, 1], [], []>} : vector<512x256xf32>, vector<256x128xf32>, vector<512x128xf32> -> vector<512x128xf32>
      %c0_28 = arith.constant 0 : index
      %c0_29 = arith.constant 0 : index
      %35 = vector.load %arg9[%c0_28, %c0_29] : memref<1x128xf32, #tpu.memory_space<vmem>>, vector<1x128xf32>
      %36 = vector.broadcast %35 : vector<1x128xf32> to vector<512x128xf32>
      %37 = arith.addf %34, %36 : vector<512x128xf32>
      %c0_30 = arith.constant 0 : index
      %c0_31 = arith.constant 0 : index
      %38 = vector.load %arg10[%c0_30, %c0_31] : memref<512x128xf32, #tpu.memory_space<vmem>>, vector<512x128xf32>
      tpu.vector_store %arg10[%c0_30, %c0_31], %37 {strides = array<i32>} : memref<512x128xf32, #tpu.memory_space<vmem>>, vector<512x128xf32>,
    } else {
    }
    return
  }
  func.func @transform_0(%arg0: i32, %arg1: i32) -> (i32, i32) {
    %c0_i32 = arith.constant 0 : i32
    return %arg0, %arg1 : i32, i32
  }
  func.func @transform_1(%arg0: i32, %arg1: i32) -> (i32, i32) {
    %c0_i32 = arith.constant 0 : i32
    %c0_i32_0 = arith.constant 0 : i32
    return %arg1, %c0_i32 : i32, i32
  }
  func.func @transform_2(%arg0: i32, %arg1: i32) -> (i32, i32) {
    %c0_i32 = arith.constant 0 : i32
    %c0_i32_0 = arith.constant 0 : i32
    return %arg0, %c0_i32 : i32, i32
  }
  func.func @transform_3(%arg0: i32, %arg1: i32) -> (i32, i32) {
    %c0_i32 = arith.constant 0 : i32
    %c0_i32_0 = arith.constant 0 : i32
    %c0_i32_1 = arith.constant 0 : i32
    return %c0_i32, %c0_i32_0 : i32, i32
  }
  func.func @transform_4(%arg0: i32, %arg1: i32) -> (i32, i32) {
    %c0_i32 = arith.constant 0 : i32
    %c0_i32_0 = arith.constant 0 : i32
    %c0_i32_1 = arith.constant 0 : i32
    return %c0_i32, %c0_i32_0 : i32, i32
  }
  func.func @transform_5(%arg0: i32, %arg1: i32) -> (i32, i32) {
    %c0_i32 = arith.constant 0 : i32
    %c0_i32_0 = arith.constant 0 : i32
    %c0_i32_1 = arith.constant 0 : i32
    return %c0_i32, %c0_i32_0 : i32, i32
  }
  func.func @transform_6(%arg0: i32, %arg1: i32) -> (i32, i32) {
    %c0_i32 = arith.constant 0 : i32
    %c0_i32_0 = arith.constant 0 : i32
    %c0_i32_1 = arith.constant 0 : i32
    return %c0_i32, %c0_i32_0 : i32, i32
  }
  func.func @transform_7(%arg0: i32, %arg1: i32) -> (i32, i32) {
    %c0_i32 = arith.constant 0 : i32
    %c0_i32_0 = arith.constant 0 : i32
    %c0_i32_1 = arith.constant 0 : i32
    return %c0_i32, %c0_i32_0 : i32, i32
  }
  func.func @transform_8(%arg0: i32, %arg1: i32) -> (i32, i32) {
    %c0_i32 = arith.constant 0 : i32
    %c0_i32_0 = arith.constant 0 : i32
    return %arg0, %c0_i32 : i32, i32
  }
}

</mosaic_0001>

<llo_original>
// kernel: tpu_custom_call.1
$region0: #{tpu_custom_call.1}
  #allocation0 [shape = 'u32[]', space=smem, size = 0x4, offset = 0x4, fixed_abs, tag = 'smem constant byte address 0x4 - core index']
  #allocation1 [shape = 'u32[144,128]{1,0:T(1,128)}', space=vmem, size = 0x12000, scoped, tag = 'internal scratch']
  #allocation2 [shape = 'f32[512,128]{1,0:T(8,128)}', space=vmem, size = 0x40000, scoped, tag = 'scratch operand']
  %s0 = inlined_call_operand.hbm [shape: bf16[1024,1024], index: 0, kind: input, shape index: {}]
  %s1 = inlined_call_operand.hbm [shape: f32[1024,128], index: 1, kind: input, shape index: {}]
  %s2 = inlined_call_operand.hbm [shape: f32[1024,128], index: 2, kind: input, shape index: {}]
  %s3 = inlined_call_operand.hbm [shape: f32[1,128], index: 3, kind: input, shape index: {}]
  %s4 = inlined_call_operand.hbm [shape: f32[128,256], index: 4, kind: input, shape index: {}]
  %s5 = inlined_call_operand.hbm [shape: f32[1,256], index: 5, kind: input, shape index: {}]
  %s6 = inlined_call_operand.hbm [shape: f32[256,128], index: 6, kind: input, shape index: {}]
  %s7 = inlined_call_operand.hbm [shape: f32[1,128], index: 7, kind: input, shape index: {}]
  %s8 = inlined_call_operand.hbm [shape: f32[1024,128], index: 8, kind: output, shape index: {}]
  %s9 = sld [smem:[#allocation0]]
  $region105: #{tpu_custom_call.1} parent=0
    _
  %s11 = ssub.s32 1, %s9
  %s12 = scalar_select 0, %s11, %s9
  $region1: #{tpu_custom_call.1} parent=0
    #allocation3 [shape = 'u8[1048576]{0}', space=vmem, size = 0x100000, scoped, tag = 'input window, operand 0']
    #allocation4 [shape = 's32[2]{0}', space=sflag, size = 0x8, scoped, tag = 'scoped memory for tpu_custom_call.1']
    #allocation5 [shape = 's32[2]{0}', space=sflag, size = 0x8, scoped, tag = 'scoped memory for tpu_custom_call.1']
    #allocation6 [shape = 'u8[524288]{0}', space=vmem, size = 0x80000, scoped, tag = 'input window, operand 1']
    #allocation7 [shape = 's32[2]{0}', space=sflag, size = 0x8, scoped, tag = 'scoped memory for tpu_custom_call.1']
    #allocation8 [shape = 'u8[524288]{0}', space=vmem, size = 0x80000, scoped, tag = 'input window, operand 2']
    #allocation9 [shape = 'u8[512]{0}', space=vmem, size = 0x400, scoped, tag = 'input window, operand 3, single buffered']
    #allocation10 [shape = 's32[1]{0}', space=sflag, size = 0x4, scoped, tag = 'scoped memory for tpu_custom_call.1']
    #allocation11 [shape = 'u8[131072]{0}', space=vmem, size = 0x20000, scoped, tag = 'input window, operand 4, single buffered']
    #allocation12 [shape = 'u8[1024]{0}', space=vmem, size = 0x400, scoped, tag = 'input window, operand 5, single buffered']
    #allocation13 [shape = 's32[1]{0}', space=sflag, size = 0x4, scoped, tag = 'scoped memory for tpu_custom_call.1']
    #allocation14 [shape = 'u8[131072]{0}', space=vmem, size = 0x20000, scoped, tag = 'input window, operand 6, single buffered']
    #allocation15 [shape = 'u8[512]{0}', space=vmem, size = 0x400, scoped, tag = 'input window, operand 7, single buffered']
    #allocation16 [shape = 's32[1]{0}', space=sflag, size = 0x4, scoped, tag = 'scoped memory for tpu_custom_call.1']
    #allocation17 [shape = 'u8[524288]{0}', space=vmem, size = 0x80000, scoped, tag = 'output window, operand 0']
    %13 = vsyncpa [#allocation4], 0
    %s14 = scalar_lea.sflag [#allocation4], 1
    %15 = vsyncpa %s14, 0
    %16 = vsyncpa [#allocation7], 0
    %s17 = scalar_lea.sflag [#allocation7], 1
    %18 = vsyncpa %s17, 0
    %19 = vsyncpa [#allocation10], 0
    %20 = vsyncpa [#allocation13], 0
    %21 = vsyncpa [#allocation16], 0
    %22 = vsyncpa [#allocation5], 0
    %s23 = scalar_lea.sflag [#allocation5], 1
    %24 = vsyncpa %s23, 0
    loop: start=0, step=1, limit=6
    $region2: #{tpu_custom_call.1} parent=1 // loop_pre_header
      _
    $region3: #{tpu_custom_call.1} parent=1 // loop_header
      %s26 = sphi 0, %s30
      %p27 = scmp.ge.s32.totalorder %s26, 6
      %s33 = sphi 0, %s45
      %s34 = sphi 0, %s41
      %s35 = sphi 0, %s33
      %s36 = sphi 0, %s34
      %s37 = sphi 0, %s35
      %s38 = sphi 0, %s36
      %s50 = sphi 0, %s52
      %s53 = sphi 0, %s50
      %s54 = sphi 0, %s53
      %s70 = sphi 0, %s54
      %s76 = sphi 0, %s78
      %s79 = sphi 0, %s76
      %s80 = sphi 0, %s79
      %s96 = sphi 0, %s80
      %s102 = sphi 0, %s104
      %s105 = sphi 0, %s102
      %s106 = sphi 0, %s105
      %s122 = sphi 0, %s106
      %s126 = sphi 0, %s126
      %s128 = sphi 0, %s126
      %s129 = sphi 0, %s128
      %s143 = sphi 0, %s129
      %s147 = sphi 0, %s147
      %s149 = sphi 0, %s147
      %s150 = sphi 0, %s149
      %s164 = sphi 0, %s150
      %s168 = sphi 0, %s168
      %s170 = sphi 0, %s168
      %s171 = sphi 0, %s170
      %s185 = sphi 0, %s171
      %s189 = sphi 0, %s189
      %s191 = sphi 0, %s189
      %s192 = sphi 0, %s191
      %s206 = sphi 0, %s192
      %s210 = sphi 0, %s210
      %s212 = sphi 0, %s210
      %s213 = sphi 0, %s212
      %s227 = sphi 0, %s213
      %s233 = sphi 0, %s235
      %s236 = sphi 0, %s233
      %s237 = sphi 0, %s236
      %s253 = sphi 0, %s237
    $region4: #{tpu_custom_call.1} parent=1 // loop_header_branch
      %29 = sbr.rel (%p27) target = $region8
    $region5: #{tpu_custom_call.1} parent=1 // loop_body
      %s31 = ssub.s32 %s26, 1
      %s32 = ssub.s32 %s26, 2
      %s39 = sadd.s32 1, %s34
      %p40 = scmp.ge.s32.totalorder %s39, 2
      %s41 = scalar_select %p40, 0, %s39
      %s42 = sadd.s32 1, %s33
      %s43 = scalar_select %p40, %s42, %s33
      %p44 = scmp.ge.s32.totalorder %s43, 2
      %s45 = scalar_select %p44, 0, %s43
      %s46 = ssub.s32 %s33, %s45
      %s47 = ssub.s32 %s34, %s41
      %s48 = sor.u32 %s46, %s47
      %p49 = scmp.eq.s32.totalorder %s48, 0
      %s51 = sadd.s32 %s50, 1
      %s52 = scalar_select %p49, %s50, %s51
      %p55 = pneg %p49
      %p56 = scmp.eq.s32.totalorder %s26, 3
      %p57 = por %p55, %p56
      %p58 = scmp.ne.s32.totalorder %s50, %s53
      %p59 = scmp.eq.s32.totalorder %s26, 0
      %p60 = por %p58, %p59
      %p61 = scmp.ne.s32.totalorder %s50, %s53
      %p62 = scmp.eq.s32.totalorder %s31, 3
      %p63 = por %p61, %p62
      %p64 = scmp.ne.s32.totalorder %s53, %s54
      %p65 = scmp.eq.s32.totalorder %s31, 0
      %p66 = por %p64, %p65
      %p67 = scmp.ne.s32.totalorder %s53, %s54
      %p68 = scmp.eq.s32.totalorder %s32, 3
      %p69 = por %p67, %p68
      %p71 = scmp.ne.s32.totalorder %s54, %s70
      %p72 = scmp.eq.s32.totalorder %s32, 0
      %p73 = por %p71, %p72
      %s74 = ssub.s32 %s34, %s41
      %p75 = scmp.eq.s32.totalorder %s74, 0
      %s77 = sadd.s32 %s76, 1
      %s78 = scalar_select %p75, %s76, %s77
      %p81 = pneg %p75
      %p82 = scmp.eq.s32.totalorder %s26, 3
      %p83 = por %p81, %p82
      %p84 = scmp.ne.s32.totalorder %s76, %s79
      %p85 = scmp.eq.s32.totalorder %s26, 0
      %p86 = por %p84, %p85
      %p87 = scmp.ne.s32.totalorder %s76, %s79
      %p88 = scmp.eq.s32.totalorder %s31, 3
      %p89 = por %p87, %p88
      %p90 = scmp.ne.s32.totalorder %s79, %s80
      %p91 = scmp.eq.s32.totalorder %s31, 0
      %p92 = por %p90, %p91
      %p93 = scmp.ne.s32.totalorder %s79, %s80
      %p94 = scmp.eq.s32.totalorder %s32, 3
      %p95 = por %p93, %p94
      %p97 = scmp.ne.s32.totalorder %s80, %s96
      %p98 = scmp.eq.s32.totalorder %s32, 0
      %p99 = por %p97, %p98
      %s100 = ssub.s32 %s33, %s45
      %p101 = scmp.eq.s32.totalorder %s100, 0
      %s103 = sadd.s32 %s102, 1
      %s104 = scalar_select %p101, %s102, %s103
      %p107 = pneg %p101
      %p108 = scmp.eq.s32.totalorder %s26, 3
      %p109 = por %p107, %p108
      %p110 = scmp.ne.s32.totalorder %s102, %s105
      %p111 = scmp.eq.s32.totalorder %s26, 0
      %p112 = por %p110, %p111
      %p113 = scmp.ne.s32.totalorder %s102, %s105
      %p114 = scmp.eq.s32.totalorder %s31, 3
      %p115 = por %p113, %p114
      %p116 = scmp.ne.s32.totalorder %s105, %s106
      %p117 = scmp.eq.s32.totalorder %s31, 0
      %p118 = por %p116, %p117
      %p119 = scmp.ne.s32.totalorder %s105, %s106
      %p120 = scmp.eq.s32.totalorder %s32, 3
      %p121 = por %p119, %p120
      %p123 = scmp.ne.s32.totalorder %s106, %s122
      %p124 = scmp.eq.s32.totalorder %s32, 0
      %p125 = por %p123, %p124
      %s127 = sadd.s32 %s126, 1
      %p130 = scmp.eq.s32.totalorder %s26, 3
      %p131 = scmp.ne.s32.totalorder %s126, %s128
      %p132 = scmp.eq.s32.totalorder %s26, 0
      %p133 = por %p131, %p132
      %p134 = scmp.ne.s32.totalorder %s126, %s128
      %p135 = scmp.eq.s32.totalorder %s31, 3
      %p136 = por %p134, %p135
      %p137 = scmp.ne.s32.totalorder %s128, %s129
      %p138 = scmp.eq.s32.totalorder %s31, 0
      %p139 = por %p137, %p138
      %p140 = scmp.ne.s32.totalorder %s128, %s129
      %p141 = scmp.eq.s32.totalorder %s32, 3
      %p142 = por %p140, %p141
      %p144 = scmp.ne.s32.totalorder %s129, %s143
      %p145 = scmp.eq.s32.totalorder %s32, 0
      %p146 = por %p144, %p145
      %s148 = sadd.s32 %s147, 1
      %p151 = scmp.eq.s32.totalorder %s26, 3
      %p152 = scmp.ne.s32.totalorder %s147, %s149
      %p153 = scmp.eq.s32.totalorder %s26, 0
      %p154 = por %p152, %p153
      %p155 = scmp.ne.s32.totalorder %s147, %s149
      %p156 = scmp.eq.s32.totalorder %s31, 3
      %p157 = por %p155, %p156
      %p158 = scmp.ne.s32.totalorder %s149, %s150
      %p159 = scmp.eq.s32.totalorder %s31, 0
      %p160 = por %p158, %p159
      %p161 = scmp.ne.s32.totalorder %s149, %s150
      %p162 = scmp.eq.s32.totalorder %s32, 3
      %p163 = por %p161, %p162
      %p165 = scmp.ne.s32.totalorder %s150, %s164
      %p166 = scmp.eq.s32.totalorder %s32, 0
      %p167 = por %p165, %p166
      %s169 = sadd.s32 %s168, 1
      %p172 = scmp.eq.s32.totalorder %s26, 3
      %p173 = scmp.ne.s32.totalorder %s168, %s170
      %p174 = scmp.eq.s32.totalorder %s26, 0
      %p175 = por %p173, %p174
      %p176 = scmp.ne.s32.totalorder %s168, %s170
      %p177 = scmp.eq.s32.totalorder %s31, 3
      %p178 = por %p176, %p177
      %p179 = scmp.ne.s32.totalorder %s170, %s171
      %p180 = scmp.eq.s32.totalorder %s31, 0
      %p181 = por %p179, %p180
      %p182 = scmp.ne.s32.totalorder %s170, %s171
      %p183 = scmp.eq.s32.totalorder %s32, 3
      %p184 = por %p182, %p183
      %p186 = scmp.ne.s32.totalorder %s171, %s185
      %p187 = scmp.eq.s32.totalorder %s32, 0
      %p188 = por %p186, %p187
      %s190 = sadd.s32 %s189, 1
      %p193 = scmp.eq.s32.totalorder %s26, 3
      %p194 = scmp.ne.s32.totalorder %s189, %s191
      %p195 = scmp.eq.s32.totalorder %s26, 0
      %p196 = por %p194, %p195
      %p197 = scmp.ne.s32.totalorder %s189, %s191
      %p198 = scmp.eq.s32.totalorder %s31, 3
      %p199 = por %p197, %p198
      %p200 = scmp.ne.s32.totalorder %s191, %s192
      %p201 = scmp.eq.s32.totalorder %s31, 0
      %p202 = por %p200, %p201
      %p203 = scmp.ne.s32.totalorder %s191, %s192
      %p204 = scmp.eq.s32.totalorder %s32, 3
      %p205 = por %p203, %p204
      %p207 = scmp.ne.s32.totalorder %s192, %s206
      %p208 = scmp.eq.s32.totalorder %s32, 0
      %p209 = por %p207, %p208
      %s211 = sadd.s32 %s210, 1
      %p214 = scmp.eq.s32.totalorder %s26, 3
      %p215 = scmp.ne.s32.totalorder %s210, %s212
      %p216 = scmp.eq.s32.totalorder %s26, 0
      %p217 = por %p215, %p216
      %p218 = scmp.ne.s32.totalorder %s210, %s212
      %p219 = scmp.eq.s32.totalorder %s31, 3
      %p220 = por %p218, %p219
      %p221 = scmp.ne.s32.totalorder %s212, %s213
      %p222 = scmp.eq.s32.totalorder %s31, 0
      %p223 = por %p221, %p222
      %p224 = scmp.ne.s32.totalorder %s212, %s213
      %p225 = scmp.eq.s32.totalorder %s32, 3
      %p226 = por %p224, %p225
      %p228 = scmp.ne.s32.totalorder %s213, %s227
      %p229 = scmp.eq.s32.totalorder %s32, 0
      %p230 = por %p228, %p229
      %s231 = ssub.s32 %s33, %s45
      %p232 = scmp.eq.s32.totalorder %s231, 0
      %s234 = sadd.s32 %s233, 1
      %s235 = scalar_select %p232, %s233, %s234
      %p238 = pneg %p232
      %p239 = scmp.eq.s32.totalorder %s26, 3
      %p240 = por %p238, %p239
      %p241 = scmp.ne.s32.totalorder %s233, %s236
      %p242 = scmp.eq.s32.totalorder %s26, 0
      %p243 = por %p241, %p242
      %p244 = scmp.ne.s32.totalorder %s233, %s236
      %p245 = scmp.eq.s32.totalorder %s31, 3
      %p246 = por %p244, %p245
      %p247 = scmp.ne.s32.totalorder %s236, %s237
      %p248 = scmp.eq.s32.totalorder %s31, 0
      %p249 = por %p247, %p248
      %p250 = scmp.ne.s32.totalorder %s236, %s237
      %p251 = scmp.eq.s32.totalorder %s32, 3
      %p252 = por %p250, %p251
      %p254 = scmp.ne.s32.totalorder %s237, %s253
      %p255 = scmp.eq.s32.totalorder %s32, 0
      %p256 = por %p254, %p255
      %p257 = scmp.le.s32.totalorder 1, %s26
      %p258 = scmp.lt.s32.totalorder %s26, 5
      %p259 = pnand %p257, %p258
      %p260 = pneg %p259
      // Predicated region
      $region9: #{tpu_custom_call.1} parent=5 // pred_check
        _
      $region10: #{tpu_custom_call.1} parent=5 // pred_check_branch
        %262 = sbr.rel (%p259) target = $region12
      $region11: #{tpu_custom_call.1} parent=5 // pred_region
        %s263 = ssub.s32 %s26, 1
        // Predicated region
        $region13: #{tpu_custom_call.1} parent=11 // pred_check
          %p264 = pneg %p139
        $region14: #{tpu_custom_call.1} parent=11 // pred_check_branch
          %266 = sbr.rel (%p264) target = $region16
        $region15: #{tpu_custom_call.1} parent=11 // pred_region
          %s268 = ssub.s32 16, 16
          %269 = vsyncadd [#allocation10], %s268
          %s271 = sshll.u32 [#allocation9], 4
          %s272 = int_to_ptr.vmem [resolvable:$true] %s271
          %274 = dma.hbm_to_vmem [thread:$0]  %s3, 16, %s272, [#allocation10]
        $region16: #{tpu_custom_call.1} parent=11 // pred_fallthru
          _
        // Predicated region
        $region17: #{tpu_custom_call.1} parent=11 // pred_check
          %p275 = pneg %p160
        $region18: #{tpu_custom_call.1} parent=11 // pred_check_branch
          %277 = sbr.rel (%p275) target = $region20
        $region19: #{tpu_custom_call.1} parent=11 // pred_region
          %s279 = ssub.s32 4096, 4096
          %280 = vsyncadd [#allocation10], %s279
          %s281 = sshll.u32 [#allocation11], 4
          %s282 = int_to_ptr.vmem [resolvable:$true] %s281
          %287 = dma.hbm_to_vmem [thread:$0]  %s4, 4096, %s282, [#allocation10], 256, 256, 16
        $region20: #{tpu_custom_call.1} parent=11 // pred_fallthru
          _
        // Predicated region
        $region21: #{tpu_custom_call.1} parent=11 // pred_check
          %p288 = pneg %p181
        $region22: #{tpu_custom_call.1} parent=11 // pred_check_branch
          %290 = sbr.rel (%p288) target = $region24
        $region23: #{tpu_custom_call.1} parent=11 // pred_region
          %s292 = ssub.s32 32, 32
          %293 = vsyncadd [#allocation13], %s292
          %s295 = sshll.u32 [#allocation12], 4
          %s296 = int_to_ptr.vmem [resolvable:$true] %s295
          %298 = dma.hbm_to_vmem [thread:$0]  %s5, 32, %s296, [#allocation13]
        $region24: #{tpu_custom_call.1} parent=11 // pred_fallthru
          _
        // Predicated region
        $region25: #{tpu_custom_call.1} parent=11 // pred_check
          %p299 = pneg %p202
        $region26: #{tpu_custom_call.1} parent=11 // pred_check_branch
          %301 = sbr.rel (%p299) target = $region28
        $region27: #{tpu_custom_call.1} parent=11 // pred_region
          %s303 = ssub.s32 4096, 4096
          %304 = vsyncadd [#allocation13], %s303
          %s305 = sshll.u32 [#allocation14], 4
          %s306 = int_to_ptr.vmem [resolvable:$true] %s305
          %311 = dma.hbm_to_vmem [thread:$0]  %s6, 4096, %s306, [#allocation13], 128, 128, 8
        $region28: #{tpu_custom_call.1} parent=11 // pred_fallthru
          _
        // Predicated region
        $region29: #{tpu_custom_call.1} parent=11 // pred_check
          %p312 = pneg %p223
        $region30: #{tpu_custom_call.1} parent=11 // pred_check_branch
          %314 = sbr.rel (%p312) target = $region32
        $region31: #{tpu_custom_call.1} parent=11 // pred_region
          %s316 = ssub.s32 16, 16
          %317 = vsyncadd [#allocation16], %s316
          %s319 = sshll.u32 [#allocation15], 4
          %s320 = int_to_ptr.vmem [resolvable:$true] %s319
          %322 = dma.hbm_to_vmem [thread:$0]  %s7, 16, %s320, [#allocation16]
        $region32: #{tpu_custom_call.1} parent=11 // pred_fallthru
          _
      $region12: #{tpu_custom_call.1} parent=5 // pred_fallthru
        _
      %p323 = scmp.lt.s32.totalorder %s26, 4
      // Predicated region
      $region33: #{tpu_custom_call.1} parent=5 // pred_check
        %p324 = pneg %p323
      $region34: #{tpu_custom_call.1} parent=5 // pred_check_branch
        %326 = sbr.rel (%p324) target = $region36
      $region35: #{tpu_custom_call.1} parent=5 // pred_region
        // Predicated region
        $region37: #{tpu_custom_call.1} parent=35 // pred_check
          %p327 = pneg %p60
        $region38: #{tpu_custom_call.1} parent=35 // pred_check_branch
          %329 = sbr.rel (%p327) target = $region40
        $region39: #{tpu_custom_call.1} parent=35 // pred_region
          %s330 = sand.u32 %s50, 1
          %s331 = scalar_lea.sflag [#allocation4], %s330
          %s332 = sand.u32 %s50, 1
          %s333 = smul.addr %s332, 1024
          %s334 = scalar_lea.vmem [#allocation3], %s333
          %s335 = smul.u32 64, %s33
          %s336 = smul.u32 4, %s34
          %s338 = ssub.s32 16384, 16384
          %339 = vsyncadd %s331, %s338
          %s340 = smul.addr %s335, 8
          %s341 = sadd.s32 %s336, %s340
          %s342 = smul.addr %s341, 64
          %s343 = scalar_lea.hbm %s0, %s342
          %s344 = sshll.u32 %s334, 4
          %s345 = int_to_ptr.vmem [resolvable:$true] %s344
          %350 = dma.hbm_to_vmem [thread:$0]  %s343, 16384, %s345, %s331, 512, 256, 16
        $region40: #{tpu_custom_call.1} parent=35 // pred_fallthru
          _
        // Predicated region
        $region41: #{tpu_custom_call.1} parent=35 // pred_check
          %p351 = pneg %p86
        $region42: #{tpu_custom_call.1} parent=35 // pred_check_branch
          %353 = sbr.rel (%p351) target = $region44
        $region43: #{tpu_custom_call.1} parent=35 // pred_region
          %s354 = sand.u32 %s26, 1
          %s355 = scalar_lea.sflag [#allocation7], %s354
          %s356 = sand.u32 %s76, 1
          %s357 = smul.addr %s356, 512
          %s358 = scalar_lea.vmem [#allocation6], %s357
          %s359 = smul.u32 64, %s34
          %s361 = ssub.s32 8192, 8192
          %362 = vsyncadd %s355, %s361
          %s363 = smul.addr %s359, 128
          %s364 = scalar_lea.hbm %s1, %s363
          %s365 = sshll.u32 %s358, 4
          %s366 = int_to_ptr.vmem [resolvable:$true] %s365
          %371 = dma.hbm_to_vmem [thread:$0]  %s364, 8192, %s366, %s355, 128, 128, 8
        $region44: #{tpu_custom_call.1} parent=35 // pred_fallthru
          _
        // Predicated region
        $region45: #{tpu_custom_call.1} parent=35 // pred_check
          %p372 = pneg %p112
        $region46: #{tpu_custom_call.1} parent=35 // pred_check_branch
          %374 = sbr.rel (%p372) target = $region48
        $region47: #{tpu_custom_call.1} parent=35 // pred_region
          %s375 = sand.u32 %s26, 1
          %s376 = scalar_lea.sflag [#allocation7], %s375
          %s377 = sand.u32 %s102, 1
          %s378 = smul.addr %s377, 512
          %s379 = scalar_lea.vmem [#allocation8], %s378
          %s380 = smul.u32 64, %s33
          %s382 = ssub.s32 8192, 8192
          %383 = vsyncadd %s376, %s382
          %s384 = smul.addr %s380, 128
          %s385 = scalar_lea.hbm %s2, %s384
          %s386 = sshll.u32 %s379, 4
          %s387 = int_to_ptr.vmem [resolvable:$true] %s386
          %392 = dma.hbm_to_vmem [thread:$0]  %s385, 8192, %s387, %s376, 128, 128, 8
        $region48: #{tpu_custom_call.1} parent=35 // pred_fallthru
          _
      $region36: #{tpu_custom_call.1} parent=5 // pred_fallthru
        _
      %p393 = scmp.le.s32.totalorder 1, %s26
      %p394 = scmp.lt.s32.totalorder %s26, 5
      %p395 = pnand %p393, %p394
      %p396 = pneg %p395
      // Predicated region
      $region49: #{tpu_custom_call.1} parent=5 // pred_check
        _
      $region50: #{tpu_custom_call.1} parent=5 // pred_check_branch
        %398 = sbr.rel (%p395) target = $region52
      $region51: #{tpu_custom_call.1} parent=5 // pred_region
        %s399 = ssub.s32 %s26, 1
        %s400 = sand.u32 %s53, 1
        %s401 = scalar_lea.sflag [#allocation4], %s400
        %s402 = sand.u32 %s53, 1
        %s403 = smul.addr %s402, 1024
        %s404 = scalar_lea.vmem [#allocation3], %s403
        // Predicated region
        $region53: #{tpu_custom_call.1} parent=51 // pred_check
          %p405 = pneg %p66
        $region54: #{tpu_custom_call.1} parent=51 // pred_check_branch
          %407 = sbr.rel (%p405) target = $region56
        $region55: #{tpu_custom_call.1} parent=51 // pred_region
          %408 = dma.done %s401, 16384
        $region56: #{tpu_custom_call.1} parent=51 // pred_fallthru
          _
        %s409 = sand.u32 %s31, 1
        %s410 = scalar_lea.sflag [#allocation7], %s409
        %s411 = sand.u32 %s79, 1
        %s412 = smul.addr %s411, 512
        %s413 = scalar_lea.vmem [#allocation6], %s412
        // Predicated region
        $region57: #{tpu_custom_call.1} parent=51 // pred_check
          %p414 = pneg %p92
        $region58: #{tpu_custom_call.1} parent=51 // pred_check_branch
          %416 = sbr.rel (%p414) target = $region60
        $region59: #{tpu_custom_call.1} parent=51 // pred_region
          %417 = dma.done %s410, 8192
        $region60: #{tpu_custom_call.1} parent=51 // pred_fallthru
          _
        %s418 = sand.u32 %s31, 1
        %s419 = scalar_lea.sflag [#allocation7], %s418
        %s420 = sand.u32 %s105, 1
        %s421 = smul.addr %s420, 512
        %s422 = scalar_lea.vmem [#allocation8], %s421
        // Predicated region
        $region61: #{tpu_custom_call.1} parent=51 // pred_check
          %p423 = pneg %p118
        $region62: #{tpu_custom_call.1} parent=51 // pred_check_branch
          %425 = sbr.rel (%p423) target = $region64
        $region63: #{tpu_custom_call.1} parent=51 // pred_region
          %426 = dma.done %s419, 8192
        $region64: #{tpu_custom_call.1} parent=51 // pred_fallthru
          _
        // Predicated region
        $region65: #{tpu_custom_call.1} parent=51 // pred_check
          %p427 = pneg %p139
        $region66: #{tpu_custom_call.1} parent=51 // pred_check_branch
          %429 = sbr.rel (%p427) target = $region68
        $region67: #{tpu_custom_call.1} parent=51 // pred_region
          %430 = dma.done [#allocation10], 16
        $region68: #{tpu_custom_call.1} parent=51 // pred_fallthru
          _
        // Predicated region
        $region69: #{tpu_custom_call.1} parent=51 // pred_check
          %p431 = pneg %p160
        $region70: #{tpu_custom_call.1} parent=51 // pred_check_branch
          %433 = sbr.rel (%p431) target = $region72
        $region71: #{tpu_custom_call.1} parent=51 // pred_region
          %434 = dma.done [#allocation10], 4096
        $region72: #{tpu_custom_call.1} parent=51 // pred_fallthru
          _
        // Predicated region
        $region73: #{tpu_custom_call.1} parent=51 // pred_check
          %p435 = pneg %p181
        $region74: #{tpu_custom_call.1} parent=51 // pred_check_branch
          %437 = sbr.rel (%p435) target = $region76
        $region75: #{tpu_custom_call.1} parent=51 // pred_region
          %438 = dma.done [#allocation13], 32
        $region76: #{tpu_custom_call.1} parent=51 // pred_fallthru
          _
        // Predicated region
        $region77: #{tpu_custom_call.1} parent=51 // pred_check
          %p439 = pneg %p202
        $region78: #{tpu_custom_call.1} parent=51 // pred_check_branch
          %441 = sbr.rel (%p439) target = $region80
        $region79: #{tpu_custom_call.1} parent=51 // pred_region
          %442 = dma.done [#allocation13], 4096
        $region80: #{tpu_custom_call.1} parent=51 // pred_fallthru
          _
        // Predicated region
        $region81: #{tpu_custom_call.1} parent=51 // pred_check
          %p443 = pneg %p223
        $region82: #{tpu_custom_call.1} parent=51 // pred_check_branch
          %445 = sbr.rel (%p443) target = $region84
        $region83: #{tpu_custom_call.1} parent=51 // pred_region
          %446 = dma.done [#allocation16], 16
        $region84: #{tpu_custom_call.1} parent=51 // pred_fallthru
          _
        %s447 = sand.u32 %s53, 1
        %s448 = scalar_lea.sflag [#allocation4], %s447
        %s449 = sand.u32 %s53, 1
        %s450 = smul.addr %s449, 1024
        %s451 = scalar_lea.vmem [#allocation3], %s450
        %p452 = pneg %p66
        %p453 = pneg %p63
        %s454 = sand.u32 %s31, 1
        %s455 = scalar_lea.sflag [#allocation7], %s454
        %s456 = sand.u32 %s79, 1
        %s457 = smul.addr %s456, 512
        %s458 = scalar_lea.vmem [#allocation6], %s457
        %p459 = pneg %p92
        %p460 = pneg %p89
        %s461 = sand.u32 %s31, 1
        %s462 = scalar_lea.sflag [#allocation7], %s461
        %s463 = sand.u32 %s105, 1
        %s464 = smul.addr %s463, 512
        %s465 = scalar_lea.vmem [#allocation8], %s464
        %p466 = pneg %p118
        %p467 = pneg %p115
        %p468 = pneg %p139
        %p469 = pneg %p136
        %p470 = pneg %p160
        %p471 = pneg %p157
        %p472 = pneg %p181
        %p473 = pneg %p178
        %p474 = pneg %p202
        %p475 = pneg %p199
        %p476 = pneg %p223
        %p477 = pneg %p220
        %p478 = pneg %p249
        %p479 = pneg %p246
        %s480 = sand.u32 %s236, 1
        %s481 = scalar_lea.sflag [#allocation5], %s480
        %s482 = sand.u32 %s236, 1
        %s483 = smul.addr %s482, 512
        %s484 = scalar_lea.vmem [#allocation17], %s483
        %s485 = smul.u32 64, %s35
        %s486 = smul.u32 4, %s36
        %s487 = smul.u32 64, %s36
        %s488 = smul.u32 64, %s35
        %s489 = smul.u32 64, %s35
        %p490 = scmp.eq.s32.totalorder %s36, 0
        // Predicated region
        $region85: #{tpu_custom_call.1} parent=51 // pred_check
          %p491 = pneg %p490
        $region86: #{tpu_custom_call.1} parent=51 // pred_check_branch
          %493 = sbr.rel (%p491) target = $region88
        $region87: #{tpu_custom_call.1} parent=51 // pred_region
          %494 = vst [vmem:[#allocation2] sm:$0xff] 0.0
          %495 = vst [vmem:[#allocation2 + $0x8] sm:$0xff] 0.0
          %496 = vst [vmem:[#allocation2 + $0x10] sm:$0xff] 0.0
          %497 = vst [vmem:[#allocation2 + $0x18] sm:$0xff] 0.0
          %498 = vst [vmem:[#allocation2 + $0x20] sm:$0xff] 0.0
          %499 = vst [vmem:[#allocation2 + $0x28] sm:$0xff] 0.0
          %500 = vst [vmem:[#allocation2 + $0x30] sm:$0xff] 0.0
          %501 = vst [vmem:[#allocation2 + $0x38] sm:$0xff] 0.0
          %502 = vst [vmem:[#allocation2 + $0x40] sm:$0xff] 0.0
          %503 = vst [vmem:[#allocation2 + $0x48] sm:$0xff] 0.0
          %504 = vst [vmem:[#allocation2 + $0x50] sm:$0xff] 0.0
          %505 = vst [vmem:[#allocation2 + $0x58] sm:$0xff] 0.0
          %506 = vst [vmem:[#allocation2 + $0x60] sm:$0xff] 0.0
          %507 = vst [vmem:[#allocation2 + $0x68] sm:$0xff] 0.0
          %508 = vst [vmem:[#allocation2 + $0x70] sm:$0xff] 0.0
          %509 = vst [vmem:[#allocation2 + $0x78] sm:$0xff] 0.0
          %510 = vst [vmem:[#allocation2 + $0x80] sm:$0xff] 0.0
          %511 = vst [vmem:[#allocation2 + $0x88] sm:$0xff] 0.0
          %512 = vst [vmem:[#allocation2 + $0x90] sm:$0xff] 0.0
          %513 = vst [vmem:[#allocation2 + $0x98] sm:$0xff] 0.0
          %514 = vst [vmem:[#allocation2 + $0xa0] sm:$0xff] 0.0
          %515 = vst [vmem:[#allocation2 + $0xa8] sm:$0xff] 0.0
          %516 = vst [vmem:[#allocation2 + $0xb0] sm:$0xff] 0.0
          %517 = vst [vmem:[#allocation2 + $0xb8] sm:$0xff] 0.0
          %518 = vst [vmem:[#allocation2 + $0xc0] sm:$0xff] 0.0
          %519 = vst [vmem:[#allocation2 + $0xc8] sm:$0xff] 0.0
          %520 = vst [vmem:[#allocation2 + $0xd0] sm:$0xff] 0.0
          %521 = vst [vmem:[#allocation2 + $0xd8] sm:$0xff] 0.0
          %522 = vst [vmem:[#allocation2 + $0xe0] sm:$0xff] 0.0
          %523 = vst [vmem:[#allocation2 + $0xe8] sm:$0xff] 0.0
          %524 = vst [vmem:[#allocation2 + $0xf0] sm:$0xff] 0.0
          %525 = vst [vmem:[#allocation2 + $0xf8] sm:$0xff] 0.0
          %526 = vst [vmem:[#allocation2 + $0x100] sm:$0xff] 0.0
          %527 = vst [vmem:[#allocation2 + $0x108] sm:$0xff] 0.0
          %528 = vst [vmem:[#allocation2 + $0x110] sm:$0xff] 0.0
          %529 = vst [vmem:[#allocation2 + $0x118] sm:$0xff] 0.0
          %530 = vst [vmem:[#allocation2 + $0x120] sm:$0xff] 0.0
          %531 = vst [vmem:[#allocation2 + $0x128] sm:$0xff] 0.0
          %532 = vst [vmem:[#allocation2 + $0x130] sm:$0xff] 0.0
          %533 = vst [vmem:[#allocation2 + $0x138] sm:$0xff] 0.0
          %534 = vst [vmem:[#allocation2 + $0x140] sm:$0xff] 0.0
          %535 = vst [vmem:[#allocation2 + $0x148] sm:$0xff] 0.0
          %536 = vst [vmem:[#allocation2 + $0x150] sm:$0xff] 0.0
          %537 = vst [vmem:[#allocation2 + $0x158] sm:$0xff] 0.0
          %538 = vst [vmem:[#allocation2 + $0x160] sm:$0xff] 0.0
          %539 = vst [vmem:[#allocation2 + $0x168] sm:$0xff] 0.0
          %540 = vst [vmem:[#allocation2 + $0x170] sm:$0xff] 0.0
          %541 = vst [vmem:[#allocation2 + $0x178] sm:$0xff] 0.0
          %542 = vst [vmem:[#allocation2 + $0x180] sm:$0xff] 0.0
          %543 = vst [vmem:[#allocation2 + $0x188] sm:$0xff] 0.0
          %544 = vst [vmem:[#allocation2 + $0x190] sm:$0xff] 0.0
          %545 = vst [vmem:[#allocation2 + $0x198] sm:$0xff] 0.0
          %546 = vst [vmem:[#allocation2 + $0x1a0] sm:$0xff] 0.0
          %547 = vst [vmem:[#allocation2 + $0x1a8] sm:$0xff] 0.0
          %548 = vst [vmem:[#allocation2 + $0x1b0] sm:$0xff] 0.0
          %549 = vst [vmem:[#allocation2 + $0x1b8] sm:$0xff] 0.0
          %550 = vst [vmem:[#allocation2 + $0x1c0] sm:$0xff] 0.0
          %551 = vst [vmem:[#allocation2 + $0x1c8] sm:$0xff] 0.0
          %552 = vst [vmem:[#allocation2 + $0x1d0] sm:$0xff] 0.0
          %553 = vst [vmem:[#allocation2 + $0x1d8] sm:$0xff] 0.0
          %554 = vst [vmem:[#allocation2 + $0x1e0] sm:$0xff] 0.0
          %555 = vst [vmem:[#allocation2 + $0x1e8] sm:$0xff] 0.0
          %556 = vst [vmem:[#allocation2 + $0x1f0] sm:$0xff] 0.0
          %557 = vst [vmem:[#allocation2 + $0x1f8] sm:$0xff] 0.0
        $region88: #{tpu_custom_call.1} parent=51 // pred_fallthru
          _
        %v558 = vld [vmem:[%s413] sm:$0xff]
        %v559 = vld [vmem:[%s413 + $0x8] sm:$0xff]
        %v560 = vld [vmem:[%s413 + $0x10] sm:$0xff]
        %v561 = vld [vmem:[%s413 + $0x18] sm:$0xff]
        %v562 = vld [vmem:[%s413 + $0x20] sm:$0xff]
        %v563 = vld [vmem:[%s413 + $0x28] sm:$0xff]
        %v564 = vld [vmem:[%s413 + $0x30] sm:$0xff]
        %v565 = vld [vmem:[%s413 + $0x38] sm:$0xff]
        %v566 = vld [vmem:[%s413 + $0x40] sm:$0xff]
        %v567 = vld [vmem:[%s413 + $0x48] sm:$0xff]
        %v568 = vld [vmem:[%s413 + $0x50] sm:$0xff]
        %v569 = vld [vmem:[%s413 + $0x58] sm:$0xff]
        %v570 = vld [vmem:[%s413 + $0x60] sm:$0xff]
        %v571 = vld [vmem:[%s413 + $0x68] sm:$0xff]
        %v572 = vld [vmem:[%s413 + $0x70] sm:$0xff]
        %v573 = vld [vmem:[%s413 + $0x78] sm:$0xff]
        %v574 = vld [vmem:[%s413 + $0x80] sm:$0xff]
        %v575 = vld [vmem:[%s413 + $0x88] sm:$0xff]
        %v576 = vld [vmem:[%s413 + $0x90] sm:$0xff]
        %v577 = vld [vmem:[%s413 + $0x98] sm:$0xff]
        %v578 = vld [vmem:[%s413 + $0xa0] sm:$0xff]
        %v579 = vld [vmem:[%s413 + $0xa8] sm:$0xff]
        %v580 = vld [vmem:[%s413 + $0xb0] sm:$0xff]
        %v581 = vld [vmem:[%s413 + $0xb8] sm:$0xff]
        %v582 = vld [vmem:[%s413 + $0xc0] sm:$0xff]
        %v583 = vld [vmem:[%s413 + $0xc8] sm:$0xff]
        %v584 = vld [vmem:[%s413 + $0xd0] sm:$0xff]
        %v585 = vld [vmem:[%s413 + $0xd8] sm:$0xff]
        %v586 = vld [vmem:[%s413 + $0xe0] sm:$0xff]
        %v587 = vld [vmem:[%s413 + $0xe8] sm:$0xff]
        %v588 = vld [vmem:[%s413 + $0xf0] sm:$0xff]
        %v589 = vld [vmem:[%s413 + $0xf8] sm:$0xff]
        %v590 = vld [vmem:[%s413 + $0x100] sm:$0xff]
        %v591 = vld [vmem:[%s413 + $0x108] sm:$0xff]
        %v592 = vld [vmem:[%s413 + $0x110] sm:$0xff]
        %v593 = vld [vmem:[%s413 + $0x118] sm:$0xff]
        %v594 = vld [vmem:[%s413 + $0x120] sm:$0xff]
        %v595 = vld [vmem:[%s413 + $0x128] sm:$0xff]
        %v596 = vld [vmem:[%s413 + $0x130] sm:$0xff]
        %v597 = vld [vmem:[%s413 + $0x138] sm:$0xff]
        %v598 = vld [vmem:[%s413 + $0x140] sm:$0xff]
        %v599 = vld [vmem:[%s413 + $0x148] sm:$0xff]
        %v600 = vld [vmem:[%s413 + $0x150] sm:$0xff]
        %v601 = vld [vmem:[%s413 + $0x158] sm:$0xff]
        %v602 = vld [vmem:[%s413 + $0x160] sm:$0xff]
        %v603 = vld [vmem:[%s413 + $0x168] sm:$0xff]
        %v604 = vld [vmem:[%s413 + $0x170] sm:$0xff]
        %v605 = vld [vmem:[%s413 + $0x178] sm:$0xff]
        %v606 = vld [vmem:[%s413 + $0x180] sm:$0xff]
        %v607 = vld [vmem:[%s413 + $0x188] sm:$0xff]
        %v608 = vld [vmem:[%s413 + $0x190] sm:$0xff]
        %v609 = vld [vmem:[%s413 + $0x198] sm:$0xff]
        %v610 = vld [vmem:[%s413 + $0x1a0] sm:$0xff]
        %v611 = vld [vmem:[%s413 + $0x1a8] sm:$0xff]
        %v612 = vld [vmem:[%s413 + $0x1b0] sm:$0xff]
        %v613 = vld [vmem:[%s413 + $0x1b8] sm:$0xff]
        %v614 = vld [vmem:[%s413 + $0x1c0] sm:$0xff]
        %v615 = vld [vmem:[%s413 + $0x1c8] sm:$0xff]
        %v616 = vld [vmem:[%s413 + $0x1d0] sm:$0xff]
        %v617 = vld [vmem:[%s413 + $0x1d8] sm:$0xff]
        %v618 = vld [vmem:[%s413 + $0x1e0] sm:$0xff]
        %v619 = vld [vmem:[%s413 + $0x1e8] sm:$0xff]
        %v620 = vld [vmem:[%s413 + $0x1f0] sm:$0xff]
        %v621 = vld [vmem:[%s413 + $0x1f8] sm:$0xff]
        %v622 = vld [vmem:[#allocation9] sm:$0x1]
        %v624 = vlaneseq
        %v625 = vshrl.u32 %v624, 7
        %v626 = vsub.s32 0, %v625
        %v627 = vrot.slane %v622, %v626
        %v629 = vadd.f32 %v558, %v627
        %v630 = vadd.f32 %v559, %v627
        %v631 = vadd.f32 %v560, %v627
        %v632 = vadd.f32 %v561, %v627
        %v633 = vadd.f32 %v562, %v627
        %v634 = vadd.f32 %v563, %v627
        %v635 = vadd.f32 %v564, %v627
        %v636 = vadd.f32 %v565, %v627
        %v637 = vadd.f32 %v566, %v627
        %v638 = vadd.f32 %v567, %v627
        %v639 = vadd.f32 %v568, %v627
        %v640 = vadd.f32 %v569, %v627
        %v641 = vadd.f32 %v570, %v627
        %v642 = vadd.f32 %v571, %v627
        %v643 = vadd.f32 %v572, %v627
        %v644 = vadd.f32 %v573, %v627
        %v645 = vadd.f32 %v574, %v627
        %v646 = vadd.f32 %v575, %v627
        %v647 = vadd.f32 %v576, %v627
        %v648 = vadd.f32 %v577, %v627
        %v649 = vadd.f32 %v578, %v627
        %v650 = vadd.f32 %v579, %v627
        %v651 = vadd.f32 %v580, %v627
        %v652 = vadd.f32 %v581, %v627
        %v653 = vadd.f32 %v582, %v627
        %v654 = vadd.f32 %v583, %v627
        %v655 = vadd.f32 %v584, %v627
        %v656 = vadd.f32 %v585, %v627
        %v657 = vadd.f32 %v586, %v627
        %v658 = vadd.f32 %v587, %v627
        %v659 = vadd.f32 %v588, %v627
        %v660 = vadd.f32 %v589, %v627
        %v661 = vadd.f32 %v590, %v627
        %v662 = vadd.f32 %v591, %v627
        %v663 = vadd.f32 %v592, %v627
        %v664 = vadd.f32 %v593, %v627
        %v665 = vadd.f32 %v594, %v627
        %v666 = vadd.f32 %v595, %v627
        %v667 = vadd.f32 %v596, %v627
        %v668 = vadd.f32 %v597, %v627
        %v669 = vadd.f32 %v598, %v627
        %v670 = vadd.f32 %v599, %v627
        %v671 = vadd.f32 %v600, %v627
        %v672 = vadd.f32 %v601, %v627
        %v673 = vadd.f32 %v602, %v627
        %v674 = vadd.f32 %v603, %v627
        %v675 = vadd.f32 %v604, %v627
        %v676 = vadd.f32 %v605, %v627
        %v677 = vadd.f32 %v606, %v627
        %v678 = vadd.f32 %v607, %v627
        %v679 = vadd.f32 %v608, %v627
        %v680 = vadd.f32 %v609, %v627
        %v681 = vadd.f32 %v610, %v627
        %v682 = vadd.f32 %v611, %v627
        %v683 = vadd.f32 %v612, %v627
        %v684 = vadd.f32 %v613, %v627
        %v685 = vadd.f32 %v614, %v627
        %v686 = vadd.f32 %v615, %v627
        %v687 = vadd.f32 %v616, %v627
        %v688 = vadd.f32 %v617, %v627
        %v689 = vadd.f32 %v618, %v627
        %v690 = vadd.f32 %v619, %v627
        %v691 = vadd.f32 %v620, %v627
        %v692 = vadd.f32 %v621, %v627
        %v693 = vmax.f32 %v629, 0.0
        %v694 = vmax.f32 %v630, 0.0
        %v695 = vmax.f32 %v631, 0.0
        %v696 = vmax.f32 %v632, 0.0
        %v697 = vmax.f32 %v633, 0.0
        %v698 = vmax.f32 %v634, 0.0
        %v699 = vmax.f32 %v635, 0.0
        %v700 = vmax.f32 %v636, 0.0
        %v701 = vmax.f32 %v637, 0.0
        %v702 = vmax.f32 %v638, 0.0
        %v703 = vmax.f32 %v639, 0.0
        %v704 = vmax.f32 %v640, 0.0
        %v705 = vmax.f32 %v641, 0.0
        %v706 = vmax.f32 %v642, 0.0
        %v707 = vmax.f32 %v643, 0.0
        %v708 = vmax.f32 %v644, 0.0
        %v709 = vmax.f32 %v645, 0.0
        %v710 = vmax.f32 %v646, 0.0
        %v711 = vmax.f32 %v647, 0.0
        %v712 = vmax.f32 %v648, 0.0
        %v713 = vmax.f32 %v649, 0.0
        %v714 = vmax.f32 %v650, 0.0
        %v715 = vmax.f32 %v651, 0.0
        %v716 = vmax.f32 %v652, 0.0
        %v717 = vmax.f32 %v653, 0.0
        %v718 = vmax.f32 %v654, 0.0
        %v719 = vmax.f32 %v655, 0.0
        %v720 = vmax.f32 %v656, 0.0
        %v721 = vmax.f32 %v657, 0.0
        %v722 = vmax.f32 %v658, 0.0
        %v723 = vmax.f32 %v659, 0.0
        %v724 = vmax.f32 %v660, 0.0
        %v725 = vmax.f32 %v661, 0.0
        %v726 = vmax.f32 %v662, 0.0
        %v727 = vmax.f32 %v663, 0.0
        %v728 = vmax.f32 %v664, 0.0
        %v729 = vmax.f32 %v665, 0.0
        %v730 = vmax.f32 %v666, 0.0
        %v731 = vmax.f32 %v667, 0.0
        %v732 = vmax.f32 %v668, 0.0
        %v733 = vmax.f32 %v669, 0.0
        %v734 = vmax.f32 %v670, 0.0
        %v735 = vmax.f32 %v671, 0.0
        %v736 = vmax.f32 %v672, 0.0
        %v737 = vmax.f32 %v673, 0.0
        %v738 = vmax.f32 %v674, 0.0
        %v739 = vmax.f32 %v675, 0.0
        %v740 = vmax.f32 %v676, 0.0
        %v741 = vmax.f32 %v677, 0.0
        %v742 = vmax.f32 %v678, 0.0
        %v743 = vmax.f32 %v679, 0.0
        %v744 = vmax.f32 %v680, 0.0
        %v745 = vmax.f32 %v681, 0.0
        %v746 = vmax.f32 %v682, 0.0
        %v747 = vmax.f32 %v683, 0.0
        %v748 = vmax.f32 %v684, 0.0
        %v749 = vmax.f32 %v685, 0.0
        %v750 = vmax.f32 %v686, 0.0
        %v751 = vmax.f32 %v687, 0.0
        %v752 = vmax.f32 %v688, 0.0
        %v753 = vmax.f32 %v689, 0.0
        %v754 = vmax.f32 %v690, 0.0
        %v755 = vmax.f32 %v691, 0.0
        %v756 = vmax.f32 %v692, 0.0
        %v757 = vld [vmem:[#allocation2] sm:$0xff]
        %v758 = vld [vmem:[#allocation2 + $0x8] sm:$0xff]
        %v759 = vld [vmem:[#allocation2 + $0x10] sm:$0xff]
        %v760 = vld [vmem:[#allocation2 + $0x18] sm:$0xff]
        %v761 = vld [vmem:[#allocation2 + $0x20] sm:$0xff]
        %v762 = vld [vmem:[#allocation2 + $0x28] sm:$0xff]
        %v763 = vld [vmem:[#allocation2 + $0x30] sm:$0xff]
        %v764 = vld [vmem:[#allocation2 + $0x38] sm:$0xff]
        %v765 = vld [vmem:[#allocation2 + $0x40] sm:$0xff]
        %v766 = vld [vmem:[#allocation2 + $0x48] sm:$0xff]
        %v767 = vld [vmem:[#allocation2 + $0x50] sm:$0xff]
        %v768 = vld [vmem:[#allocation2 + $0x58] sm:$0xff]
        %v769 = vld [vmem:[#allocation2 + $0x60] sm:$0xff]
        %v770 = vld [vmem:[#allocation2 + $0x68] sm:$0xff]
        %v771 = vld [vmem:[#allocation2 + $0x70] sm:$0xff]
        %v772 = vld [vmem:[#allocation2 + $0x78] sm:$0xff]
        %v773 = vld [vmem:[#allocation2 + $0x80] sm:$0xff]
        %v774 = vld [vmem:[#allocation2 + $0x88] sm:$0xff]
        %v775 = vld [vmem:[#allocation2 + $0x90] sm:$0xff]
        %v776 = vld [vmem:[#allocation2 + $0x98] sm:$0xff]
        %v777 = vld [vmem:[#allocation2 + $0xa0] sm:$0xff]
        %v778 = vld [vmem:[#allocation2 + $0xa8] sm:$0xff]
        %v779 = vld [vmem:[#allocation2 + $0xb0] sm:$0xff]
        %v780 = vld [vmem:[#allocation2 + $0xb8] sm:$0xff]
        %v781 = vld [vmem:[#allocation2 + $0xc0] sm:$0xff]
        %v782 = vld [vmem:[#allocation2 + $0xc8] sm:$0xff]
        %v783 = vld [vmem:[#allocation2 + $0xd0] sm:$0xff]
        %v784 = vld [vmem:[#allocation2 + $0xd8] sm:$0xff]
        %v785 = vld [vmem:[#allocation2 + $0xe0] sm:$0xff]
        %v786 = vld [vmem:[#allocation2 + $0xe8] sm:$0xff]
        %v787 = vld [vmem:[#allocation2 + $0xf0] sm:$0xff]
        %v788 = vld [vmem:[#allocation2 + $0xf8] sm:$0xff]
        %v789 = vld [vmem:[#allocation2 + $0x100] sm:$0xff]
        %v790 = vld [vmem:[#allocation2 + $0x108] sm:$0xff]
        %v791 = vld [vmem:[#allocation2 + $0x110] sm:$0xff]
        %v792 = vld [vmem:[#allocation2 + $0x118] sm:$0xff]
        %v793 = vld [vmem:[#allocation2 + $0x120] sm:$0xff]
        %v794 = vld [vmem:[#allocation2 + $0x128] sm:$0xff]
        %v795 = vld [vmem:[#allocation2 + $0x130] sm:$0xff]
        %v796 = vld [vmem:[#allocation2 + $0x138] sm:$0xff]
        %v797 = vld [vmem:[#allocation2 + $0x140] sm:$0xff]
        %v798 = vld [vmem:[#allocation2 + $0x148] sm:$0xff]
        %v799 = vld [vmem:[#allocation2 + $0x150] sm:$0xff]
        %v800 = vld [vmem:[#allocation2 + $0x158] sm:$0xff]
        %v801 = vld [vmem:[#allocation2 + $0x160] sm:$0xff]
        %v802 = vld [vmem:[#allocation2 + $0x168] sm:$0xff]
        %v803 = vld [vmem:[#allocation2 + $0x170] sm:$0xff]
        %v804 = vld [vmem:[#allocation2 + $0x178] sm:$0xff]
        %v805 = vld [vmem:[#allocation2 + $0x180] sm:$0xff]
        %v806 = vld [vmem:[#allocation2 + $0x188] sm:$0xff]
        %v807 = vld [vmem:[#allocation2 + $0x190] sm:$0xff]
        %v808 = vld [vmem:[#allocation2 + $0x198] sm:$0xff]
        %v809 = vld [vmem:[#allocation2 + $0x1a0] sm:$0xff]
        %v810 = vld [vmem:[#allocation2 + $0x1a8] sm:$0xff]
        %v811 = vld [vmem:[#allocation2 + $0x1b0] sm:$0xff]
        %v812 = vld [vmem:[#allocation2 + $0x1b8] sm:$0xff]
        %v813 = vld [vmem:[#allocation2 + $0x1c0] sm:$0xff]
        %v814 = vld [vmem:[#allocation2 + $0x1c8] sm:$0xff]
        %v815 = vld [vmem:[#allocation2 + $0x1d0] sm:$0xff]
        %v816 = vld [vmem:[#allocation2 + $0x1d8] sm:$0xff]
        %v817 = vld [vmem:[#allocation2 + $0x1e0] sm:$0xff]
        %v818 = vld [vmem:[#allocation2 + $0x1e8] sm:$0xff]
        %v819 = vld [vmem:[#allocation2 + $0x1f0] sm:$0xff]
        %v820 = vld [vmem:[#allocation2 + $0x1f8] sm:$0xff]
        %v821 = vld [vmem:[%s404] sm:$0xff]
        %v822 = vld [vmem:[%s404 + $0x8] sm:$0xff]
        %v823 = vld [vmem:[%s404 + $0x10] sm:$0xff]
        %v824 = vld [vmem:[%s404 + $0x18] sm:$0xff]
        %v825 = vld [vmem:[%s404 + $0x20] sm:$0xff]
        %v826 = vld [vmem:[%s404 + $0x28] sm:$0xff]
        %v827 = vld [vmem:[%s404 + $0x30] sm:$0xff]
        %v828 = vld [vmem:[%s404 + $0x38] sm:$0xff]
        %v829 = vld [vmem:[%s404 + $0x40] sm:$0xff]
        %v830 = vld [vmem:[%s404 + $0x48] sm:$0xff]
        %v831 = vld [vmem:[%s404 + $0x50] sm:$0xff]
        %v832 = vld [vmem:[%s404 + $0x58] sm:$0xff]
        %v833 = vld [vmem:[%s404 + $0x60] sm:$0xff]
        %v834 = vld [vmem:[%s404 + $0x68] sm:$0xff]
        %v835 = vld [vmem:[%s404 + $0x70] sm:$0xff]
        %v836 = vld [vmem:[%s404 + $0x78] sm:$0xff]
        %v837 = vld [vmem:[%s404 + $0x80] sm:$0xff]
        %v838 = vld [vmem:[%s404 + $0x88] sm:$0xff]
        %v839 = vld [vmem:[%s404 + $0x90] sm:$0xff]
        %v840 = vld [vmem:[%s404 + $0x98] sm:$0xff]
        %v841 = vld [vmem:[%s404 + $0xa0] sm:$0xff]
        %v842 = vld [vmem:[%s404 + $0xa8] sm:$0xff]
        %v843 = vld [vmem:[%s404 + $0xb0] sm:$0xff]
        %v844 = vld [vmem:[%s404 + $0xb8] sm:$0xff]
        %v845 = vld [vmem:[%s404 + $0xc0] sm:$0xff]
        %v846 = vld [vmem:[%s404 + $0xc8] sm:$0xff]
        %v847 = vld [vmem:[%s404 + $0xd0] sm:$0xff]
        %v848 = vld [vmem:[%s404 + $0xd8] sm:$0xff]
        %v849 = vld [vmem:[%s404 + $0xe0] sm:$0xff]
        %v850 = vld [vmem:[%s404 + $0xe8] sm:$0xff]
        %v851 = vld [vmem:[%s404 + $0xf0] sm:$0xff]
        %v852 = vld [vmem:[%s404 + $0xf8] sm:$0xff]
        %v853 = vld [vmem:[%s404 + $0x100] sm:$0xff]
        %v854 = vld [vmem:[%s404 + $0x108] sm:$0xff]
        %v855 = vld [vmem:[%s404 + $0x110] sm:$0xff]
        %v856 = vld [vmem:[%s404 + $0x118] sm:$0xff]
        %v857 = vld [vmem:[%s404 + $0x120] sm:$0xff]
        %v858 = vld [vmem:[%s404 + $0x128] sm:$0xff]
        %v859 = vld [vmem:[%s404 + $0x130] sm:$0xff]
        %v860 = vld [vmem:[%s404 + $0x138] sm:$0xff]
        %v861 = vld [vmem:[%s404 + $0x140] sm:$0xff]
        %v862 = vld [vmem:[%s404 + $0x148] sm:$0xff]
        %v863 = vld [vmem:[%s404 + $0x150] sm:$0xff]
        %v864 = vld [vmem:[%s404 + $0x158] sm:$0xff]
        %v865 = vld [vmem:[%s404 + $0x160] sm:$0xff]
        %v866 = vld [vmem:[%s404 + $0x168] sm:$0xff]
        %v867 = vld [vmem:[%s404 + $0x170] sm:$0xff]
        %v868 = vld [vmem:[%s404 + $0x178] sm:$0xff]
        %v869 = vld [vmem:[%s404 + $0x180] sm:$0xff]
        %v870 = vld [vmem:[%s404 + $0x188] sm:$0xff]
        %v871 = vld [vmem:[%s404 + $0x190] sm:$0xff]
        %v872 = vld [vmem:[%s404 + $0x198] sm:$0xff]
        %v873 = vld [vmem:[%s404 + $0x1a0] sm:$0xff]
        %v874 = vld [vmem:[%s404 + $0x1a8] sm:$0xff]
        %v875 = vld [vmem:[%s404 + $0x1b0] sm:$0xff]
        %v876 = vld [vmem:[%s404 + $0x1b8] sm:$0xff]
        %v877 = vld [vmem:[%s404 + $0x1c0] sm:$0xff]
        %v878 = vld [vmem:[%s404 + $0x1c8] sm:$0xff]
        %v879 = vld [vmem:[%s404 + $0x1d0] sm:$0xff]
        %v880 = vld [vmem:[%s404 + $0x1d8] sm:$0xff]
        %v881 = vld [vmem:[%s404 + $0x1e0] sm:$0xff]
        %v882 = vld [vmem:[%s404 + $0x1e8] sm:$0xff]
        %v883 = vld [vmem:[%s404 + $0x1f0] sm:$0xff]
        %v884 = vld [vmem:[%s404 + $0x1f8] sm:$0xff]
        %v885 = vld [vmem:[%s404 + $0x200] sm:$0xff]
        %v886 = vld [vmem:[%s404 + $0x208] sm:$0xff]
        %v887 = vld [vmem:[%s404 + $0x210] sm:$0xff]
        %v888 = vld [vmem:[%s404 + $0x218] sm:$0xff]
        %v889 = vld [vmem:[%s404 + $0x220] sm:$0xff]
        %v890 = vld [vmem:[%s404 + $0x228] sm:$0xff]
        %v891 = vld [vmem:[%s404 + $0x230] sm:$0xff]
        %v892 = vld [vmem:[%s404 + $0x238] sm:$0xff]
        %v893 = vld [vmem:[%s404 + $0x240] sm:$0xff]
        %v894 = vld [vmem:[%s404 + $0x248] sm:$0xff]
        %v895 = vld [vmem:[%s404 + $0x250] sm:$0xff]
        %v896 = vld [vmem:[%s404 + $0x258] sm:$0xff]
        %v897 = vld [vmem:[%s404 + $0x260] sm:$0xff]
        %v898 = vld [vmem:[%s404 + $0x268] sm:$0xff]
        %v899 = vld [vmem:[%s404 + $0x270] sm:$0xff]
        %v900 = vld [vmem:[%s404 + $0x278] sm:$0xff]
        %v901 = vld [vmem:[%s404 + $0x280] sm:$0xff]
        %v902 = vld [vmem:[%s404 + $0x288] sm:$0xff]
        %v903 = vld [vmem:[%s404 + $0x290] sm:$0xff]
        %v904 = vld [vmem:[%s404 + $0x298] sm:$0xff]
        %v905 = vld [vmem:[%s404 + $0x2a0] sm:$0xff]
        %v906 = vld [vmem:[%s404 + $0x2a8] sm:$0xff]
        %v907 = vld [vmem:[%s404 + $0x2b0] sm:$0xff]
        %v908 = vld [vmem:[%s404 + $0x2b8] sm:$0xff]
        %v909 = vld [vmem:[%s404 + $0x2c0] sm:$0xff]
        %v910 = vld [vmem:[%s404 + $0x2c8] sm:$0xff]
        %v911 = vld [vmem:[%s404 + $0x2d0] sm:$0xff]
        %v912 = vld [vmem:[%s404 + $0x2d8] sm:$0xff]
        %v913 = vld [vmem:[%s404 + $0x2e0] sm:$0xff]
        %v914 = vld [vmem:[%s404 + $0x2e8] sm:$0xff]
        %v915 = vld [vmem:[%s404 + $0x2f0] sm:$0xff]
        %v916 = vld [vmem:[%s404 + $0x2f8] sm:$0xff]
        %v917 = vld [vmem:[%s404 + $0x300] sm:$0xff]
        %v918 = vld [vmem:[%s404 + $0x308] sm:$0xff]
        %v919 = vld [vmem:[%s404 + $0x310] sm:$0xff]
        %v920 = vld [vmem:[%s404 + $0x318] sm:$0xff]
        %v921 = vld [vmem:[%s404 + $0x320] sm:$0xff]
        %v922 = vld [vmem:[%s404 + $0x328] sm:$0xff]
        %v923 = vld [vmem:[%s404 + $0x330] sm:$0xff]
        %v924 = vld [vmem:[%s404 + $0x338] sm:$0xff]
        %v925 = vld [vmem:[%s404 + $0x340] sm:$0xff]
        %v926 = vld [vmem:[%s404 + $0x348] sm:$0xff]
        %v927 = vld [vmem:[%s404 + $0x350] sm:$0xff]
        %v928 = vld [vmem:[%s404 + $0x358] sm:$0xff]
        %v929 = vld [vmem:[%s404 + $0x360] sm:$0xff]
        %v930 = vld [vmem:[%s404 + $0x368] sm:$0xff]
        %v931 = vld [vmem:[%s404 + $0x370] sm:$0xff]
        %v932 = vld [vmem:[%s404 + $0x378] sm:$0xff]
        %v933 = vld [vmem:[%s404 + $0x380] sm:$0xff]
        %v934 = vld [vmem:[%s404 + $0x388] sm:$0xff]
        %v935 = vld [vmem:[%s404 + $0x390] sm:$0xff]
        %v936 = vld [vmem:[%s404 + $0x398] sm:$0xff]
        %v937 = vld [vmem:[%s404 + $0x3a0] sm:$0xff]
        %v938 = vld [vmem:[%s404 + $0x3a8] sm:$0xff]
        %v939 = vld [vmem:[%s404 + $0x3b0] sm:$0xff]
        %v940 = vld [vmem:[%s404 + $0x3b8] sm:$0xff]
        %v941 = vld [vmem:[%s404 + $0x3c0] sm:$0xff]
        %v942 = vld [vmem:[%s404 + $0x3c8] sm:$0xff]
        %v943 = vld [vmem:[%s404 + $0x3d0] sm:$0xff]
        %v944 = vld [vmem:[%s404 + $0x3d8] sm:$0xff]
        %v945 = vld [vmem:[%s404 + $0x3e0] sm:$0xff]
        %v946 = vld [vmem:[%s404 + $0x3e8] sm:$0xff]
        %v947 = vld [vmem:[%s404 + $0x3f0] sm:$0xff]
        %v948 = vld [vmem:[%s404 + $0x3f8] sm:$0xff]
        %v949 = vunpack.c.l.bf16 %v821
        %v950 = vunpack.c.h.bf16 %v821
        %v951 = vunpack.c.l.bf16 %v822
        %v952 = vunpack.c.h.bf16 %v822
        %v953 = vunpack.c.l.bf16 %v823
        %v954 = vunpack.c.h.bf16 %v823
        %v955 = vunpack.c.l.bf16 %v824
        %v956 = vunpack.c.h.bf16 %v824
        %v957 = vunpack.c.l.bf16 %v825
        %v958 = vunpack.c.h.bf16 %v825
        %v959 = vunpack.c.l.bf16 %v826
        %v960 = vunpack.c.h.bf16 %v826
        %v961 = vunpack.c.l.bf16 %v827
        %v962 = vunpack.c.h.bf16 %v827
        %v963 = vunpack.c.l.bf16 %v828
        %v964 = vunpack.c.h.bf16 %v828
        %v965 = vunpack.c.l.bf16 %v829
        %v966 = vunpack.c.h.bf16 %v829
        %v967 = vunpack.c.l.bf16 %v830
        %v968 = vunpack.c.h.bf16 %v830
        %v969 = vunpack.c.l.bf16 %v831
        %v970 = vunpack.c.h.bf16 %v831
        %v971 = vunpack.c.l.bf16 %v832
        %v972 = vunpack.c.h.bf16 %v832
        %v973 = vunpack.c.l.bf16 %v833
        %v974 = vunpack.c.h.bf16 %v833
        %v975 = vunpack.c.l.bf16 %v834
        %v976 = vunpack.c.h.bf16 %v834
        %v977 = vunpack.c.l.bf16 %v835
        %v978 = vunpack.c.h.bf16 %v835
        %v979 = vunpack.c.l.bf16 %v836
        %v980 = vunpack.c.h.bf16 %v836
        %v981 = vunpack.c.l.bf16 %v837
        %v982 = vunpack.c.h.bf16 %v837
        %v983 = vunpack.c.l.bf16 %v838
        %v984 = vunpack.c.h.bf16 %v838
        %v985 = vunpack.c.l.bf16 %v839
        %v986 = vunpack.c.h.bf16 %v839
        %v987 = vunpack.c.l.bf16 %v840
        %v988 = vunpack.c.h.bf16 %v840
        %v989 = vunpack.c.l.bf16 %v841
        %v990 = vunpack.c.h.bf16 %v841
        %v991 = vunpack.c.l.bf16 %v842
        %v992 = vunpack.c.h.bf16 %v842
        %v993 = vunpack.c.l.bf16 %v843
        %v994 = vunpack.c.h.bf16 %v843
        %v995 = vunpack.c.l.bf16 %v844
        %v996 = vunpack.c.h.bf16 %v844
        %v997 = vunpack.c.l.bf16 %v845
        %v998 = vunpack.c.h.bf16 %v845
        %v999 = vunpack.c.l.bf16 %v846
        %v1000 = vunpack.c.h.bf16 %v846
        %v1001 = vunpack.c.l.bf16 %v847
        %v1002 = vunpack.c.h.bf16 %v847
        %v1003 = vunpack.c.l.bf16 %v848
        %v1004 = vunpack.c.h.bf16 %v848
        %v1005 = vunpack.c.l.bf16 %v849
        %v1006 = vunpack.c.h.bf16 %v849
        %v1007 = vunpack.c.l.bf16 %v850
        %v1008 = vunpack.c.h.bf16 %v850
        %v1009 = vunpack.c.l.bf16 %v851
        %v1010 = vunpack.c.h.bf16 %v851
        %v1011 = vunpack.c.l.bf16 %v852
        %v1012 = vunpack.c.h.bf16 %v852
        %v1013 = vunpack.c.l.bf16 %v853
        %v1014 = vunpack.c.h.bf16 %v853
        %v1015 = vunpack.c.l.bf16 %v854
        %v1016 = vunpack.c.h.bf16 %v854
        %v1017 = vunpack.c.l.bf16 %v855
        %v1018 = vunpack.c.h.bf16 %v855
        %v1019 = vunpack.c.l.bf16 %v856
        %v1020 = vunpack.c.h.bf16 %v856
        %v1021 = vunpack.c.l.bf16 %v857
        %v1022 = vunpack.c.h.bf16 %v857
        %v1023 = vunpack.c.l.bf16 %v858
        %v1024 = vunpack.c.h.bf16 %v858
        %v1025 = vunpack.c.l.bf16 %v859
        %v1026 = vunpack.c.h.bf16 %v859
        %v1027 = vunpack.c.l.bf16 %v860
        %v1028 = vunpack.c.h.bf16 %v860
        %v1029 = vunpack.c.l.bf16 %v861
        %v1030 = vunpack.c.h.bf16 %v861
        %v1031 = vunpack.c.l.bf16 %v862
        %v1032 = vunpack.c.h.bf16 %v862
        %v1033 = vunpack.c.l.bf16 %v863
        %v1034 = vunpack.c.h.bf16 %v863
        %v1035 = vunpack.c.l.bf16 %v864
        %v1036 = vunpack.c.h.bf16 %v864
        %v1037 = vunpack.c.l.bf16 %v865
        %v1038 = vunpack.c.h.bf16 %v865
        %v1039 = vunpack.c.l.bf16 %v866
        %v1040 = vunpack.c.h.bf16 %v866
        %v1041 = vunpack.c.l.bf16 %v867
        %v1042 = vunpack.c.h.bf16 %v867
        %v1043 = vunpack.c.l.bf16 %v868
        %v1044 = vunpack.c.h.bf16 %v868
        %v1045 = vunpack.c.l.bf16 %v869
        %v1046 = vunpack.c.h.bf16 %v869
        %v1047 = vunpack.c.l.bf16 %v870
        %v1048 = vunpack.c.h.bf16 %v870
        %v1049 = vunpack.c.l.bf16 %v871
        %v1050 = vunpack.c.h.bf16 %v871
        %v1051 = vunpack.c.l.bf16 %v872
        %v1052 = vunpack.c.h.bf16 %v872
        %v1053 = vunpack.c.l.bf16 %v873
        %v1054 = vunpack.c.h.bf16 %v873
        %v1055 = vunpack.c.l.bf16 %v874
        %v1056 = vunpack.c.h.bf16 %v874
        %v1057 = vunpack.c.l.bf16 %v875
        %v1058 = vunpack.c.h.bf16 %v875
        %v1059 = vunpack.c.l.bf16 %v876
        %v1060 = vunpack.c.h.bf16 %v876
        %v1061 = vunpack.c.l.bf16 %v877
        %v1062 = vunpack.c.h.bf16 %v877
        %v1063 = vunpack.c.l.bf16 %v878
        %v1064 = vunpack.c.h.bf16 %v878
        %v1065 = vunpack.c.l.bf16 %v879
        %v1066 = vunpack.c.h.bf16 %v879
        %v1067 = vunpack.c.l.bf16 %v880
        %v1068 = vunpack.c.h.bf16 %v880
        %v1069 = vunpack.c.l.bf16 %v881
        %v1070 = vunpack.c.h.bf16 %v881
        %v1071 = vunpack.c.l.bf16 %v882
        %v1072 = vunpack.c.h.bf16 %v882
        %v1073 = vunpack.c.l.bf16 %v883
        %v1074 = vunpack.c.h.bf16 %v883
        %v1075 = vunpack.c.l.bf16 %v884
        %v1076 = vunpack.c.h.bf16 %v884
        %v1077 = vunpack.c.l.bf16 %v885
        %v1078 = vunpack.c.h.bf16 %v885
        %v1079 = vunpack.c.l.bf16 %v886
        %v1080 = vunpack.c.h.bf16 %v886
        %v1081 = vunpack.c.l.bf16 %v887
        %v1082 = vunpack.c.h.bf16 %v887
        %v1083 = vunpack.c.l.bf16 %v888
        %v1084 = vunpack.c.h.bf16 %v888
        %v1085 = vunpack.c.l.bf16 %v889
        %v1086 = vunpack.c.h.bf16 %v889
        %v1087 = vunpack.c.l.bf16 %v890
        %v1088 = vunpack.c.h.bf16 %v890
        %v1089 = vunpack.c.l.bf16 %v891
        %v1090 = vunpack.c.h.bf16 %v891
        %v1091 = vunpack.c.l.bf16 %v892
        %v1092 = vunpack.c.h.bf16 %v892
        %v1093 = vunpack.c.l.bf16 %v893
        %v1094 = vunpack.c.h.bf16 %v893
        %v1095 = vunpack.c.l.bf16 %v894
        %v1096 = vunpack.c.h.bf16 %v894
        %v1097 = vunpack.c.l.bf16 %v895
        %v1098 = vunpack.c.h.bf16 %v895
        %v1099 = vunpack.c.l.bf16 %v896
        %v1100 = vunpack.c.h.bf16 %v896
        %v1101 = vunpack.c.l.bf16 %v897
        %v1102 = vunpack.c.h.bf16 %v897
        %v1103 = vunpack.c.l.bf16 %v898
        %v1104 = vunpack.c.h.bf16 %v898
        %v1105 = vunpack.c.l.bf16 %v899
        %v1106 = vunpack.c.h.bf16 %v899
        %v1107 = vunpack.c.l.bf16 %v900
        %v1108 = vunpack.c.h.bf16 %v900
        %v1109 = vunpack.c.l.bf16 %v901
        %v1110 = vunpack.c.h.bf16 %v901
        %v1111 = vunpack.c.l.bf16 %v902
        %v1112 = vunpack.c.h.bf16 %v902
        %v1113 = vunpack.c.l.bf16 %v903
        %v1114 = vunpack.c.h.bf16 %v903
        %v1115 = vunpack.c.l.bf16 %v904
        %v1116 = vunpack.c.h.bf16 %v904
        %v1117 = vunpack.c.l.bf16 %v905
        %v1118 = vunpack.c.h.bf16 %v905
        %v1119 = vunpack.c.l.bf16 %v906
        %v1120 = vunpack.c.h.bf16 %v906
        %v1121 = vunpack.c.l.bf16 %v907
        %v1122 = vunpack.c.h.bf16 %v907
        %v1123 = vunpack.c.l.bf16 %v908
        %v1124 = vunpack.c.h.bf16 %v908
        %v1125 = vunpack.c.l.bf16 %v909
        %v1126 = vunpack.c.h.bf16 %v909
        %v1127 = vunpack.c.l.bf16 %v910
        %v1128 = vunpack.c.h.bf16 %v910
        %v1129 = vunpack.c.l.bf16 %v911
        %v1130 = vunpack.c.h.bf16 %v911
        %v1131 = vunpack.c.l.bf16 %v912
        %v1132 = vunpack.c.h.bf16 %v912
        %v1133 = vunpack.c.l.bf16 %v913
        %v1134 = vunpack.c.h.bf16 %v913
        %v1135 = vunpack.c.l.bf16 %v914
        %v1136 = vunpack.c.h.bf16 %v914
        %v1137 = vunpack.c.l.bf16 %v915
        %v1138 = vunpack.c.h.bf16 %v915
        %v1139 = vunpack.c.l.bf16 %v916
        %v1140 = vunpack.c.h.bf16 %v916
        %v1141 = vunpack.c.l.bf16 %v917
        %v1142 = vunpack.c.h.bf16 %v917
        %v1143 = vunpack.c.l.bf16 %v918
        %v1144 = vunpack.c.h.bf16 %v918
        %v1145 = vunpack.c.l.bf16 %v919
        %v1146 = vunpack.c.h.bf16 %v919
        %v1147 = vunpack.c.l.bf16 %v920
        %v1148 = vunpack.c.h.bf16 %v920
        %v1149 = vunpack.c.l.bf16 %v921
        %v1150 = vunpack.c.h.bf16 %v921
        %v1151 = vunpack.c.l.bf16 %v922
        %v1152 = vunpack.c.h.bf16 %v922
        %v1153 = vunpack.c.l.bf16 %v923
        %v1154 = vunpack.c.h.bf16 %v923
        %v1155 = vunpack.c.l.bf16 %v924
        %v1156 = vunpack.c.h.bf16 %v924
        %v1157 = vunpack.c.l.bf16 %v925
        %v1158 = vunpack.c.h.bf16 %v925
        %v1159 = vunpack.c.l.bf16 %v926
        %v1160 = vunpack.c.h.bf16 %v926
        %v1161 = vunpack.c.l.bf16 %v927
        %v1162 = vunpack.c.h.bf16 %v927
        %v1163 = vunpack.c.l.bf16 %v928
        %v1164 = vunpack.c.h.bf16 %v928
        %v1165 = vunpack.c.l.bf16 %v929
        %v1166 = vunpack.c.h.bf16 %v929
        %v1167 = vunpack.c.l.bf16 %v930
        %v1168 = vunpack.c.h.bf16 %v930
        %v1169 = vunpack.c.l.bf16 %v931
        %v1170 = vunpack.c.h.bf16 %v931
        %v1171 = vunpack.c.l.bf16 %v932
        %v1172 = vunpack.c.h.bf16 %v932
        %v1173 = vunpack.c.l.bf16 %v933
        %v1174 = vunpack.c.h.bf16 %v933
        %v1175 = vunpack.c.l.bf16 %v934
        %v1176 = vunpack.c.h.bf16 %v934
        %v1177 = vunpack.c.l.bf16 %v935
        %v1178 = vunpack.c.h.bf16 %v935
        %v1179 = vunpack.c.l.bf16 %v936
        %v1180 = vunpack.c.h.bf16 %v936
        %v1181 = vunpack.c.l.bf16 %v937
        %v1182 = vunpack.c.h.bf16 %v937
        %v1183 = vunpack.c.l.bf16 %v938
        %v1184 = vunpack.c.h.bf16 %v938
        %v1185 = vunpack.c.l.bf16 %v939
        %v1186 = vunpack.c.h.bf16 %v939
        %v1187 = vunpack.c.l.bf16 %v940
        %v1188 = vunpack.c.h.bf16 %v940
        %v1189 = vunpack.c.l.bf16 %v941
        %v1190 = vunpack.c.h.bf16 %v941
        %v1191 = vunpack.c.l.bf16 %v942
        %v1192 = vunpack.c.h.bf16 %v942
        %v1193 = vunpack.c.l.bf16 %v943
        %v1194 = vunpack.c.h.bf16 %v943
        %v1195 = vunpack.c.l.bf16 %v944
        %v1196 = vunpack.c.h.bf16 %v944
        %v1197 = vunpack.c.l.bf16 %v945
        %v1198 = vunpack.c.h.bf16 %v945
        %v1199 = vunpack.c.l.bf16 %v946
        %v1200 = vunpack.c.h.bf16 %v946
        %v1201 = vunpack.c.l.bf16 %v947
        %v1202 = vunpack.c.h.bf16 %v947
        %v1203 = vunpack.c.l.bf16 %v948
        %v1204 = vunpack.c.h.bf16 %v948
        %1205 = vmatprep.subr.mxu0 0.0
        %1206 = vmatpush1.msra.mxu0 %v708
        %1207 = vmatprep.subr.mxu0 0.0
        %1208 = vmatpush1.msra.mxu0 %v707
        %1209 = vmatprep.subr.mxu0 0.0
        %1210 = vmatpush1.msra.mxu0 %v706
        %1211 = vmatprep.subr.mxu0 0.0
        %1212 = vmatpush1.msra.mxu0 %v705
        %1213 = vmatprep.subr.mxu0 0.0
        %1214 = vmatpush1.msra.mxu0 %v704
        %1215 = vmatprep.subr.mxu0 0.0
        %1216 = vmatpush1.msra.mxu0 %v703
        %1217 = vmatprep.subr.mxu0 0.0
        %1218 = vmatpush1.msra.mxu0 %v702
        %1219 = vmatprep.subr.mxu0 0.0
        %1220 = vmatpush1.msra.mxu0 %v701
        %1221 = vmatprep.subr.mxu0 0.0
        %1222 = vmatpush1.msra.mxu0 %v700
        %1223 = vmatprep.subr.mxu0 0.0
        %1224 = vmatpush1.msra.mxu0 %v699
        %1225 = vmatprep.subr.mxu0 0.0
        %1226 = vmatpush1.msra.mxu0 %v698
        %1227 = vmatprep.subr.mxu0 0.0
        %1228 = vmatpush1.msra.mxu0 %v697
        %1229 = vmatprep.subr.mxu0 0.0
        %1230 = vmatpush1.msra.mxu0 %v696
        %1231 = vmatprep.subr.mxu0 0.0
        %1232 = vmatpush1.msra.mxu0 %v695
        %1233 = vmatprep.subr.mxu0 0.0
        %1234 = vmatpush1.msra.mxu0 %v694
        %1235 = vmatprep.subr.mxu0 0.0
        %1236 = vmatpush1.msra.mxu0 %v693
        %1237 = vmatprep.subr.mxu0 0.0
        %1238 = vmatpush2.msra.mxu0 %v724
        %1239 = vmatprep.subr.mxu0 0.0
        %1240 = vmatpush2.msra.mxu0 %v723
        %1241 = vmatprep.subr.mxu0 0.0
        %1242 = vmatpush2.msra.mxu0 %v722
        %1243 = vmatprep.subr.mxu0 0.0
        %1244 = vmatpush2.msra.mxu0 %v721
        %1245 = vmatprep.subr.mxu0 0.0
        %1246 = vmatpush2.msra.mxu0 %v720
        %1247 = vmatprep.subr.mxu0 0.0
        %1248 = vmatpush2.msra.mxu0 %v719
        %1249 = vmatprep.subr.mxu0 0.0
        %1250 = vmatpush2.msra.mxu0 %v718
        %1251 = vmatprep.subr.mxu0 0.0
        %1252 = vmatpush2.msra.mxu0 %v717
        %1253 = vmatprep.subr.mxu0 0.0
        %1254 = vmatpush2.msra.mxu0 %v716
        %1255 = vmatprep.subr.mxu0 0.0
        %1256 = vmatpush2.msra.mxu0 %v715
        %1257 = vmatprep.subr.mxu0 0.0
        %1258 = vmatpush2.msra.mxu0 %v714
        %1259 = vmatprep.subr.mxu0 0.0
        %1260 = vmatpush2.msra.mxu0 %v713
        %1261 = vmatprep.subr.mxu0 0.0
        %1262 = vmatpush2.msra.mxu0 %v712
        %1263 = vmatprep.subr.mxu0 0.0
        %1264 = vmatpush2.msra.mxu0 %v711
        %1265 = vmatprep.subr.mxu0 0.0
        %1266 = vmatpush2.msra.mxu0 %v710
        %1267 = vmatprep.subr.mxu0 0.0
        %1268 = vmatpush2.msra.mxu0 %v709
        %1269 = vmatprep.mubr.f32.mxu0 %v950
        %1270 = vmatmul.mubr.f32.gmra.mxu0 %v949
        %v1271 = vpop.f32.mrf.mxu0
        %v1272 = vadd.f32 0.0, %v1271
        %v1273 = vpop.f32.mrf.mxu0
        %1274 = vmatprep.mubr.f32.mxu0 %v954
        %1275 = vmatmul.mubr.f32.gmra.mxu0 %v953
        %v1276 = vpop.f32.mrf.mxu0
        %v1277 = vadd.f32 0.0, %v1276
        %v1278 = vpop.f32.mrf.mxu0
        %1279 = vmatprep.mubr.f32.mxu0 %v958
        %1280 = vmatmul.mubr.f32.gmra.mxu0 %v957
        %v1281 = vpop.f32.mrf.mxu0
        %v1282 = vadd.f32 0.0, %v1281
        %v1283 = vpop.f32.mrf.mxu0
        %1284 = vmatprep.mubr.f32.mxu0 %v962
        %1285 = vmatmul.mubr.f32.gmra.mxu0 %v961
        %v1286 = vpop.f32.mrf.mxu0
        %v1287 = vadd.f32 0.0, %v1286
        %v1288 = vpop.f32.mrf.mxu0
        %1289 = vmatprep.mubr.f32.mxu0 %v966
        %1290 = vmatmul.mubr.f32.gmra.mxu0 %v965
        %v1291 = vpop.f32.mrf.mxu0
        %v1292 = vadd.f32 0.0, %v1291
        %v1293 = vpop.f32.mrf.mxu0
        %1294 = vmatprep.mubr.f32.mxu0 %v970
        %1295 = vmatmul.mubr.f32.gmra.mxu0 %v969
        %v1296 = vpop.f32.mrf.mxu0
        %v1297 = vadd.f32 0.0, %v1296
        %v1298 = vpop.f32.mrf.mxu0
        %1299 = vmatprep.mubr.f32.mxu0 %v974
        %1300 = vmatmul.mubr.f32.gmra.mxu0 %v973
        %v1301 = vpop.f32.mrf.mxu0
        %v1302 = vadd.f32 0.0, %v1301
        %v1303 = vpop.f32.mrf.mxu0
        %1304 = vmatprep.mubr.f32.mxu0 %v978
        %1305 = vmatmul.mubr.f32.gmra.mxu0 %v977
        %v1306 = vpop.f32.mrf.mxu0
        %v1307 = vadd.f32 0.0, %v1306
        %v1308 = vpop.f32.mrf.mxu0
        %1309 = vmatprep.mubr.f32.mxu0 %v982
        %1310 = vmatmul.mubr.f32.gmra.mxu0 %v981
        %v1311 = vpop.f32.mrf.mxu0
        %v1312 = vadd.f32 0.0, %v1311
        %v1313 = vpop.f32.mrf.mxu0
        %1314 = vmatprep.mubr.f32.mxu0 %v986
        %1315 = vmatmul.mubr.f32.gmra.mxu0 %v985
        %v1316 = vpop.f32.mrf.mxu0
        %v1317 = vadd.f32 0.0, %v1316
        %v1318 = vpop.f32.mrf.mxu0
        %1319 = vmatprep.mubr.f32.mxu0 %v990
        %1320 = vmatmul.mubr.f32.gmra.mxu0 %v989
        %v1321 = vpop.f32.mrf.mxu0
        %v1322 = vadd.f32 0.0, %v1321
        %v1323 = vpop.f32.mrf.mxu0
        %1324 = vmatprep.mubr.f32.mxu0 %v994
        %1325 = vmatmul.mubr.f32.gmra.mxu0 %v993
        %v1326 = vpop.f32.mrf.mxu0
        %v1327 = vadd.f32 0.0, %v1326
        %v1328 = vpop.f32.mrf.mxu0
        %1329 = vmatprep.mubr.f32.mxu0 %v998
        %1330 = vmatmul.mubr.f32.gmra.mxu0 %v997
        %v1331 = vpop.f32.mrf.mxu0
        %v1332 = vadd.f32 0.0, %v1331
        %v1333 = vpop.f32.mrf.mxu0
        %1334 = vmatprep.mubr.f32.mxu0 %v1002
        %1335 = vmatmul.mubr.f32.gmra.mxu0 %v1001
        %v1336 = vpop.f32.mrf.mxu0
        %v1337 = vadd.f32 0.0, %v1336
        %v1338 = vpop.f32.mrf.mxu0
        %1339 = vmatprep.mubr.f32.mxu0 %v1006
        %1340 = vmatmul.mubr.f32.gmra.mxu0 %v1005
        %v1341 = vpop.f32.mrf.mxu0
        %v1342 = vadd.f32 0.0, %v1341
        %v1343 = vpop.f32.mrf.mxu0
        %1344 = vmatprep.mubr.f32.mxu0 %v1010
        %1345 = vmatmul.mubr.f32.gmra.mxu0 %v1009
        %v1346 = vpop.f32.mrf.mxu0
        %v1347 = vadd.f32 0.0, %v1346
        %v1348 = vpop.f32.mrf.mxu0
        %1349 = vmatprep.mubr.f32.mxu0 %v1014
        %1350 = vmatmul.mubr.f32.gmra.mxu0 %v1013
        %v1351 = vpop.f32.mrf.mxu0
        %v1352 = vadd.f32 0.0, %v1351
        %v1353 = vpop.f32.mrf.mxu0
        %1354 = vmatprep.mubr.f32.mxu0 %v1018
        %1355 = vmatmul.mubr.f32.gmra.mxu0 %v1017
        %v1356 = vpop.f32.mrf.mxu0
        %v1357 = vadd.f32 0.0, %v1356
        %v1358 = vpop.f32.mrf.mxu0
        %1359 = vmatprep.mubr.f32.mxu0 %v1022
        %1360 = vmatmul.mubr.f32.gmra.mxu0 %v1021
        %v1361 = vpop.f32.mrf.mxu0
        %v1362 = vadd.f32 0.0, %v1361
        %v1363 = vpop.f32.mrf.mxu0
        %1364 = vmatprep.mubr.f32.mxu0 %v1026
        %1365 = vmatmul.mubr.f32.gmra.mxu0 %v1025
        %v1366 = vpop.f32.mrf.mxu0
        %v1367 = vadd.f32 0.0, %v1366
        %v1368 = vpop.f32.mrf.mxu0
        %1369 = vmatprep.mubr.f32.mxu0 %v1030
        %1370 = vmatmul.mubr.f32.gmra.mxu0 %v1029
        %v1371 = vpop.f32.mrf.mxu0
        %v1372 = vadd.f32 0.0, %v1371
        %v1373 = vpop.f32.mrf.mxu0
        %1374 = vmatprep.mubr.f32.mxu0 %v1034
        %1375 = vmatmul.mubr.f32.gmra.mxu0 %v1033
        %v1376 = vpop.f32.mrf.mxu0
        %v1377 = vadd.f32 0.0, %v1376
        %v1378 = vpop.f32.mrf.mxu0
        %1379 = vmatprep.mubr.f32.mxu0 %v1038
        %1380 = vmatmul.mubr.f32.gmra.mxu0 %v1037
        %v1381 = vpop.f32.mrf.mxu0
        %v1382 = vadd.f32 0.0, %v1381
        %v1383 = vpop.f32.mrf.mxu0
        %1384 = vmatprep.mubr.f32.mxu0 %v1042
        %1385 = vmatmul.mubr.f32.gmra.mxu0 %v1041
        %v1386 = vpop.f32.mrf.mxu0
        %v1387 = vadd.f32 0.0, %v1386
        %v1388 = vpop.f32.mrf.mxu0
        %1389 = vmatprep.mubr.f32.mxu0 %v1046
        %1390 = vmatmul.mubr.f32.gmra.mxu0 %v1045
        %v1391 = vpop.f32.mrf.mxu0
        %v1392 = vadd.f32 0.0, %v1391
        %v1393 = vpop.f32.mrf.mxu0
        %1394 = vmatprep.mubr.f32.mxu0 %v1050
        %1395 = vmatmul.mubr.f32.gmra.mxu0 %v1049
        %v1396 = vpop.f32.mrf.mxu0
        %v1397 = vadd.f32 0.0, %v1396
        %v1398 = vpop.f32.mrf.mxu0
        %1399 = vmatprep.mubr.f32.mxu0 %v1054
        %1400 = vmatmul.mubr.f32.gmra.mxu0 %v1053
        %v1401 = vpop.f32.mrf.mxu0
        %v1402 = vadd.f32 0.0, %v1401
        %v1403 = vpop.f32.mrf.mxu0
        %1404 = vmatprep.mubr.f32.mxu0 %v1058
        %1405 = vmatmul.mubr.f32.gmra.mxu0 %v1057
        %v1406 = vpop.f32.mrf.mxu0
        %v1407 = vadd.f32 0.0, %v1406
        %v1408 = vpop.f32.mrf.mxu0
        %1409 = vmatprep.mubr.f32.mxu0 %v1062
        %1410 = vmatmul.mubr.f32.gmra.mxu0 %v1061
        %v1411 = vpop.f32.mrf.mxu0
        %v1412 = vadd.f32 0.0, %v1411
        %v1413 = vpop.f32.mrf.mxu0
        %1414 = vmatprep.mubr.f32.mxu0 %v1066
        %1415 = vmatmul.mubr.f32.gmra.mxu0 %v1065
        %v1416 = vpop.f32.mrf.mxu0
        %v1417 = vadd.f32 0.0, %v1416
        %v1418 = vpop.f32.mrf.mxu0
        %1419 = vmatprep.mubr.f32.mxu0 %v1070
        %1420 = vmatmul.mubr.f32.gmra.mxu0 %v1069
        %v1421 = vpop.f32.mrf.mxu0
        %v1422 = vadd.f32 0.0, %v1421
        %v1423 = vpop.f32.mrf.mxu0
        %1424 = vmatprep.mubr.f32.mxu0 %v1074
        %1425 = vmatmul.mubr.f32.gmra.mxu0 %v1073
        %v1426 = vpop.f32.mrf.mxu0
        %v1427 = vadd.f32 0.0, %v1426
        %v1428 = vpop.f32.mrf.mxu0
        %1429 = vmatprep.mubr.f32.mxu0 %v1078
        %1430 = vmatmul.mubr.f32.gmra.mxu0 %v1077
        %v1431 = vpop.f32.mrf.mxu0
        %v1432 = vadd.f32 0.0, %v1431
        %v1433 = vpop.f32.mrf.mxu0
        %1434 = vmatprep.mubr.f32.mxu0 %v1082
        %1435 = vmatmul.mubr.f32.gmra.mxu0 %v1081
        %v1436 = vpop.f32.mrf.mxu0
        %v1437 = vadd.f32 0.0, %v1436
        %v1438 = vpop.f32.mrf.mxu0
        %1439 = vmatprep.mubr.f32.mxu0 %v1086
        %1440 = vmatmul.mubr.f32.gmra.mxu0 %v1085
        %v1441 = vpop.f32.mrf.mxu0
        %v1442 = vadd.f32 0.0, %v1441
        %v1443 = vpop.f32.mrf.mxu0
        %1444 = vmatprep.mubr.f32.mxu0 %v1090
        %1445 = vmatmul.mubr.f32.gmra.mxu0 %v1089
        %v1446 = vpop.f32.mrf.mxu0
        %v1447 = vadd.f32 0.0, %v1446
        %v1448 = vpop.f32.mrf.mxu0
        %1449 = vmatprep.mubr.f32.mxu0 %v1094
        %1450 = vmatmul.mubr.f32.gmra.mxu0 %v1093
        %v1451 = vpop.f32.mrf.mxu0
        %v1452 = vadd.f32 0.0, %v1451
        %v1453 = vpop.f32.mrf.mxu0
        %1454 = vmatprep.mubr.f32.mxu0 %v1098
        %1455 = vmatmul.mubr.f32.gmra.mxu0 %v1097
        %v1456 = vpop.f32.mrf.mxu0
        %v1457 = vadd.f32 0.0, %v1456
        %v1458 = vpop.f32.mrf.mxu0
        %1459 = vmatprep.mubr.f32.mxu0 %v1102
        %1460 = vmatmul.mubr.f32.gmra.mxu0 %v1101
        %v1461 = vpop.f32.mrf.mxu0
        %v1462 = vadd.f32 0.0, %v1461
        %v1463 = vpop.f32.mrf.mxu0
        %1464 = vmatprep.mubr.f32.mxu0 %v1106
        %1465 = vmatmul.mubr.f32.gmra.mxu0 %v1105
        %v1466 = vpop.f32.mrf.mxu0
        %v1467 = vadd.f32 0.0, %v1466
        %v1468 = vpop.f32.mrf.mxu0
        %1469 = vmatprep.mubr.f32.mxu0 %v1110
        %1470 = vmatmul.mubr.f32.gmra.mxu0 %v1109
        %v1471 = vpop.f32.mrf.mxu0
        %v1472 = vadd.f32 0.0, %v1471
        %v1473 = vpop.f32.mrf.mxu0
        %1474 = vmatprep.mubr.f32.mxu0 %v1114
        %1475 = vmatmul.mubr.f32.gmra.mxu0 %v1113
        %v1476 = vpop.f32.mrf.mxu0
        %v1477 = vadd.f32 0.0, %v1476
        %v1478 = vpop.f32.mrf.mxu0
        %1479 = vmatprep.mubr.f32.mxu0 %v1118
        %1480 = vmatmul.mubr.f32.gmra.mxu0 %v1117
        %v1481 = vpop.f32.mrf.mxu0
        %v1482 = vadd.f32 0.0, %v1481
        %v1483 = vpop.f32.mrf.mxu0
        %1484 = vmatprep.mubr.f32.mxu0 %v1122
        %1485 = vmatmul.mubr.f32.gmra.mxu0 %v1121
        %v1486 = vpop.f32.mrf.mxu0
        %v1487 = vadd.f32 0.0, %v1486
        %v1488 = vpop.f32.mrf.mxu0
        %1489 = vmatprep.mubr.f32.mxu0 %v1126
        %1490 = vmatmul.mubr.f32.gmra.mxu0 %v1125
        %v1491 = vpop.f32.mrf.mxu0
        %v1492 = vadd.f32 0.0, %v1491
        %v1493 = vpop.f32.mrf.mxu0
        %1494 = vmatprep.mubr.f32.mxu0 %v1130
        %1495 = vmatmul.mubr.f32.gmra.mxu0 %v1129
        %v1496 = vpop.f32.mrf.mxu0
        %v1497 = vadd.f32 0.0, %v1496
        %v1498 = vpop.f32.mrf.mxu0
        %1499 = vmatprep.mubr.f32.mxu0 %v1134
        %1500 = vmatmul.mubr.f32.gmra.mxu0 %v1133
        %v1501 = vpop.f32.mrf.mxu0
        %v1502 = vadd.f32 0.0, %v1501
        %v1503 = vpop.f32.mrf.mxu0
        %1504 = vmatprep.mubr.f32.mxu0 %v1138
        %1505 = vmatmul.mubr.f32.gmra.mxu0 %v1137
        %v1506 = vpop.f32.mrf.mxu0
        %v1507 = vadd.f32 0.0, %v1506
        %v1508 = vpop.f32.mrf.mxu0
        %1509 = vmatprep.mubr.f32.mxu0 %v1142
        %1510 = vmatmul.mubr.f32.gmra.mxu0 %v1141
        %v1511 = vpop.f32.mrf.mxu0
        %v1512 = vadd.f32 0.0, %v1511
        %v1513 = vpop.f32.mrf.mxu0
        %1514 = vmatprep.mubr.f32.mxu0 %v1146
        %1515 = vmatmul.mubr.f32.gmra.mxu0 %v1145
        %v1516 = vpop.f32.mrf.mxu0
        %v1517 = vadd.f32 0.0, %v1516
        %v1518 = vpop.f32.mrf.mxu0
        %1519 = vmatprep.mubr.f32.mxu0 %v1150
        %1520 = vmatmul.mubr.f32.gmra.mxu0 %v1149
        %v1521 = vpop.f32.mrf.mxu0
        %v1522 = vadd.f32 0.0, %v1521
        %v1523 = vpop.f32.mrf.mxu0
        %1524 = vmatprep.mubr.f32.mxu0 %v1154
        %1525 = vmatmul.mubr.f32.gmra.mxu0 %v1153
        %v1526 = vpop.f32.mrf.mxu0
        %v1527 = vadd.f32 0.0, %v1526
        %v1528 = vpop.f32.mrf.mxu0
        %1529 = vmatprep.mubr.f32.mxu0 %v1158
        %1530 = vmatmul.mubr.f32.gmra.mxu0 %v1157
        %v1531 = vpop.f32.mrf.mxu0
        %v1532 = vadd.f32 0.0, %v1531
        %v1533 = vpop.f32.mrf.mxu0
        %1534 = vmatprep.mubr.f32.mxu0 %v1162
        %1535 = vmatmul.mubr.f32.gmra.mxu0 %v1161
        %v1536 = vpop.f32.mrf.mxu0
        %v1537 = vadd.f32 0.0, %v1536
        %v1538 = vpop.f32.mrf.mxu0
        %1539 = vmatprep.mubr.f32.mxu0 %v1166
        %1540 = vmatmul.mubr.f32.gmra.mxu0 %v1165
        %v1541 = vpop.f32.mrf.mxu0
        %v1542 = vadd.f32 0.0, %v1541
        %v1543 = vpop.f32.mrf.mxu0
        %1544 = vmatprep.mubr.f32.mxu0 %v1170
        %1545 = vmatmul.mubr.f32.gmra.mxu0 %v1169
        %v1546 = vpop.f32.mrf.mxu0
        %v1547 = vadd.f32 0.0, %v1546
        %v1548 = vpop.f32.mrf.mxu0
        %1549 = vmatprep.mubr.f32.mxu0 %v1174
        %1550 = vmatmul.mubr.f32.gmra.mxu0 %v1173
        %v1551 = vpop.f32.mrf.mxu0
        %v1552 = vadd.f32 0.0, %v1551
        %v1553 = vpop.f32.mrf.mxu0
        %1554 = vmatprep.mubr.f32.mxu0 %v1178
        %1555 = vmatmul.mubr.f32.gmra.mxu0 %v1177
        %v1556 = vpop.f32.mrf.mxu0
        %v1557 = vadd.f32 0.0, %v1556
        %v1558 = vpop.f32.mrf.mxu0
        %1559 = vmatprep.mubr.f32.mxu0 %v1182
        %1560 = vmatmul.mubr.f32.gmra.mxu0 %v1181
        %v1561 = vpop.f32.mrf.mxu0
        %v1562 = vadd.f32 0.0, %v1561
        %v1563 = vpop.f32.mrf.mxu0
        %1564 = vmatprep.mubr.f32.mxu0 %v1186
        %1565 = vmatmul.mubr.f32.gmra.mxu0 %v1185
        %v1566 = vpop.f32.mrf.mxu0
        %v1567 = vadd.f32 0.0, %v1566
        %v1568 = vpop.f32.mrf.mxu0
        %1569 = vmatprep.mubr.f32.mxu0 %v1190
        %1570 = vmatmul.mubr.f32.gmra.mxu0 %v1189
        %v1571 = vpop.f32.mrf.mxu0
        %v1572 = vadd.f32 0.0, %v1571
        %v1573 = vpop.f32.mrf.mxu0
        %1574 = vmatprep.mubr.f32.mxu0 %v1194
        %1575 = vmatmul.mubr.f32.gmra.mxu0 %v1193
        %v1576 = vpop.f32.mrf.mxu0
        %v1577 = vadd.f32 0.0, %v1576
        %v1578 = vpop.f32.mrf.mxu0
        %1579 = vmatprep.mubr.f32.mxu0 %v1198
        %1580 = vmatmul.mubr.f32.gmra.mxu0 %v1197
        %v1581 = vpop.f32.mrf.mxu0
        %v1582 = vadd.f32 0.0, %v1581
        %v1583 = vpop.f32.mrf.mxu0
        %1584 = vmatprep.mubr.f32.mxu0 %v1202
        %1585 = vmatmul.mubr.f32.gmra.mxu0 %v1201
        %v1586 = vpop.f32.mrf.mxu0
        %v1587 = vadd.f32 0.0, %v1586
        %v1588 = vpop.f32.mrf.mxu0
        %1589 = vdwg.mxu0
        %1590 = vmatprep.subr.mxu0 0.0
        %1591 = vmatpush1.msra.mxu0 %v740
        %1592 = vmatprep.subr.mxu0 0.0
        %1593 = vmatpush1.msra.mxu0 %v739
        %1594 = vmatprep.subr.mxu0 0.0
        %1595 = vmatpush1.msra.mxu0 %v738
        %1596 = vmatprep.subr.mxu0 0.0
        %1597 = vmatpush1.msra.mxu0 %v737
        %1598 = vmatprep.subr.mxu0 0.0
        %1599 = vmatpush1.msra.mxu0 %v736
        %1600 = vmatprep.subr.mxu0 0.0
        %1601 = vmatpush1.msra.mxu0 %v735
        %1602 = vmatprep.subr.mxu0 0.0
        %1603 = vmatpush1.msra.mxu0 %v734
        %1604 = vmatprep.subr.mxu0 0.0
        %1605 = vmatpush1.msra.mxu0 %v733
        %1606 = vmatprep.subr.mxu0 0.0
        %1607 = vmatpush1.msra.mxu0 %v732
        %1608 = vmatprep.subr.mxu0 0.0
        %1609 = vmatpush1.msra.mxu0 %v731
        %1610 = vmatprep.subr.mxu0 0.0
        %1611 = vmatpush1.msra.mxu0 %v730
        %1612 = vmatprep.subr.mxu0 0.0
        %1613 = vmatpush1.msra.mxu0 %v729
        %1614 = vmatprep.subr.mxu0 0.0
        %1615 = vmatpush1.msra.mxu0 %v728
        %1616 = vmatprep.subr.mxu0 0.0
        %1617 = vmatpush1.msra.mxu0 %v727
        %1618 = vmatprep.subr.mxu0 0.0
        %1619 = vmatpush1.msra.mxu0 %v726
        %1620 = vmatprep.subr.mxu0 0.0
        %1621 = vmatpush1.msra.mxu0 %v725
        %1622 = vmatprep.subr.mxu0 0.0
        %1623 = vmatpush2.msra.mxu0 %v756
        %1624 = vmatprep.subr.mxu0 0.0
        %1625 = vmatpush2.msra.mxu0 %v755
        %1626 = vmatprep.subr.mxu0 0.0
        %1627 = vmatpush2.msra.mxu0 %v754
        %1628 = vmatprep.subr.mxu0 0.0
        %1629 = vmatpush2.msra.mxu0 %v753
        %1630 = vmatprep.subr.mxu0 0.0
        %1631 = vmatpush2.msra.mxu0 %v752
        %1632 = vmatprep.subr.mxu0 0.0
        %1633 = vmatpush2.msra.mxu0 %v751
        %1634 = vmatprep.subr.mxu0 0.0
        %1635 = vmatpush2.msra.mxu0 %v750
        %1636 = vmatprep.subr.mxu0 0.0
        %1637 = vmatpush2.msra.mxu0 %v749
        %1638 = vmatprep.subr.mxu0 0.0
        %1639 = vmatpush2.msra.mxu0 %v748
        %1640 = vmatprep.subr.mxu0 0.0
        %1641 = vmatpush2.msra.mxu0 %v747
        %1642 = vmatprep.subr.mxu0 0.0
        %1643 = vmatpush2.msra.mxu0 %v746
        %1644 = vmatprep.subr.mxu0 0.0
        %1645 = vmatpush2.msra.mxu0 %v745
        %1646 = vmatprep.subr.mxu0 0.0
        %1647 = vmatpush2.msra.mxu0 %v744
        %1648 = vmatprep.subr.mxu0 0.0
        %1649 = vmatpush2.msra.mxu0 %v743
        %1650 = vmatprep.subr.mxu0 0.0
        %1651 = vmatpush2.msra.mxu0 %v742
        %1652 = vmatprep.subr.mxu0 0.0
        %1653 = vmatpush2.msra.mxu0 %v741
        %1654 = vmatprep.mubr.f32.mxu0 %v952
        %1655 = vmatmul.mubr.f32.gmra.mxu0 %v951
        %v1656 = vpop.f32.mrf.mxu0
        %v1657 = vadd.f32 %v1272, %v1656
        %v1658 = vpop.f32.mrf.mxu0
        %1659 = vmatprep.mubr.f32.mxu0 %v956
        %1660 = vmatmul.mubr.f32.gmra.mxu0 %v955
        %v1661 = vpop.f32.mrf.mxu0
        %v1662 = vadd.f32 %v1277, %v1661
        %v1663 = vpop.f32.mrf.mxu0
        %1664 = vmatprep.mubr.f32.mxu0 %v960
        %1665 = vmatmul.mubr.f32.gmra.mxu0 %v959
        %v1666 = vpop.f32.mrf.mxu0
        %v1667 = vadd.f32 %v1282, %v1666
        %v1668 = vpop.f32.mrf.mxu0
        %1669 = vmatprep.mubr.f32.mxu0 %v964
        %1670 = vmatmul.mubr.f32.gmra.mxu0 %v963
        %v1671 = vpop.f32.mrf.mxu0
        %v1672 = vadd.f32 %v1287, %v1671
        %v1673 = vpop.f32.mrf.mxu0
        %1674 = vmatprep.mubr.f32.mxu0 %v968
        %1675 = vmatmul.mubr.f32.gmra.mxu0 %v967
        %v1676 = vpop.f32.mrf.mxu0
        %v1677 = vadd.f32 %v1292, %v1676
        %v1678 = vpop.f32.mrf.mxu0
        %1679 = vmatprep.mubr.f32.mxu0 %v972
        %1680 = vmatmul.mubr.f32.gmra.mxu0 %v971
        %v1681 = vpop.f32.mrf.mxu0
        %v1682 = vadd.f32 %v1297, %v1681
        %v1683 = vpop.f32.mrf.mxu0
        %1684 = vmatprep.mubr.f32.mxu0 %v976
        %1685 = vmatmul.mubr.f32.gmra.mxu0 %v975
        %v1686 = vpop.f32.mrf.mxu0
        %v1687 = vadd.f32 %v1302, %v1686
        %v1688 = vpop.f32.mrf.mxu0
        %1689 = vmatprep.mubr.f32.mxu0 %v980
        %1690 = vmatmul.mubr.f32.gmra.mxu0 %v979
        %v1691 = vpop.f32.mrf.mxu0
        %v1692 = vadd.f32 %v1307, %v1691
        %v1693 = vpop.f32.mrf.mxu0
        %1694 = vmatprep.mubr.f32.mxu0 %v984
        %1695 = vmatmul.mubr.f32.gmra.mxu0 %v983
        %v1696 = vpop.f32.mrf.mxu0
        %v1697 = vadd.f32 %v1312, %v1696
        %v1698 = vpop.f32.mrf.mxu0
        %1699 = vmatprep.mubr.f32.mxu0 %v988
        %1700 = vmatmul.mubr.f32.gmra.mxu0 %v987
        %v1701 = vpop.f32.mrf.mxu0
        %v1702 = vadd.f32 %v1317, %v1701
        %v1703 = vpop.f32.mrf.mxu0
        %1704 = vmatprep.mubr.f32.mxu0 %v992
        %1705 = vmatmul.mubr.f32.gmra.mxu0 %v991
        %v1706 = vpop.f32.mrf.mxu0
        %v1707 = vadd.f32 %v1322, %v1706
        %v1708 = vpop.f32.mrf.mxu0
        %1709 = vmatprep.mubr.f32.mxu0 %v996
        %1710 = vmatmul.mubr.f32.gmra.mxu0 %v995
        %v1711 = vpop.f32.mrf.mxu0
        %v1712 = vadd.f32 %v1327, %v1711
        %v1713 = vpop.f32.mrf.mxu0
        %1714 = vmatprep.mubr.f32.mxu0 %v1000
        %1715 = vmatmul.mubr.f32.gmra.mxu0 %v999
        %v1716 = vpop.f32.mrf.mxu0
        %v1717 = vadd.f32 %v1332, %v1716
        %v1718 = vpop.f32.mrf.mxu0
        %1719 = vmatprep.mubr.f32.mxu0 %v1004
        %1720 = vmatmul.mubr.f32.gmra.mxu0 %v1003
        %v1721 = vpop.f32.mrf.mxu0
        %v1722 = vadd.f32 %v1337, %v1721
        %v1723 = vpop.f32.mrf.mxu0
        %1724 = vmatprep.mubr.f32.mxu0 %v1008
        %1725 = vmatmul.mubr.f32.gmra.mxu0 %v1007
        %v1726 = vpop.f32.mrf.mxu0
        %v1727 = vadd.f32 %v1342, %v1726
        %v1728 = vpop.f32.mrf.mxu0
        %1729 = vmatprep.mubr.f32.mxu0 %v1012
        %1730 = vmatmul.mubr.f32.gmra.mxu0 %v1011
        %v1731 = vpop.f32.mrf.mxu0
        %v1732 = vadd.f32 %v1347, %v1731
        %v1733 = vpop.f32.mrf.mxu0
        %1734 = vmatprep.mubr.f32.mxu0 %v1016
        %1735 = vmatmul.mubr.f32.gmra.mxu0 %v1015
        %v1736 = vpop.f32.mrf.mxu0
        %v1737 = vadd.f32 %v1352, %v1736
        %v1738 = vpop.f32.mrf.mxu0
        %1739 = vmatprep.mubr.f32.mxu0 %v1020
        %1740 = vmatmul.mubr.f32.gmra.mxu0 %v1019
        %v1741 = vpop.f32.mrf.mxu0
        %v1742 = vadd.f32 %v1357, %v1741
        %v1743 = vpop.f32.mrf.mxu0
        %1744 = vmatprep.mubr.f32.mxu0 %v1024
        %1745 = vmatmul.mubr.f32.gmra.mxu0 %v1023
        %v1746 = vpop.f32.mrf.mxu0
        %v1747 = vadd.f32 %v1362, %v1746
        %v1748 = vpop.f32.mrf.mxu0
        %1749 = vmatprep.mubr.f32.mxu0 %v1028
        %1750 = vmatmul.mubr.f32.gmra.mxu0 %v1027
        %v1751 = vpop.f32.mrf.mxu0
        %v1752 = vadd.f32 %v1367, %v1751
        %v1753 = vpop.f32.mrf.mxu0
        %1754 = vmatprep.mubr.f32.mxu0 %v1032
        %1755 = vmatmul.mubr.f32.gmra.mxu0 %v1031
        %v1756 = vpop.f32.mrf.mxu0
        %v1757 = vadd.f32 %v1372, %v1756
        %v1758 = vpop.f32.mrf.mxu0
        %1759 = vmatprep.mubr.f32.mxu0 %v1036
        %1760 = vmatmul.mubr.f32.gmra.mxu0 %v1035
        %v1761 = vpop.f32.mrf.mxu0
        %v1762 = vadd.f32 %v1377, %v1761
        %v1763 = vpop.f32.mrf.mxu0
        %1764 = vmatprep.mubr.f32.mxu0 %v1040
        %1765 = vmatmul.mubr.f32.gmra.mxu0 %v1039
        %v1766 = vpop.f32.mrf.mxu0
        %v1767 = vadd.f32 %v1382, %v1766
        %v1768 = vpop.f32.mrf.mxu0
        %1769 = vmatprep.mubr.f32.mxu0 %v1044
        %1770 = vmatmul.mubr.f32.gmra.mxu0 %v1043
        %v1771 = vpop.f32.mrf.mxu0
        %v1772 = vadd.f32 %v1387, %v1771
        %v1773 = vpop.f32.mrf.mxu0
        %1774 = vmatprep.mubr.f32.mxu0 %v1048
        %1775 = vmatmul.mubr.f32.gmra.mxu0 %v1047
        %v1776 = vpop.f32.mrf.mxu0
        %v1777 = vadd.f32 %v1392, %v1776
        %v1778 = vpop.f32.mrf.mxu0
        %1779 = vmatprep.mubr.f32.mxu0 %v1052
        %1780 = vmatmul.mubr.f32.gmra.mxu0 %v1051
        %v1781 = vpop.f32.mrf.mxu0
        %v1782 = vadd.f32 %v1397, %v1781
        %v1783 = vpop.f32.mrf.mxu0
        %1784 = vmatprep.mubr.f32.mxu0 %v1056
        %1785 = vmatmul.mubr.f32.gmra.mxu0 %v1055
        %v1786 = vpop.f32.mrf.mxu0
        %v1787 = vadd.f32 %v1402, %v1786
        %v1788 = vpop.f32.mrf.mxu0
        %1789 = vmatprep.mubr.f32.mxu0 %v1060
        %1790 = vmatmul.mubr.f32.gmra.mxu0 %v1059
        %v1791 = vpop.f32.mrf.mxu0
        %v1792 = vadd.f32 %v1407, %v1791
        %v1793 = vpop.f32.mrf.mxu0
        %1794 = vmatprep.mubr.f32.mxu0 %v1064
        %1795 = vmatmul.mubr.f32.gmra.mxu0 %v1063
        %v1796 = vpop.f32.mrf.mxu0
        %v1797 = vadd.f32 %v1412, %v1796
        %v1798 = vpop.f32.mrf.mxu0
        %1799 = vmatprep.mubr.f32.mxu0 %v1068
        %1800 = vmatmul.mubr.f32.gmra.mxu0 %v1067
        %v1801 = vpop.f32.mrf.mxu0
        %v1802 = vadd.f32 %v1417, %v1801
        %v1803 = vpop.f32.mrf.mxu0
        %1804 = vmatprep.mubr.f32.mxu0 %v1072
        %1805 = vmatmul.mubr.f32.gmra.mxu0 %v1071
        %v1806 = vpop.f32.mrf.mxu0
        %v1807 = vadd.f32 %v1422, %v1806
        %v1808 = vpop.f32.mrf.mxu0
        %1809 = vmatprep.mubr.f32.mxu0 %v1076
        %1810 = vmatmul.mubr.f32.gmra.mxu0 %v1075
        %v1811 = vpop.f32.mrf.mxu0
        %v1812 = vadd.f32 %v1427, %v1811
        %v1813 = vpop.f32.mrf.mxu0
        %1814 = vmatprep.mubr.f32.mxu0 %v1080
        %1815 = vmatmul.mubr.f32.gmra.mxu0 %v1079
        %v1816 = vpop.f32.mrf.mxu0
        %v1817 = vadd.f32 %v1432, %v1816
        %v1818 = vpop.f32.mrf.mxu0
        %1819 = vmatprep.mubr.f32.mxu0 %v1084
        %1820 = vmatmul.mubr.f32.gmra.mxu0 %v1083
        %v1821 = vpop.f32.mrf.mxu0
        %v1822 = vadd.f32 %v1437, %v1821
        %v1823 = vpop.f32.mrf.mxu0
        %1824 = vmatprep.mubr.f32.mxu0 %v1088
        %1825 = vmatmul.mubr.f32.gmra.mxu0 %v1087
        %v1826 = vpop.f32.mrf.mxu0
        %v1827 = vadd.f32 %v1442, %v1826
        %v1828 = vpop.f32.mrf.mxu0
        %1829 = vmatprep.mubr.f32.mxu0 %v1092
        %1830 = vmatmul.mubr.f32.gmra.mxu0 %v1091
        %v1831 = vpop.f32.mrf.mxu0
        %v1832 = vadd.f32 %v1447, %v1831
        %v1833 = vpop.f32.mrf.mxu0
        %1834 = vmatprep.mubr.f32.mxu0 %v1096
        %1835 = vmatmul.mubr.f32.gmra.mxu0 %v1095
        %v1836 = vpop.f32.mrf.mxu0
        %v1837 = vadd.f32 %v1452, %v1836
        %v1838 = vpop.f32.mrf.mxu0
        %1839 = vmatprep.mubr.f32.mxu0 %v1100
        %1840 = vmatmul.mubr.f32.gmra.mxu0 %v1099
        %v1841 = vpop.f32.mrf.mxu0
        %v1842 = vadd.f32 %v1457, %v1841
        %v1843 = vpop.f32.mrf.mxu0
        %1844 = vmatprep.mubr.f32.mxu0 %v1104
        %1845 = vmatmul.mubr.f32.gmra.mxu0 %v1103
        %v1846 = vpop.f32.mrf.mxu0
        %v1847 = vadd.f32 %v1462, %v1846
        %v1848 = vpop.f32.mrf.mxu0
        %1849 = vmatprep.mubr.f32.mxu0 %v1108
        %1850 = vmatmul.mubr.f32.gmra.mxu0 %v1107
        %v1851 = vpop.f32.mrf.mxu0
        %v1852 = vadd.f32 %v1467, %v1851
        %v1853 = vpop.f32.mrf.mxu0
        %1854 = vmatprep.mubr.f32.mxu0 %v1112
        %1855 = vmatmul.mubr.f32.gmra.mxu0 %v1111
        %v1856 = vpop.f32.mrf.mxu0
        %v1857 = vadd.f32 %v1472, %v1856
        %v1858 = vpop.f32.mrf.mxu0
        %1859 = vmatprep.mubr.f32.mxu0 %v1116
        %1860 = vmatmul.mubr.f32.gmra.mxu0 %v1115
        %v1861 = vpop.f32.mrf.mxu0
        %v1862 = vadd.f32 %v1477, %v1861
        %v1863 = vpop.f32.mrf.mxu0
        %1864 = vmatprep.mubr.f32.mxu0 %v1120
        %1865 = vmatmul.mubr.f32.gmra.mxu0 %v1119
        %v1866 = vpop.f32.mrf.mxu0
        %v1867 = vadd.f32 %v1482, %v1866
        %v1868 = vpop.f32.mrf.mxu0
        %1869 = vmatprep.mubr.f32.mxu0 %v1124
        %1870 = vmatmul.mubr.f32.gmra.mxu0 %v1123
        %v1871 = vpop.f32.mrf.mxu0
        %v1872 = vadd.f32 %v1487, %v1871
        %v1873 = vpop.f32.mrf.mxu0
        %1874 = vmatprep.mubr.f32.mxu0 %v1128
        %1875 = vmatmul.mubr.f32.gmra.mxu0 %v1127
        %v1876 = vpop.f32.mrf.mxu0
        %v1877 = vadd.f32 %v1492, %v1876
        %v1878 = vpop.f32.mrf.mxu0
        %1879 = vmatprep.mubr.f32.mxu0 %v1132
        %1880 = vmatmul.mubr.f32.gmra.mxu0 %v1131
        %v1881 = vpop.f32.mrf.mxu0
        %v1882 = vadd.f32 %v1497, %v1881
        %v1883 = vpop.f32.mrf.mxu0
        %1884 = vmatprep.mubr.f32.mxu0 %v1136
        %1885 = vmatmul.mubr.f32.gmra.mxu0 %v1135
        %v1886 = vpop.f32.mrf.mxu0
        %v1887 = vadd.f32 %v1502, %v1886
        %v1888 = vpop.f32.mrf.mxu0
        %1889 = vmatprep.mubr.f32.mxu0 %v1140
        %1890 = vmatmul.mubr.f32.gmra.mxu0 %v1139
        %v1891 = vpop.f32.mrf.mxu0
        %v1892 = vadd.f32 %v1507, %v1891
        %v1893 = vpop.f32.mrf.mxu0
        %1894 = vmatprep.mubr.f32.mxu0 %v1144
        %1895 = vmatmul.mubr.f32.gmra.mxu0 %v1143
        %v1896 = vpop.f32.mrf.mxu0
        %v1897 = vadd.f32 %v1512, %v1896
        %v1898 = vpop.f32.mrf.mxu0
        %1899 = vmatprep.mubr.f32.mxu0 %v1148
        %1900 = vmatmul.mubr.f32.gmra.mxu0 %v1147
        %v1901 = vpop.f32.mrf.mxu0
        %v1902 = vadd.f32 %v1517, %v1901
        %v1903 = vpop.f32.mrf.mxu0
        %1904 = vmatprep.mubr.f32.mxu0 %v1152
        %1905 = vmatmul.mubr.f32.gmra.mxu0 %v1151
        %v1906 = vpop.f32.mrf.mxu0
        %v1907 = vadd.f32 %v1522, %v1906
        %v1908 = vpop.f32.mrf.mxu0
        %1909 = vmatprep.mubr.f32.mxu0 %v1156
        %1910 = vmatmul.mubr.f32.gmra.mxu0 %v1155
        %v1911 = vpop.f32.mrf.mxu0
        %v1912 = vadd.f32 %v1527, %v1911
        %v1913 = vpop.f32.mrf.mxu0
        %1914 = vmatprep.mubr.f32.mxu0 %v1160
        %1915 = vmatmul.mubr.f32.gmra.mxu0 %v1159
        %v1916 = vpop.f32.mrf.mxu0
        %v1917 = vadd.f32 %v1532, %v1916
        %v1918 = vpop.f32.mrf.mxu0
        %1919 = vmatprep.mubr.f32.mxu0 %v1164
        %1920 = vmatmul.mubr.f32.gmra.mxu0 %v1163
        %v1921 = vpop.f32.mrf.mxu0
        %v1922 = vadd.f32 %v1537, %v1921
        %v1923 = vpop.f32.mrf.mxu0
        %1924 = vmatprep.mubr.f32.mxu0 %v1168
        %1925 = vmatmul.mubr.f32.gmra.mxu0 %v1167
        %v1926 = vpop.f32.mrf.mxu0
        %v1927 = vadd.f32 %v1542, %v1926
        %v1928 = vpop.f32.mrf.mxu0
        %1929 = vmatprep.mubr.f32.mxu0 %v1172
        %1930 = vmatmul.mubr.f32.gmra.mxu0 %v1171
        %v1931 = vpop.f32.mrf.mxu0
        %v1932 = vadd.f32 %v1547, %v1931
        %v1933 = vpop.f32.mrf.mxu0
        %1934 = vmatprep.mubr.f32.mxu0 %v1176
        %1935 = vmatmul.mubr.f32.gmra.mxu0 %v1175
        %v1936 = vpop.f32.mrf.mxu0
        %v1937 = vadd.f32 %v1552, %v1936
        %v1938 = vpop.f32.mrf.mxu0
        %1939 = vmatprep.mubr.f32.mxu0 %v1180
        %1940 = vmatmul.mubr.f32.gmra.mxu0 %v1179
        %v1941 = vpop.f32.mrf.mxu0
        %v1942 = vadd.f32 %v1557, %v1941
        %v1943 = vpop.f32.mrf.mxu0
        %1944 = vmatprep.mubr.f32.mxu0 %v1184
        %1945 = vmatmul.mubr.f32.gmra.mxu0 %v1183
        %v1946 = vpop.f32.mrf.mxu0
        %v1947 = vadd.f32 %v1562, %v1946
        %v1948 = vpop.f32.mrf.mxu0
        %1949 = vmatprep.mubr.f32.mxu0 %v1188
        %1950 = vmatmul.mubr.f32.gmra.mxu0 %v1187
        %v1951 = vpop.f32.mrf.mxu0
        %v1952 = vadd.f32 %v1567, %v1951
        %v1953 = vpop.f32.mrf.mxu0
        %1954 = vmatprep.mubr.f32.mxu0 %v1192
        %1955 = vmatmul.mubr.f32.gmra.mxu0 %v1191
        %v1956 = vpop.f32.mrf.mxu0
        %v1957 = vadd.f32 %v1572, %v1956
        %v1958 = vpop.f32.mrf.mxu0
        %1959 = vmatprep.mubr.f32.mxu0 %v1196
        %1960 = vmatmul.mubr.f32.gmra.mxu0 %v1195
        %v1961 = vpop.f32.mrf.mxu0
        %v1962 = vadd.f32 %v1577, %v1961
        %v1963 = vpop.f32.mrf.mxu0
        %1964 = vmatprep.mubr.f32.mxu0 %v1200
        %1965 = vmatmul.mubr.f32.gmra.mxu0 %v1199
        %v1966 = vpop.f32.mrf.mxu0
        %v1967 = vadd.f32 %v1582, %v1966
        %v1968 = vpop.f32.mrf.mxu0
        %1969 = vmatprep.mubr.f32.mxu0 %v1204
        %1970 = vmatmul.mubr.f32.gmra.mxu0 %v1203
        %v1971 = vpop.f32.mrf.mxu0
        %v1972 = vadd.f32 %v1587, %v1971
        %v1973 = vpop.f32.mrf.mxu0
        %1974 = vdwg.mxu0
        %v1975 = vadd.f32 %v757, %v1657
        %v1976 = vadd.f32 %v758, %v1662
        %v1977 = vadd.f32 %v759, %v1667
        %v1978 = vadd.f32 %v760, %v1672
        %v1979 = vadd.f32 %v761, %v1677
        %v1980 = vadd.f32 %v762, %v1682
        %v1981 = vadd.f32 %v763, %v1687
        %v1982 = vadd.f32 %v764, %v1692
        %v1983 = vadd.f32 %v765, %v1697
        %v1984 = vadd.f32 %v766, %v1702
        %v1985 = vadd.f32 %v767, %v1707
        %v1986 = vadd.f32 %v768, %v1712
        %v1987 = vadd.f32 %v769, %v1717
        %v1988 = vadd.f32 %v770, %v1722
        %v1989 = vadd.f32 %v771, %v1727
        %v1990 = vadd.f32 %v772, %v1732
        %v1991 = vadd.f32 %v773, %v1737
        %v1992 = vadd.f32 %v774, %v1742
        %v1993 = vadd.f32 %v775, %v1747
        %v1994 = vadd.f32 %v776, %v1752
        %v1995 = vadd.f32 %v777, %v1757
        %v1996 = vadd.f32 %v778, %v1762
        %v1997 = vadd.f32 %v779, %v1767
        %v1998 = vadd.f32 %v780, %v1772
        %v1999 = vadd.f32 %v781, %v1777
        %v2000 = vadd.f32 %v782, %v1782
        %v2001 = vadd.f32 %v783, %v1787
        %v2002 = vadd.f32 %v784, %v1792
        %v2003 = vadd.f32 %v785, %v1797
        %v2004 = vadd.f32 %v786, %v1802
        %v2005 = vadd.f32 %v787, %v1807
        %v2006 = vadd.f32 %v788, %v1812
        %v2007 = vadd.f32 %v789, %v1817
        %v2008 = vadd.f32 %v790, %v1822
        %v2009 = vadd.f32 %v791, %v1827
        %v2010 = vadd.f32 %v792, %v1832
        %v2011 = vadd.f32 %v793, %v1837
        %v2012 = vadd.f32 %v794, %v1842
        %v2013 = vadd.f32 %v795, %v1847
        %v2014 = vadd.f32 %v796, %v1852
        %v2015 = vadd.f32 %v797, %v1857
        %v2016 = vadd.f32 %v798, %v1862
        %v2017 = vadd.f32 %v799, %v1867
        %v2018 = vadd.f32 %v800, %v1872
        %v2019 = vadd.f32 %v801, %v1877
        %v2020 = vadd.f32 %v802, %v1882
        %v2021 = vadd.f32 %v803, %v1887
        %v2022 = vadd.f32 %v804, %v1892
        %v2023 = vadd.f32 %v805, %v1897
        %v2024 = vadd.f32 %v806, %v1902
        %v2025 = vadd.f32 %v807, %v1907
        %v2026 = vadd.f32 %v808, %v1912
        %v2027 = vadd.f32 %v809, %v1917
        %v2028 = vadd.f32 %v810, %v1922
        %v2029 = vadd.f32 %v811, %v1927
        %v2030 = vadd.f32 %v812, %v1932
        %v2031 = vadd.f32 %v813, %v1937
        %v2032 = vadd.f32 %v814, %v1942
        %v2033 = vadd.f32 %v815, %v1947
        %v2034 = vadd.f32 %v816, %v1952
        %v2035 = vadd.f32 %v817, %v1957
        %v2036 = vadd.f32 %v818, %v1962
        %v2037 = vadd.f32 %v819, %v1967
        %v2038 = vadd.f32 %v820, %v1972
        %2039 = vst [vmem:[#allocation2] sm:$0xff] %v1975
        %2040 = vst [vmem:[#allocation2 + $0x8] sm:$0xff] %v1976
        %2041 = vst [vmem:[#allocation2 + $0x10] sm:$0xff] %v1977
        %2042 = vst [vmem:[#allocation2 + $0x18] sm:$0xff] %v1978
        %2043 = vst [vmem:[#allocation2 + $0x20] sm:$0xff] %v1979
        %2044 = vst [vmem:[#allocation2 + $0x28] sm:$0xff] %v1980
        %2045 = vst [vmem:[#allocation2 + $0x30] sm:$0xff] %v1981
        %2046 = vst [vmem:[#allocation2 + $0x38] sm:$0xff] %v1982
        %2047 = vst [vmem:[#allocation2 + $0x40] sm:$0xff] %v1983
        %2048 = vst [vmem:[#allocation2 + $0x48] sm:$0xff] %v1984
        %2049 = vst [vmem:[#allocation2 + $0x50] sm:$0xff] %v1985
        %2050 = vst [vmem:[#allocation2 + $0x58] sm:$0xff] %v1986
        %2051 = vst [vmem:[#allocation2 + $0x60] sm:$0xff] %v1987
        %2052 = vst [vmem:[#allocation2 + $0x68] sm:$0xff] %v1988
        %2053 = vst [vmem:[#allocation2 + $0x70] sm:$0xff] %v1989
        %2054 = vst [vmem:[#allocation2 + $0x78] sm:$0xff] %v1990
        %2055 = vst [vmem:[#allocation2 + $0x80] sm:$0xff] %v1991
        %2056 = vst [vmem:[#allocation2 + $0x88] sm:$0xff] %v1992
        %2057 = vst [vmem:[#allocation2 + $0x90] sm:$0xff] %v1993
        %2058 = vst [vmem:[#allocation2 + $0x98] sm:$0xff] %v1994
        %2059 = vst [vmem:[#allocation2 + $0xa0] sm:$0xff] %v1995
        %2060 = vst [vmem:[#allocation2 + $0xa8] sm:$0xff] %v1996
        %2061 = vst [vmem:[#allocation2 + $0xb0] sm:$0xff] %v1997
        %2062 = vst [vmem:[#allocation2 + $0xb8] sm:$0xff] %v1998
        %2063 = vst [vmem:[#allocation2 + $0xc0] sm:$0xff] %v1999
        %2064 = vst [vmem:[#allocation2 + $0xc8] sm:$0xff] %v2000
        %2065 = vst [vmem:[#allocation2 + $0xd0] sm:$0xff] %v2001
        %2066 = vst [vmem:[#allocation2 + $0xd8] sm:$0xff] %v2002
        %2067 = vst [vmem:[#allocation2 + $0xe0] sm:$0xff] %v2003
        %2068 = vst [vmem:[#allocation2 + $0xe8] sm:$0xff] %v2004
        %2069 = vst [vmem:[#allocation2 + $0xf0] sm:$0xff] %v2005
        %2070 = vst [vmem:[#allocation2 + $0xf8] sm:$0xff] %v2006
        %2071 = vst [vmem:[#allocation2 + $0x100] sm:$0xff] %v2007
        %2072 = vst [vmem:[#allocation2 + $0x108] sm:$0xff] %v2008
        %2073 = vst [vmem:[#allocation2 + $0x110] sm:$0xff] %v2009
        %2074 = vst [vmem:[#allocation2 + $0x118] sm:$0xff] %v2010
        %2075 = vst [vmem:[#allocation2 + $0x120] sm:$0xff] %v2011
        %2076 = vst [vmem:[#allocation2 + $0x128] sm:$0xff] %v2012
        %2077 = vst [vmem:[#allocation2 + $0x130] sm:$0xff] %v2013
        %2078 = vst [vmem:[#allocation2 + $0x138] sm:$0xff] %v2014
        %2079 = vst [vmem:[#allocation2 + $0x140] sm:$0xff] %v2015
        %2080 = vst [vmem:[#allocation2 + $0x148] sm:$0xff] %v2016
        %2081 = vst [vmem:[#allocation2 + $0x150] sm:$0xff] %v2017
        %2082 = vst [vmem:[#allocation2 + $0x158] sm:$0xff] %v2018
        %2083 = vst [vmem:[#allocation2 + $0x160] sm:$0xff] %v2019
        %2084 = vst [vmem:[#allocation2 + $0x168] sm:$0xff] %v2020
        %2085 = vst [vmem:[#allocation2 + $0x170] sm:$0xff] %v2021
        %2086 = vst [vmem:[#allocation2 + $0x178] sm:$0xff] %v2022
        %2087 = vst [vmem:[#allocation2 + $0x180] sm:$0xff] %v2023
        %2088 = vst [vmem:[#allocation2 + $0x188] sm:$0xff] %v2024
        %2089 = vst [vmem:[#allocation2 + $0x190] sm:$0xff] %v2025
        %2090 = vst [vmem:[#allocation2 + $0x198] sm:$0xff] %v2026
        %2091 = vst [vmem:[#allocation2 + $0x1a0] sm:$0xff] %v2027
        %2092 = vst [vmem:[#allocation2 + $0x1a8] sm:$0xff] %v2028
        %2093 = vst [vmem:[#allocation2 + $0x1b0] sm:$0xff] %v2029
        %2094 = vst [vmem:[#allocation2 + $0x1b8] sm:$0xff] %v2030
        %2095 = vst [vmem:[#allocation2 + $0x1c0] sm:$0xff] %v2031
        %2096 = vst [vmem:[#allocation2 + $0x1c8] sm:$0xff] %v2032
        %2097 = vst [vmem:[#allocation2 + $0x1d0] sm:$0xff] %v2033
        %2098 = vst [vmem:[#allocation2 + $0x1d8] sm:$0xff] %v2034
        %2099 = vst [vmem:[#allocation2 + $0x1e0] sm:$0xff] %v2035
        %2100 = vst [vmem:[#allocation2 + $0x1e8] sm:$0xff] %v2036
        %2101 = vst [vmem:[#allocation2 + $0x1f0] sm:$0xff] %v2037
        %2102 = vst [vmem:[#allocation2 + $0x1f8] sm:$0xff] %v2038
        %p2103 = scmp.eq.s32.totalorder %s36, 1
        // Predicated region
        $region89: #{tpu_custom_call.1} parent=51 // pred_check
          %p2104 = pneg %p2103
        $region90: #{tpu_custom_call.1} parent=51 // pred_check_branch
          %2106 = sbr.rel (%p2104) target = $region92
        $region91: #{tpu_custom_call.1} parent=51 // pred_region
          %v2107 = vld [vmem:[%s422] sm:$0xff]
          %v2108 = vld [vmem:[%s422 + $0x8] sm:$0xff]
          %v2109 = vld [vmem:[%s422 + $0x10] sm:$0xff]
          %v2110 = vld [vmem:[%s422 + $0x18] sm:$0xff]
          %v2111 = vld [vmem:[%s422 + $0x20] sm:$0xff]
          %v2112 = vld [vmem:[%s422 + $0x28] sm:$0xff]
          %v2113 = vld [vmem:[%s422 + $0x30] sm:$0xff]
          %v2114 = vld [vmem:[%s422 + $0x38] sm:$0xff]
          %v2115 = vld [vmem:[%s422 + $0x40] sm:$0xff]
          %v2116 = vld [vmem:[%s422 + $0x48] sm:$0xff]
          %v2117 = vld [vmem:[%s422 + $0x50] sm:$0xff]
          %v2118 = vld [vmem:[%s422 + $0x58] sm:$0xff]
          %v2119 = vld [vmem:[%s422 + $0x60] sm:$0xff]
          %v2120 = vld [vmem:[%s422 + $0x68] sm:$0xff]
          %v2121 = vld [vmem:[%s422 + $0x70] sm:$0xff]
          %v2122 = vld [vmem:[%s422 + $0x78] sm:$0xff]
          %v2123 = vld [vmem:[%s422 + $0x80] sm:$0xff]
          %v2124 = vld [vmem:[%s422 + $0x88] sm:$0xff]
          %v2125 = vld [vmem:[%s422 + $0x90] sm:$0xff]
          %v2126 = vld [vmem:[%s422 + $0x98] sm:$0xff]
          %v2127 = vld [vmem:[%s422 + $0xa0] sm:$0xff]
          %v2128 = vld [vmem:[%s422 + $0xa8] sm:$0xff]
          %v2129 = vld [vmem:[%s422 + $0xb0] sm:$0xff]
          %v2130 = vld [vmem:[%s422 + $0xb8] sm:$0xff]
          %v2131 = vld [vmem:[%s422 + $0xc0] sm:$0xff]
          %v2132 = vld [vmem:[%s422 + $0xc8] sm:$0xff]
          %v2133 = vld [vmem:[%s422 + $0xd0] sm:$0xff]
          %v2134 = vld [vmem:[%s422 + $0xd8] sm:$0xff]
          %v2135 = vld [vmem:[%s422 + $0xe0] sm:$0xff]
          %v2136 = vld [vmem:[%s422 + $0xe8] sm:$0xff]
          %v2137 = vld [vmem:[%s422 + $0xf0] sm:$0xff]
          %v2138 = vld [vmem:[%s422 + $0xf8] sm:$0xff]
          %v2139 = vld [vmem:[%s422 + $0x100] sm:$0xff]
          %v2140 = vld [vmem:[%s422 + $0x108] sm:$0xff]
          %v2141 = vld [vmem:[%s422 + $0x110] sm:$0xff]
          %v2142 = vld [vmem:[%s422 + $0x118] sm:$0xff]
          %v2143 = vld [vmem:[%s422 + $0x120] sm:$0xff]
          %v2144 = vld [vmem:[%s422 + $0x128] sm:$0xff]
          %v2145 = vld [vmem:[%s422 + $0x130] sm:$0xff]
          %v2146 = vld [vmem:[%s422 + $0x138] sm:$0xff]
          %v2147 = vld [vmem:[%s422 + $0x140] sm:$0xff]
          %v2148 = vld [vmem:[%s422 + $0x148] sm:$0xff]
          %v2149 = vld [vmem:[%s422 + $0x150] sm:$0xff]
          %v2150 = vld [vmem:[%s422 + $0x158] sm:$0xff]
          %v2151 = vld [vmem:[%s422 + $0x160] sm:$0xff]
          %v2152 = vld [vmem:[%s422 + $0x168] sm:$0xff]
          %v2153 = vld [vmem:[%s422 + $0x170] sm:$0xff]
          %v2154 = vld [vmem:[%s422 + $0x178] sm:$0xff]
          %v2155 = vld [vmem:[%s422 + $0x180] sm:$0xff]
          %v2156 = vld [vmem:[%s422 + $0x188] sm:$0xff]
          %v2157 = vld [vmem:[%s422 + $0x190] sm:$0xff]
          %v2158 = vld [vmem:[%s422 + $0x198] sm:$0xff]
          %v2159 = vld [vmem:[%s422 + $0x1a0] sm:$0xff]
          %v2160 = vld [vmem:[%s422 + $0x1a8] sm:$0xff]
          %v2161 = vld [vmem:[%s422 + $0x1b0] sm:$0xff]
          %v2162 = vld [vmem:[%s422 + $0x1b8] sm:$0xff]
          %v2163 = vld [vmem:[%s422 + $0x1c0] sm:$0xff]
          %v2164 = vld [vmem:[%s422 + $0x1c8] sm:$0xff]
          %v2165 = vld [vmem:[%s422 + $0x1d0] sm:$0xff]
          %v2166 = vld [vmem:[%s422 + $0x1d8] sm:$0xff]
          %v2167 = vld [vmem:[%s422 + $0x1e0] sm:$0xff]
          %v2168 = vld [vmem:[%s422 + $0x1e8] sm:$0xff]
          %v2169 = vld [vmem:[%s422 + $0x1f0] sm:$0xff]
          %v2170 = vld [vmem:[%s422 + $0x1f8] sm:$0xff]
          %v2171 = vld [vmem:[#allocation9] sm:$0x1]
          %v2173 = vlaneseq
          %v2174 = vshrl.u32 %v2173, 7
          %v2175 = vsub.s32 0, %v2174
          %v2176 = vrot.slane %v2171, %v2175
          %v2178 = vadd.f32 %v2107, %v2176
          %v2179 = vadd.f32 %v2108, %v2176
          %v2180 = vadd.f32 %v2109, %v2176
          %v2181 = vadd.f32 %v2110, %v2176
          %v2182 = vadd.f32 %v2111, %v2176
          %v2183 = vadd.f32 %v2112, %v2176
          %v2184 = vadd.f32 %v2113, %v2176
          %v2185 = vadd.f32 %v2114, %v2176
          %v2186 = vadd.f32 %v2115, %v2176
          %v2187 = vadd.f32 %v2116, %v2176
          %v2188 = vadd.f32 %v2117, %v2176
          %v2189 = vadd.f32 %v2118, %v2176
          %v2190 = vadd.f32 %v2119, %v2176
          %v2191 = vadd.f32 %v2120, %v2176
          %v2192 = vadd.f32 %v2121, %v2176
          %v2193 = vadd.f32 %v2122, %v2176
          %v2194 = vadd.f32 %v2123, %v2176
          %v2195 = vadd.f32 %v2124, %v2176
          %v2196 = vadd.f32 %v2125, %v2176
          %v2197 = vadd.f32 %v2126, %v2176
          %v2198 = vadd.f32 %v2127, %v2176
          %v2199 = vadd.f32 %v2128, %v2176
          %v2200 = vadd.f32 %v2129, %v2176
          %v2201 = vadd.f32 %v2130, %v2176
          %v2202 = vadd.f32 %v2131, %v2176
          %v2203 = vadd.f32 %v2132, %v2176
          %v2204 = vadd.f32 %v2133, %v2176
          %v2205 = vadd.f32 %v2134, %v2176
          %v2206 = vadd.f32 %v2135, %v2176
          %v2207 = vadd.f32 %v2136, %v2176
          %v2208 = vadd.f32 %v2137, %v2176
          %v2209 = vadd.f32 %v2138, %v2176
          %v2210 = vadd.f32 %v2139, %v2176
          %v2211 = vadd.f32 %v2140, %v2176
          %v2212 = vadd.f32 %v2141, %v2176
          %v2213 = vadd.f32 %v2142, %v2176
          %v2214 = vadd.f32 %v2143, %v2176
          %v2215 = vadd.f32 %v2144, %v2176
          %v2216 = vadd.f32 %v2145, %v2176
          %v2217 = vadd.f32 %v2146, %v2176
          %v2218 = vadd.f32 %v2147, %v2176
          %v2219 = vadd.f32 %v2148, %v2176
          %v2220 = vadd.f32 %v2149, %v2176
          %v2221 = vadd.f32 %v2150, %v2176
          %v2222 = vadd.f32 %v2151, %v2176
          %v2223 = vadd.f32 %v2152, %v2176
          %v2224 = vadd.f32 %v2153, %v2176
          %v2225 = vadd.f32 %v2154, %v2176
          %v2226 = vadd.f32 %v2155, %v2176
          %v2227 = vadd.f32 %v2156, %v2176
          %v2228 = vadd.f32 %v2157, %v2176
          %v2229 = vadd.f32 %v2158, %v2176
          %v2230 = vadd.f32 %v2159, %v2176
          %v2231 = vadd.f32 %v2160, %v2176
          %v2232 = vadd.f32 %v2161, %v2176
          %v2233 = vadd.f32 %v2162, %v2176
          %v2234 = vadd.f32 %v2163, %v2176
          %v2235 = vadd.f32 %v2164, %v2176
          %v2236 = vadd.f32 %v2165, %v2176
          %v2237 = vadd.f32 %v2166, %v2176
          %v2238 = vadd.f32 %v2167, %v2176
          %v2239 = vadd.f32 %v2168, %v2176
          %v2240 = vadd.f32 %v2169, %v2176
          %v2241 = vadd.f32 %v2170, %v2176
          %v2242 = vld [vmem:[#allocation2] sm:$0xff]
          %v2243 = vld [vmem:[#allocation2 + $0x8] sm:$0xff]
          %v2244 = vld [vmem:[#allocation2 + $0x10] sm:$0xff]
          %v2245 = vld [vmem:[#allocation2 + $0x18] sm:$0xff]
          %v2246 = vld [vmem:[#allocation2 + $0x20] sm:$0xff]
          %v2247 = vld [vmem:[#allocation2 + $0x28] sm:$0xff]
          %v2248 = vld [vmem:[#allocation2 + $0x30] sm:$0xff]
          %v2249 = vld [vmem:[#allocation2 + $0x38] sm:$0xff]
          %v2250 = vld [vmem:[#allocation2 + $0x40] sm:$0xff]
          %v2251 = vld [vmem:[#allocation2 + $0x48] sm:$0xff]
          %v2252 = vld [vmem:[#allocation2 + $0x50] sm:$0xff]
          %v2253 = vld [vmem:[#allocation2 + $0x58] sm:$0xff]
          %v2254 = vld [vmem:[#allocation2 + $0x60] sm:$0xff]
          %v2255 = vld [vmem:[#allocation2 + $0x68] sm:$0xff]
          %v2256 = vld [vmem:[#allocation2 + $0x70] sm:$0xff]
          %v2257 = vld [vmem:[#allocation2 + $0x78] sm:$0xff]
          %v2258 = vld [vmem:[#allocation2 + $0x80] sm:$0xff]
          %v2259 = vld [vmem:[#allocation2 + $0x88] sm:$0xff]
          %v2260 = vld [vmem:[#allocation2 + $0x90] sm:$0xff]
          %v2261 = vld [vmem:[#allocation2 + $0x98] sm:$0xff]
          %v2262 = vld [vmem:[#allocation2 + $0xa0] sm:$0xff]
          %v2263 = vld [vmem:[#allocation2 + $0xa8] sm:$0xff]
          %v2264 = vld [vmem:[#allocation2 + $0xb0] sm:$0xff]
          %v2265 = vld [vmem:[#allocation2 + $0xb8] sm:$0xff]
          %v2266 = vld [vmem:[#allocation2 + $0xc0] sm:$0xff]
          %v2267 = vld [vmem:[#allocation2 + $0xc8] sm:$0xff]
          %v2268 = vld [vmem:[#allocation2 + $0xd0] sm:$0xff]
          %v2269 = vld [vmem:[#allocation2 + $0xd8] sm:$0xff]
          %v2270 = vld [vmem:[#allocation2 + $0xe0] sm:$0xff]
          %v2271 = vld [vmem:[#allocation2 + $0xe8] sm:$0xff]
          %v2272 = vld [vmem:[#allocation2 + $0xf0] sm:$0xff]
          %v2273 = vld [vmem:[#allocation2 + $0xf8] sm:$0xff]
          %v2274 = vld [vmem:[#allocation2 + $0x100] sm:$0xff]
          %v2275 = vld [vmem:[#allocation2 + $0x108] sm:$0xff]
          %v2276 = vld [vmem:[#allocation2 + $0x110] sm:$0xff]
          %v2277 = vld [vmem:[#allocation2 + $0x118] sm:$0xff]
          %v2278 = vld [vmem:[#allocation2 + $0x120] sm:$0xff]
          %v2279 = vld [vmem:[#allocation2 + $0x128] sm:$0xff]
          %v2280 = vld [vmem:[#allocation2 + $0x130] sm:$0xff]
          %v2281 = vld [vmem:[#allocation2 + $0x138] sm:$0xff]
          %v2282 = vld [vmem:[#allocation2 + $0x140] sm:$0xff]
          %v2283 = vld [vmem:[#allocation2 + $0x148] sm:$0xff]
          %v2284 = vld [vmem:[#allocation2 + $0x150] sm:$0xff]
          %v2285 = vld [vmem:[#allocation2 + $0x158] sm:$0xff]
          %v2286 = vld [vmem:[#allocation2 + $0x160] sm:$0xff]
          %v2287 = vld [vmem:[#allocation2 + $0x168] sm:$0xff]
          %v2288 = vld [vmem:[#allocation2 + $0x170] sm:$0xff]
          %v2289 = vld [vmem:[#allocation2 + $0x178] sm:$0xff]
          %v2290 = vld [vmem:[#allocation2 + $0x180] sm:$0xff]
          %v2291 = vld [vmem:[#allocation2 + $0x188] sm:$0xff]
          %v2292 = vld [vmem:[#allocation2 + $0x190] sm:$0xff]
          %v2293 = vld [vmem:[#allocation2 + $0x198] sm:$0xff]
          %v2294 = vld [vmem:[#allocation2 + $0x1a0] sm:$0xff]
          %v2295 = vld [vmem:[#allocation2 + $0x1a8] sm:$0xff]
          %v2296 = vld [vmem:[#allocation2 + $0x1b0] sm:$0xff]
          %v2297 = vld [vmem:[#allocation2 + $0x1b8] sm:$0xff]
          %v2298 = vld [vmem:[#allocation2 + $0x1c0] sm:$0xff]
          %v2299 = vld [vmem:[#allocation2 + $0x1c8] sm:$0xff]
          %v2300 = vld [vmem:[#allocation2 + $0x1d0] sm:$0xff]
          %v2301 = vld [vmem:[#allocation2 + $0x1d8] sm:$0xff]
          %v2302 = vld [vmem:[#allocation2 + $0x1e0] sm:$0xff]
          %v2303 = vld [vmem:[#allocation2 + $0x1e8] sm:$0xff]
          %v2304 = vld [vmem:[#allocation2 + $0x1f0] sm:$0xff]
          %v2305 = vld [vmem:[#allocation2 + $0x1f8] sm:$0xff]
          %v2306 = vadd.f32 %v2178, %v2242
          %v2307 = vadd.f32 %v2179, %v2243
          %v2308 = vadd.f32 %v2180, %v2244
          %v2309 = vadd.f32 %v2181, %v2245
          %v2310 = vadd.f32 %v2182, %v2246
          %v2311 = vadd.f32 %v2183, %v2247
          %v2312 = vadd.f32 %v2184, %v2248
          %v2313 = vadd.f32 %v2185, %v2249
          %v2314 = vadd.f32 %v2186, %v2250
          %v2315 = vadd.f32 %v2187, %v2251
          %v2316 = vadd.f32 %v2188, %v2252
          %v2317 = vadd.f32 %v2189, %v2253
          %v2318 = vadd.f32 %v2190, %v2254
          %v2319 = vadd.f32 %v2191, %v2255
          %v2320 = vadd.f32 %v2192, %v2256
          %v2321 = vadd.f32 %v2193, %v2257
          %v2322 = vadd.f32 %v2194, %v2258
          %v2323 = vadd.f32 %v2195, %v2259
          %v2324 = vadd.f32 %v2196, %v2260
          %v2325 = vadd.f32 %v2197, %v2261
          %v2326 = vadd.f32 %v2198, %v2262
          %v2327 = vadd.f32 %v2199, %v2263
          %v2328 = vadd.f32 %v2200, %v2264
          %v2329 = vadd.f32 %v2201, %v2265
          %v2330 = vadd.f32 %v2202, %v2266
          %v2331 = vadd.f32 %v2203, %v2267
          %v2332 = vadd.f32 %v2204, %v2268
          %v2333 = vadd.f32 %v2205, %v2269
          %v2334 = vadd.f32 %v2206, %v2270
          %v2335 = vadd.f32 %v2207, %v2271
          %v2336 = vadd.f32 %v2208, %v2272
          %v2337 = vadd.f32 %v2209, %v2273
          %v2338 = vadd.f32 %v2210, %v2274
          %v2339 = vadd.f32 %v2211, %v2275
          %v2340 = vadd.f32 %v2212, %v2276
          %v2341 = vadd.f32 %v2213, %v2277
          %v2342 = vadd.f32 %v2214, %v2278
          %v2343 = vadd.f32 %v2215, %v2279
          %v2344 = vadd.f32 %v2216, %v2280
          %v2345 = vadd.f32 %v2217, %v2281
          %v2346 = vadd.f32 %v2218, %v2282
          %v2347 = vadd.f32 %v2219, %v2283
          %v2348 = vadd.f32 %v2220, %v2284
          %v2349 = vadd.f32 %v2221, %v2285
          %v2350 = vadd.f32 %v2222, %v2286
          %v2351 = vadd.f32 %v2223, %v2287
          %v2352 = vadd.f32 %v2224, %v2288
          %v2353 = vadd.f32 %v2225, %v2289
          %v2354 = vadd.f32 %v2226, %v2290
          %v2355 = vadd.f32 %v2227, %v2291
          %v2356 = vadd.f32 %v2228, %v2292
          %v2357 = vadd.f32 %v2229, %v2293
          %v2358 = vadd.f32 %v2230, %v2294
          %v2359 = vadd.f32 %v2231, %v2295
          %v2360 = vadd.f32 %v2232, %v2296
          %v2361 = vadd.f32 %v2233, %v2297
          %v2362 = vadd.f32 %v2234, %v2298
          %v2363 = vadd.f32 %v2235, %v2299
          %v2364 = vadd.f32 %v2236, %v2300
          %v2365 = vadd.f32 %v2237, %v2301
          %v2366 = vadd.f32 %v2238, %v2302
          %v2367 = vadd.f32 %v2239, %v2303
          %v2368 = vadd.f32 %v2240, %v2304
          %v2369 = vadd.f32 %v2241, %v2305
          %v2370 = vld [vmem:[#allocation11] sm:$0xff]
          %v2371 = vld [vmem:[#allocation11 + $0x8] sm:$0xff]
          %v2372 = vld [vmem:[#allocation11 + $0x10] sm:$0xff]
          %v2373 = vld [vmem:[#allocation11 + $0x18] sm:$0xff]
          %v2374 = vld [vmem:[#allocation11 + $0x20] sm:$0xff]
          %v2375 = vld [vmem:[#allocation11 + $0x28] sm:$0xff]
          %v2376 = vld [vmem:[#allocation11 + $0x30] sm:$0xff]
          %v2377 = vld [vmem:[#allocation11 + $0x38] sm:$0xff]
          %v2378 = vld [vmem:[#allocation11 + $0x40] sm:$0xff]
          %v2379 = vld [vmem:[#allocation11 + $0x48] sm:$0xff]
          %v2380 = vld [vmem:[#allocation11 + $0x50] sm:$0xff]
          %v2381 = vld [vmem:[#allocation11 + $0x58] sm:$0xff]
          %v2382 = vld [vmem:[#allocation11 + $0x60] sm:$0xff]
          %v2383 = vld [vmem:[#allocation11 + $0x68] sm:$0xff]
          %v2384 = vld [vmem:[#allocation11 + $0x70] sm:$0xff]
          %v2385 = vld [vmem:[#allocation11 + $0x78] sm:$0xff]
          %v2386 = vld [vmem:[#allocation11 + $0x80] sm:$0xff]
          %v2387 = vld [vmem:[#allocation11 + $0x88] sm:$0xff]
          %v2388 = vld [vmem:[#allocation11 + $0x90] sm:$0xff]
          %v2389 = vld [vmem:[#allocation11 + $0x98] sm:$0xff]
          %v2390 = vld [vmem:[#allocation11 + $0xa0] sm:$0xff]
          %v2391 = vld [vmem:[#allocation11 + $0xa8] sm:$0xff]
          %v2392 = vld [vmem:[#allocation11 + $0xb0] sm:$0xff]
          %v2393 = vld [vmem:[#allocation11 + $0xb8] sm:$0xff]
          %v2394 = vld [vmem:[#allocation11 + $0xc0] sm:$0xff]
          %v2395 = vld [vmem:[#allocation11 + $0xc8] sm:$0xff]
          %v2396 = vld [vmem:[#allocation11 + $0xd0] sm:$0xff]
          %v2397 = vld [vmem:[#allocation11 + $0xd8] sm:$0xff]
          %v2398 = vld [vmem:[#allocation11 + $0xe0] sm:$0xff]
          %v2399 = vld [vmem:[#allocation11 + $0xe8] sm:$0xff]
          %v2400 = vld [vmem:[#allocation11 + $0xf0] sm:$0xff]
          %v2401 = vld [vmem:[#allocation11 + $0xf8] sm:$0xff]
          %v2402 = vld [vmem:[#allocation12] sm:$0x3]
          %v2404 = vlaneseq
          %v2405 = vshrl.u32 %v2404, 7
          %v2406 = vsub.s32 0, %v2405
          %v2407 = vrot.slane %v2402, %v2406
          %v2408 = vlaneseq
          %v2409 = vshrl.u32 %v2408, 7
          %v2410 = vsub.s32 1, %v2409
          %v2411 = vrot.slane %v2402, %v2410
          %2414 = vmatprep.subr.mxu0 %v2401
          %2415 = vmatpush1.msra.mxu0 %v2400
          %2416 = vmatprep.subr.mxu0 %v2399
          %2417 = vmatpush1.msra.mxu0 %v2398
          %2418 = vmatprep.subr.mxu0 %v2397
          %2419 = vmatpush1.msra.mxu0 %v2396
          %2420 = vmatprep.subr.mxu0 %v2395
          %2421 = vmatpush1.msra.mxu0 %v2394
          %2422 = vmatprep.subr.mxu0 %v2393
          %2423 = vmatpush1.msra.mxu0 %v2392
          %2424 = vmatprep.subr.mxu0 %v2391
          %2425 = vmatpush1.msra.mxu0 %v2390
          %2426 = vmatprep.subr.mxu0 %v2389
          %2427 = vmatpush1.msra.mxu0 %v2388
          %2428 = vmatprep.subr.mxu0 %v2387
          %2429 = vmatpush1.msra.mxu0 %v2386
          %2430 = vmatprep.subr.mxu0 %v2385
          %2431 = vmatpush1.msra.mxu0 %v2384
          %2432 = vmatprep.subr.mxu0 %v2383
          %2433 = vmatpush1.msra.mxu0 %v2382
          %2434 = vmatprep.subr.mxu0 %v2381
          %2435 = vmatpush1.msra.mxu0 %v2380
          %2436 = vmatprep.subr.mxu0 %v2379
          %2437 = vmatpush1.msra.mxu0 %v2378
          %2438 = vmatprep.subr.mxu0 %v2377
          %2439 = vmatpush1.msra.mxu0 %v2376
          %2440 = vmatprep.subr.mxu0 %v2375
          %2441 = vmatpush1.msra.mxu0 %v2374
          %2442 = vmatprep.subr.mxu0 %v2373
          %2443 = vmatpush1.msra.mxu0 %v2372
          %2444 = vmatprep.subr.mxu0 %v2371
          %2445 = vmatpush1.msra.mxu0 %v2370
          %2446 = vmatprep.subr.mxu0 0.0
          %2447 = vmatpush2.msra.mxu0 0.0
          %2448 = vmatprep.subr.mxu0 0.0
          %2449 = vmatpush2.msra.mxu0 0.0
          %2450 = vmatprep.subr.mxu0 0.0
          %2451 = vmatpush2.msra.mxu0 0.0
          %2452 = vmatprep.subr.mxu0 0.0
          %2453 = vmatpush2.msra.mxu0 0.0
          %2454 = vmatprep.subr.mxu0 0.0
          %2455 = vmatpush2.msra.mxu0 0.0
          %2456 = vmatprep.subr.mxu0 0.0
          %2457 = vmatpush2.msra.mxu0 0.0
          %2458 = vmatprep.subr.mxu0 0.0
          %2459 = vmatpush2.msra.mxu0 0.0
          %2460 = vmatprep.subr.mxu0 0.0
          %2461 = vmatpush2.msra.mxu0 0.0
          %2462 = vmatprep.subr.mxu0 0.0
          %2463 = vmatpush2.msra.mxu0 0.0
          %2464 = vmatprep.subr.mxu0 0.0
          %2465 = vmatpush2.msra.mxu0 0.0
          %2466 = vmatprep.subr.mxu0 0.0
          %2467 = vmatpush2.msra.mxu0 0.0
          %2468 = vmatprep.subr.mxu0 0.0
          %2469 = vmatpush2.msra.mxu0 0.0
          %2470 = vmatprep.subr.mxu0 0.0
          %2471 = vmatpush2.msra.mxu0 0.0
          %2472 = vmatprep.subr.mxu0 0.0
          %2473 = vmatpush2.msra.mxu0 0.0
          %2474 = vmatprep.subr.mxu0 0.0
          %2475 = vmatpush2.msra.mxu0 0.0
          %2476 = vmatprep.subr.mxu0 0.0
          %2477 = vmatpush2.msra.mxu0 0.0
          %2478 = vmatprep.mubr.f32.mxu0 0.0
          %2479 = vmatmul.mubr.f32.gmra.mxu0 %v2306
          %v2480 = vpop.f32.mrf.mxu0
          %v2481 = vadd.f32 %v2407, %v2480
          %v2482 = vpop.f32.mrf.mxu0
          %v2483 = vadd.f32 %v2411, %v2482
          %2484 = vmatprep.mubr.f32.mxu0 0.0
          %2485 = vmatmul.mubr.f32.gmra.mxu0 %v2307
          %v2486 = vpop.f32.mrf.mxu0
          %v2487 = vadd.f32 %v2407, %v2486
          %v2488 = vpop.f32.mrf.mxu0
          %v2489 = vadd.f32 %v2411, %v2488
          %2490 = vmatprep.mubr.f32.mxu0 0.0
          %2491 = vmatmul.mubr.f32.gmra.mxu0 %v2308
          %v2492 = vpop.f32.mrf.mxu0
          %v2493 = vadd.f32 %v2407, %v2492
          %v2494 = vpop.f32.mrf.mxu0
          %v2495 = vadd.f32 %v2411, %v2494
          %2496 = vmatprep.mubr.f32.mxu0 0.0
          %2497 = vmatmul.mubr.f32.gmra.mxu0 %v2309
          %v2498 = vpop.f32.mrf.mxu0
          %v2499 = vadd.f32 %v2407, %v2498
          %v2500 = vpop.f32.mrf.mxu0
          %v2501 = vadd.f32 %v2411, %v2500
          %2502 = vmatprep.mubr.f32.mxu0 0.0
          %2503 = vmatmul.mubr.f32.gmra.mxu0 %v2310
          %v2504 = vpop.f32.mrf.mxu0
          %v2505 = vadd.f32 %v2407, %v2504
          %v2506 = vpop.f32.mrf.mxu0
          %v2507 = vadd.f32 %v2411, %v2506
          %2508 = vmatprep.mubr.f32.mxu0 0.0
          %2509 = vmatmul.mubr.f32.gmra.mxu0 %v2311
          %v2510 = vpop.f32.mrf.mxu0
          %v2511 = vadd.f32 %v2407, %v2510
          %v2512 = vpop.f32.mrf.mxu0
          %v2513 = vadd.f32 %v2411, %v2512
          %2514 = vmatprep.mubr.f32.mxu0 0.0
          %2515 = vmatmul.mubr.f32.gmra.mxu0 %v2312
          %v2516 = vpop.f32.mrf.mxu0
          %v2517 = vadd.f32 %v2407, %v2516
          %v2518 = vpop.f32.mrf.mxu0
          %v2519 = vadd.f32 %v2411, %v2518
          %2520 = vmatprep.mubr.f32.mxu0 0.0
          %2521 = vmatmul.mubr.f32.gmra.mxu0 %v2313
          %v2522 = vpop.f32.mrf.mxu0
          %v2523 = vadd.f32 %v2407, %v2522
          %v2524 = vpop.f32.mrf.mxu0
          %v2525 = vadd.f32 %v2411, %v2524
          %2526 = vmatprep.mubr.f32.mxu0 0.0
          %2527 = vmatmul.mubr.f32.gmra.mxu0 %v2314
          %v2528 = vpop.f32.mrf.mxu0
          %v2529 = vadd.f32 %v2407, %v2528
          %v2530 = vpop.f32.mrf.mxu0
          %v2531 = vadd.f32 %v2411, %v2530
          %2532 = vmatprep.mubr.f32.mxu0 0.0
          %2533 = vmatmul.mubr.f32.gmra.mxu0 %v2315
          %v2534 = vpop.f32.mrf.mxu0
          %v2535 = vadd.f32 %v2407, %v2534
          %v2536 = vpop.f32.mrf.mxu0
          %v2537 = vadd.f32 %v2411, %v2536
          %2538 = vmatprep.mubr.f32.mxu0 0.0
          %2539 = vmatmul.mubr.f32.gmra.mxu0 %v2316
          %v2540 = vpop.f32.mrf.mxu0
          %v2541 = vadd.f32 %v2407, %v2540
          %v2542 = vpop.f32.mrf.mxu0
          %v2543 = vadd.f32 %v2411, %v2542
          %2544 = vmatprep.mubr.f32.mxu0 0.0
          %2545 = vmatmul.mubr.f32.gmra.mxu0 %v2317
          %v2546 = vpop.f32.mrf.mxu0
          %v2547 = vadd.f32 %v2407, %v2546
          %v2548 = vpop.f32.mrf.mxu0
          %v2549 = vadd.f32 %v2411, %v2548
          %2550 = vmatprep.mubr.f32.mxu0 0.0
          %2551 = vmatmul.mubr.f32.gmra.mxu0 %v2318
          %v2552 = vpop.f32.mrf.mxu0
          %v2553 = vadd.f32 %v2407, %v2552
          %v2554 = vpop.f32.mrf.mxu0
          %v2555 = vadd.f32 %v2411, %v2554
          %2556 = vmatprep.mubr.f32.mxu0 0.0
          %2557 = vmatmul.mubr.f32.gmra.mxu0 %v2319
          %v2558 = vpop.f32.mrf.mxu0
          %v2559 = vadd.f32 %v2407, %v2558
          %v2560 = vpop.f32.mrf.mxu0
          %v2561 = vadd.f32 %v2411, %v2560
          %2562 = vmatprep.mubr.f32.mxu0 0.0
          %2563 = vmatmul.mubr.f32.gmra.mxu0 %v2320
          %v2564 = vpop.f32.mrf.mxu0
          %v2565 = vadd.f32 %v2407, %v2564
          %v2566 = vpop.f32.mrf.mxu0
          %v2567 = vadd.f32 %v2411, %v2566
          %2568 = vmatprep.mubr.f32.mxu0 0.0
          %2569 = vmatmul.mubr.f32.gmra.mxu0 %v2321
          %v2570 = vpop.f32.mrf.mxu0
          %v2571 = vadd.f32 %v2407, %v2570
          %v2572 = vpop.f32.mrf.mxu0
          %v2573 = vadd.f32 %v2411, %v2572
          %2574 = vmatprep.mubr.f32.mxu0 0.0
          %2575 = vmatmul.mubr.f32.gmra.mxu0 %v2322
          %v2576 = vpop.f32.mrf.mxu0
          %v2577 = vadd.f32 %v2407, %v2576
          %v2578 = vpop.f32.mrf.mxu0
          %v2579 = vadd.f32 %v2411, %v2578
          %2580 = vmatprep.mubr.f32.mxu0 0.0
          %2581 = vmatmul.mubr.f32.gmra.mxu0 %v2323
          %v2582 = vpop.f32.mrf.mxu0
          %v2583 = vadd.f32 %v2407, %v2582
          %v2584 = vpop.f32.mrf.mxu0
          %v2585 = vadd.f32 %v2411, %v2584
          %2586 = vmatprep.mubr.f32.mxu0 0.0
          %2587 = vmatmul.mubr.f32.gmra.mxu0 %v2324
          %v2588 = vpop.f32.mrf.mxu0
          %v2589 = vadd.f32 %v2407, %v2588
          %v2590 = vpop.f32.mrf.mxu0
          %v2591 = vadd.f32 %v2411, %v2590
          %2592 = vmatprep.mubr.f32.mxu0 0.0
          %2593 = vmatmul.mubr.f32.gmra.mxu0 %v2325
          %v2594 = vpop.f32.mrf.mxu0
          %v2595 = vadd.f32 %v2407, %v2594
          %v2596 = vpop.f32.mrf.mxu0
          %v2597 = vadd.f32 %v2411, %v2596
          %2598 = vmatprep.mubr.f32.mxu0 0.0
          %2599 = vmatmul.mubr.f32.gmra.mxu0 %v2326
          %v2600 = vpop.f32.mrf.mxu0
          %v2601 = vadd.f32 %v2407, %v2600
          %v2602 = vpop.f32.mrf.mxu0
          %v2603 = vadd.f32 %v2411, %v2602
          %2604 = vmatprep.mubr.f32.mxu0 0.0
          %2605 = vmatmul.mubr.f32.gmra.mxu0 %v2327
          %v2606 = vpop.f32.mrf.mxu0
          %v2607 = vadd.f32 %v2407, %v2606
          %v2608 = vpop.f32.mrf.mxu0
          %v2609 = vadd.f32 %v2411, %v2608
          %2610 = vmatprep.mubr.f32.mxu0 0.0
          %2611 = vmatmul.mubr.f32.gmra.mxu0 %v2328
          %v2612 = vpop.f32.mrf.mxu0
          %v2613 = vadd.f32 %v2407, %v2612
          %v2614 = vpop.f32.mrf.mxu0
          %v2615 = vadd.f32 %v2411, %v2614
          %2616 = vmatprep.mubr.f32.mxu0 0.0
          %2617 = vmatmul.mubr.f32.gmra.mxu0 %v2329
          %v2618 = vpop.f32.mrf.mxu0
          %v2619 = vadd.f32 %v2407, %v2618
          %v2620 = vpop.f32.mrf.mxu0
          %v2621 = vadd.f32 %v2411, %v2620
          %2622 = vmatprep.mubr.f32.mxu0 0.0
          %2623 = vmatmul.mubr.f32.gmra.mxu0 %v2330
          %v2624 = vpop.f32.mrf.mxu0
          %v2625 = vadd.f32 %v2407, %v2624
          %v2626 = vpop.f32.mrf.mxu0
          %v2627 = vadd.f32 %v2411, %v2626
          %2628 = vmatprep.mubr.f32.mxu0 0.0
          %2629 = vmatmul.mubr.f32.gmra.mxu0 %v2331
          %v2630 = vpop.f32.mrf.mxu0
          %v2631 = vadd.f32 %v2407, %v2630
          %v2632 = vpop.f32.mrf.mxu0
          %v2633 = vadd.f32 %v2411, %v2632
          %2634 = vmatprep.mubr.f32.mxu0 0.0
          %2635 = vmatmul.mubr.f32.gmra.mxu0 %v2332
          %v2636 = vpop.f32.mrf.mxu0
          %v2637 = vadd.f32 %v2407, %v2636
          %v2638 = vpop.f32.mrf.mxu0
          %v2639 = vadd.f32 %v2411, %v2638
          %2640 = vmatprep.mubr.f32.mxu0 0.0
          %2641 = vmatmul.mubr.f32.gmra.mxu0 %v2333
          %v2642 = vpop.f32.mrf.mxu0
          %v2643 = vadd.f32 %v2407, %v2642
          %v2644 = vpop.f32.mrf.mxu0
          %v2645 = vadd.f32 %v2411, %v2644
          %2646 = vmatprep.mubr.f32.mxu0 0.0
          %2647 = vmatmul.mubr.f32.gmra.mxu0 %v2334
          %v2648 = vpop.f32.mrf.mxu0
          %v2649 = vadd.f32 %v2407, %v2648
          %v2650 = vpop.f32.mrf.mxu0
          %v2651 = vadd.f32 %v2411, %v2650
          %2652 = vmatprep.mubr.f32.mxu0 0.0
          %2653 = vmatmul.mubr.f32.gmra.mxu0 %v2335
          %v2654 = vpop.f32.mrf.mxu0
          %v2655 = vadd.f32 %v2407, %v2654
          %v2656 = vpop.f32.mrf.mxu0
          %v2657 = vadd.f32 %v2411, %v2656
          %2658 = vmatprep.mubr.f32.mxu0 0.0
          %2659 = vmatmul.mubr.f32.gmra.mxu0 %v2336
          %v2660 = vpop.f32.mrf.mxu0
          %v2661 = vadd.f32 %v2407, %v2660
          %v2662 = vpop.f32.mrf.mxu0
          %v2663 = vadd.f32 %v2411, %v2662
          %2664 = vmatprep.mubr.f32.mxu0 0.0
          %2665 = vmatmul.mubr.f32.gmra.mxu0 %v2337
          %v2666 = vpop.f32.mrf.mxu0
          %v2667 = vadd.f32 %v2407, %v2666
          %v2668 = vpop.f32.mrf.mxu0
          %v2669 = vadd.f32 %v2411, %v2668
          %2670 = vmatprep.mubr.f32.mxu0 0.0
          %2671 = vmatmul.mubr.f32.gmra.mxu0 %v2338
          %v2672 = vpop.f32.mrf.mxu0
          %v2673 = vadd.f32 %v2407, %v2672
          %v2674 = vpop.f32.mrf.mxu0
          %v2675 = vadd.f32 %v2411, %v2674
          %2676 = vmatprep.mubr.f32.mxu0 0.0
          %2677 = vmatmul.mubr.f32.gmra.mxu0 %v2339
          %v2678 = vpop.f32.mrf.mxu0
          %v2679 = vadd.f32 %v2407, %v2678
          %v2680 = vpop.f32.mrf.mxu0
          %v2681 = vadd.f32 %v2411, %v2680
          %2682 = vmatprep.mubr.f32.mxu0 0.0
          %2683 = vmatmul.mubr.f32.gmra.mxu0 %v2340
          %v2684 = vpop.f32.mrf.mxu0
          %v2685 = vadd.f32 %v2407, %v2684
          %v2686 = vpop.f32.mrf.mxu0
          %v2687 = vadd.f32 %v2411, %v2686
          %2688 = vmatprep.mubr.f32.mxu0 0.0
          %2689 = vmatmul.mubr.f32.gmra.mxu0 %v2341
          %v2690 = vpop.f32.mrf.mxu0
          %v2691 = vadd.f32 %v2407, %v2690
          %v2692 = vpop.f32.mrf.mxu0
          %v2693 = vadd.f32 %v2411, %v2692
          %2694 = vmatprep.mubr.f32.mxu0 0.0
          %2695 = vmatmul.mubr.f32.gmra.mxu0 %v2342
          %v2696 = vpop.f32.mrf.mxu0
          %v2697 = vadd.f32 %v2407, %v2696
          %v2698 = vpop.f32.mrf.mxu0
          %v2699 = vadd.f32 %v2411, %v2698
          %2700 = vmatprep.mubr.f32.mxu0 0.0
          %2701 = vmatmul.mubr.f32.gmra.mxu0 %v2343
          %v2702 = vpop.f32.mrf.mxu0
          %v2703 = vadd.f32 %v2407, %v2702
          %v2704 = vpop.f32.mrf.mxu0
          %v2705 = vadd.f32 %v2411, %v2704
          %2706 = vmatprep.mubr.f32.mxu0 0.0
          %2707 = vmatmul.mubr.f32.gmra.mxu0 %v2344
          %v2708 = vpop.f32.mrf.mxu0
          %v2709 = vadd.f32 %v2407, %v2708
          %v2710 = vpop.f32.mrf.mxu0
          %v2711 = vadd.f32 %v2411, %v2710
          %2712 = vmatprep.mubr.f32.mxu0 0.0
          %2713 = vmatmul.mubr.f32.gmra.mxu0 %v2345
          %v2714 = vpop.f32.mrf.mxu0
          %v2715 = vadd.f32 %v2407, %v2714
          %v2716 = vpop.f32.mrf.mxu0
          %v2717 = vadd.f32 %v2411, %v2716
          %2718 = vmatprep.mubr.f32.mxu0 0.0
          %2719 = vmatmul.mubr.f32.gmra.mxu0 %v2346
          %v2720 = vpop.f32.mrf.mxu0
          %v2721 = vadd.f32 %v2407, %v2720
          %v2722 = vpop.f32.mrf.mxu0
          %v2723 = vadd.f32 %v2411, %v2722
          %2724 = vmatprep.mubr.f32.mxu0 0.0
          %2725 = vmatmul.mubr.f32.gmra.mxu0 %v2347
          %v2726 = vpop.f32.mrf.mxu0
          %v2727 = vadd.f32 %v2407, %v2726
          %v2728 = vpop.f32.mrf.mxu0
          %v2729 = vadd.f32 %v2411, %v2728
          %2730 = vmatprep.mubr.f32.mxu0 0.0
          %2731 = vmatmul.mubr.f32.gmra.mxu0 %v2348
          %v2732 = vpop.f32.mrf.mxu0
          %v2733 = vadd.f32 %v2407, %v2732
          %v2734 = vpop.f32.mrf.mxu0
          %v2735 = vadd.f32 %v2411, %v2734
          %2736 = vmatprep.mubr.f32.mxu0 0.0
          %2737 = vmatmul.mubr.f32.gmra.mxu0 %v2349
          %v2738 = vpop.f32.mrf.mxu0
          %v2739 = vadd.f32 %v2407, %v2738
          %v2740 = vpop.f32.mrf.mxu0
          %v2741 = vadd.f32 %v2411, %v2740
          %2742 = vmatprep.mubr.f32.mxu0 0.0
          %2743 = vmatmul.mubr.f32.gmra.mxu0 %v2350
          %v2744 = vpop.f32.mrf.mxu0
          %v2745 = vadd.f32 %v2407, %v2744
          %v2746 = vpop.f32.mrf.mxu0
          %v2747 = vadd.f32 %v2411, %v2746
          %2748 = vmatprep.mubr.f32.mxu0 0.0
          %2749 = vmatmul.mubr.f32.gmra.mxu0 %v2351
          %v2750 = vpop.f32.mrf.mxu0
          %v2751 = vadd.f32 %v2407, %v2750
          %v2752 = vpop.f32.mrf.mxu0
          %v2753 = vadd.f32 %v2411, %v2752
          %2754 = vmatprep.mubr.f32.mxu0 0.0
          %2755 = vmatmul.mubr.f32.gmra.mxu0 %v2352
          %v2756 = vpop.f32.mrf.mxu0
          %v2757 = vadd.f32 %v2407, %v2756
          %v2758 = vpop.f32.mrf.mxu0
          %v2759 = vadd.f32 %v2411, %v2758
          %2760 = vmatprep.mubr.f32.mxu0 0.0
          %2761 = vmatmul.mubr.f32.gmra.mxu0 %v2353
          %v2762 = vpop.f32.mrf.mxu0
          %v2763 = vadd.f32 %v2407, %v2762
          %v2764 = vpop.f32.mrf.mxu0
          %v2765 = vadd.f32 %v2411, %v2764
          %2766 = vmatprep.mubr.f32.mxu0 0.0
          %2767 = vmatmul.mubr.f32.gmra.mxu0 %v2354
          %v2768 = vpop.f32.mrf.mxu0
          %v2769 = vadd.f32 %v2407, %v2768
          %v2770 = vpop.f32.mrf.mxu0
          %v2771 = vadd.f32 %v2411, %v2770
          %2772 = vmatprep.mubr.f32.mxu0 0.0
          %2773 = vmatmul.mubr.f32.gmra.mxu0 %v2355
          %v2774 = vpop.f32.mrf.mxu0
          %v2775 = vadd.f32 %v2407, %v2774
          %v2776 = vpop.f32.mrf.mxu0
          %v2777 = vadd.f32 %v2411, %v2776
          %2778 = vmatprep.mubr.f32.mxu0 0.0
          %2779 = vmatmul.mubr.f32.gmra.mxu0 %v2356
          %v2780 = vpop.f32.mrf.mxu0
          %v2781 = vadd.f32 %v2407, %v2780
          %v2782 = vpop.f32.mrf.mxu0
          %v2783 = vadd.f32 %v2411, %v2782
          %2784 = vmatprep.mubr.f32.mxu0 0.0
          %2785 = vmatmul.mubr.f32.gmra.mxu0 %v2357
          %v2786 = vpop.f32.mrf.mxu0
          %v2787 = vadd.f32 %v2407, %v2786
          %v2788 = vpop.f32.mrf.mxu0
          %v2789 = vadd.f32 %v2411, %v2788
          %2790 = vmatprep.mubr.f32.mxu0 0.0
          %2791 = vmatmul.mubr.f32.gmra.mxu0 %v2358
          %v2792 = vpop.f32.mrf.mxu0
          %v2793 = vadd.f32 %v2407, %v2792
          %v2794 = vpop.f32.mrf.mxu0
          %v2795 = vadd.f32 %v2411, %v2794
          %2796 = vmatprep.mubr.f32.mxu0 0.0
          %2797 = vmatmul.mubr.f32.gmra.mxu0 %v2359
          %v2798 = vpop.f32.mrf.mxu0
          %v2799 = vadd.f32 %v2407, %v2798
          %v2800 = vpop.f32.mrf.mxu0
          %v2801 = vadd.f32 %v2411, %v2800
          %2802 = vmatprep.mubr.f32.mxu0 0.0
          %2803 = vmatmul.mubr.f32.gmra.mxu0 %v2360
          %v2804 = vpop.f32.mrf.mxu0
          %v2805 = vadd.f32 %v2407, %v2804
          %v2806 = vpop.f32.mrf.mxu0
          %v2807 = vadd.f32 %v2411, %v2806
          %2808 = vmatprep.mubr.f32.mxu0 0.0
          %2809 = vmatmul.mubr.f32.gmra.mxu0 %v2361
          %v2810 = vpop.f32.mrf.mxu0
          %v2811 = vadd.f32 %v2407, %v2810
          %v2812 = vpop.f32.mrf.mxu0
          %v2813 = vadd.f32 %v2411, %v2812
          %2814 = vmatprep.mubr.f32.mxu0 0.0
          %2815 = vmatmul.mubr.f32.gmra.mxu0 %v2362
          %v2816 = vpop.f32.mrf.mxu0
          %v2817 = vadd.f32 %v2407, %v2816
          %v2818 = vpop.f32.mrf.mxu0
          %v2819 = vadd.f32 %v2411, %v2818
          %2820 = vmatprep.mubr.f32.mxu0 0.0
          %2821 = vmatmul.mubr.f32.gmra.mxu0 %v2363
          %v2822 = vpop.f32.mrf.mxu0
          %v2823 = vadd.f32 %v2407, %v2822
          %v2824 = vpop.f32.mrf.mxu0
          %v2825 = vadd.f32 %v2411, %v2824
          %2826 = vmatprep.mubr.f32.mxu0 0.0
          %2827 = vmatmul.mubr.f32.gmra.mxu0 %v2364
          %v2828 = vpop.f32.mrf.mxu0
          %v2829 = vadd.f32 %v2407, %v2828
          %v2830 = vpop.f32.mrf.mxu0
          %v2831 = vadd.f32 %v2411, %v2830
          %2832 = vmatprep.mubr.f32.mxu0 0.0
          %2833 = vmatmul.mubr.f32.gmra.mxu0 %v2365
          %v2834 = vpop.f32.mrf.mxu0
          %v2835 = vadd.f32 %v2407, %v2834
          %v2836 = vpop.f32.mrf.mxu0
          %v2837 = vadd.f32 %v2411, %v2836
          %2838 = vmatprep.mubr.f32.mxu0 0.0
          %2839 = vmatmul.mubr.f32.gmra.mxu0 %v2366
          %v2840 = vpop.f32.mrf.mxu0
          %v2841 = vadd.f32 %v2407, %v2840
          %v2842 = vpop.f32.mrf.mxu0
          %v2843 = vadd.f32 %v2411, %v2842
          %2844 = vmatprep.mubr.f32.mxu0 0.0
          %2845 = vmatmul.mubr.f32.gmra.mxu0 %v2367
          %v2846 = vpop.f32.mrf.mxu0
          %v2847 = vadd.f32 %v2407, %v2846
          %v2848 = vpop.f32.mrf.mxu0
          %v2849 = vadd.f32 %v2411, %v2848
          %2850 = vmatprep.mubr.f32.mxu0 0.0
          %2851 = vmatmul.mubr.f32.gmra.mxu0 %v2368
          %v2852 = vpop.f32.mrf.mxu0
          %v2853 = vadd.f32 %v2407, %v2852
          %v2854 = vpop.f32.mrf.mxu0
          %v2855 = vadd.f32 %v2411, %v2854
          %2856 = vmatprep.mubr.f32.mxu0 0.0
          %2857 = vmatmul.mubr.f32.gmra.mxu0 %v2369
          %v2858 = vpop.f32.mrf.mxu0
          %v2859 = vadd.f32 %v2407, %v2858
          %v2860 = vpop.f32.mrf.mxu0
          %v2861 = vadd.f32 %v2411, %v2860
          %2862 = vdwg.mxu0
          %v2863 = vmax.f32 %v2481, 0.0
          %v2864 = vmax.f32 %v2483, 0.0
          %v2865 = vmax.f32 %v2487, 0.0
          %v2866 = vmax.f32 %v2489, 0.0
          %v2867 = vmax.f32 %v2493, 0.0
          %v2868 = vmax.f32 %v2495, 0.0
          %v2869 = vmax.f32 %v2499, 0.0
          %v2870 = vmax.f32 %v2501, 0.0
          %v2871 = vmax.f32 %v2505, 0.0
          %v2872 = vmax.f32 %v2507, 0.0
          %v2873 = vmax.f32 %v2511, 0.0
          %v2874 = vmax.f32 %v2513, 0.0
          %v2875 = vmax.f32 %v2517, 0.0
          %v2876 = vmax.f32 %v2519, 0.0
          %v2877 = vmax.f32 %v2523, 0.0
          %v2878 = vmax.f32 %v2525, 0.0
          %v2879 = vmax.f32 %v2529, 0.0
          %v2880 = vmax.f32 %v2531, 0.0
          %v2881 = vmax.f32 %v2535, 0.0
          %v2882 = vmax.f32 %v2537, 0.0
          %v2883 = vmax.f32 %v2541, 0.0
          %v2884 = vmax.f32 %v2543, 0.0
          %v2885 = vmax.f32 %v2547, 0.0
          %v2886 = vmax.f32 %v2549, 0.0
          %v2887 = vmax.f32 %v2553, 0.0
          %v2888 = vmax.f32 %v2555, 0.0
          %v2889 = vmax.f32 %v2559, 0.0
          %v2890 = vmax.f32 %v2561, 0.0
          %v2891 = vmax.f32 %v2565, 0.0
          %v2892 = vmax.f32 %v2567, 0.0
          %v2893 = vmax.f32 %v2571, 0.0
          %v2894 = vmax.f32 %v2573, 0.0
          %v2895 = vmax.f32 %v2577, 0.0
          %v2896 = vmax.f32 %v2579, 0.0
          %v2897 = vmax.f32 %v2583, 0.0
          %v2898 = vmax.f32 %v2585, 0.0
          %v2899 = vmax.f32 %v2589, 0.0
          %v2900 = vmax.f32 %v2591, 0.0
          %v2901 = vmax.f32 %v2595, 0.0
          %v2902 = vmax.f32 %v2597, 0.0
          %v2903 = vmax.f32 %v2601, 0.0
          %v2904 = vmax.f32 %v2603, 0.0
          %v2905 = vmax.f32 %v2607, 0.0
          %v2906 = vmax.f32 %v2609, 0.0
          %v2907 = vmax.f32 %v2613, 0.0
          %v2908 = vmax.f32 %v2615, 0.0
          %v2909 = vmax.f32 %v2619, 0.0
          %v2910 = vmax.f32 %v2621, 0.0
          %v2911 = vmax.f32 %v2625, 0.0
          %v2912 = vmax.f32 %v2627, 0.0
          %v2913 = vmax.f32 %v2631, 0.0
          %v2914 = vmax.f32 %v2633, 0.0
          %v2915 = vmax.f32 %v2637, 0.0
          %v2916 = vmax.f32 %v2639, 0.0
          %v2917 = vmax.f32 %v2643, 0.0
          %v2918 = vmax.f32 %v2645, 0.0
          %v2919 = vmax.f32 %v2649, 0.0
          %v2920 = vmax.f32 %v2651, 0.0
          %v2921 = vmax.f32 %v2655, 0.0
          %v2922 = vmax.f32 %v2657, 0.0
          %v2923 = vmax.f32 %v2661, 0.0
          %v2924 = vmax.f32 %v2663, 0.0
          %v2925 = vmax.f32 %v2667, 0.0
          %v2926 = vmax.f32 %v2669, 0.0
          %v2927 = vmax.f32 %v2673, 0.0
          %v2928 = vmax.f32 %v2675, 0.0
          %v2929 = vmax.f32 %v2679, 0.0
          %v2930 = vmax.f32 %v2681, 0.0
          %v2931 = vmax.f32 %v2685, 0.0
          %v2932 = vmax.f32 %v2687, 0.0
          %v2933 = vmax.f32 %v2691, 0.0
          %v2934 = vmax.f32 %v2693, 0.0
          %v2935 = vmax.f32 %v2697, 0.0
          %v2936 = vmax.f32 %v2699, 0.0
          %v2937 = vmax.f32 %v2703, 0.0
          %v2938 = vmax.f32 %v2705, 0.0
          %v2939 = vmax.f32 %v2709, 0.0
          %v2940 = vmax.f32 %v2711, 0.0
          %v2941 = vmax.f32 %v2715, 0.0
          %v2942 = vmax.f32 %v2717, 0.0
          %v2943 = vmax.f32 %v2721, 0.0
          %v2944 = vmax.f32 %v2723, 0.0
          %v2945 = vmax.f32 %v2727, 0.0
          %v2946 = vmax.f32 %v2729, 0.0
          %v2947 = vmax.f32 %v2733, 0.0
          %v2948 = vmax.f32 %v2735, 0.0
          %v2949 = vmax.f32 %v2739, 0.0
          %v2950 = vmax.f32 %v2741, 0.0
          %v2951 = vmax.f32 %v2745, 0.0
          %v2952 = vmax.f32 %v2747, 0.0
          %v2953 = vmax.f32 %v2751, 0.0
          %v2954 = vmax.f32 %v2753, 0.0
          %v2955 = vmax.f32 %v2757, 0.0
          %v2956 = vmax.f32 %v2759, 0.0
          %v2957 = vmax.f32 %v2763, 0.0
          %v2958 = vmax.f32 %v2765, 0.0
          %v2959 = vmax.f32 %v2769, 0.0
          %v2960 = vmax.f32 %v2771, 0.0
          %v2961 = vmax.f32 %v2775, 0.0
          %v2962 = vmax.f32 %v2777, 0.0
          %v2963 = vmax.f32 %v2781, 0.0
          %v2964 = vmax.f32 %v2783, 0.0
          %v2965 = vmax.f32 %v2787, 0.0
          %v2966 = vmax.f32 %v2789, 0.0
          %v2967 = vmax.f32 %v2793, 0.0
          %v2968 = vmax.f32 %v2795, 0.0
          %v2969 = vmax.f32 %v2799, 0.0
          %v2970 = vmax.f32 %v2801, 0.0
          %v2971 = vmax.f32 %v2805, 0.0
          %v2972 = vmax.f32 %v2807, 0.0
          %v2973 = vmax.f32 %v2811, 0.0
          %v2974 = vmax.f32 %v2813, 0.0
          %v2975 = vmax.f32 %v2817, 0.0
          %v2976 = vmax.f32 %v2819, 0.0
          %v2977 = vmax.f32 %v2823, 0.0
          %v2978 = vmax.f32 %v2825, 0.0
          %v2979 = vmax.f32 %v2829, 0.0
          %v2980 = vmax.f32 %v2831, 0.0
          %v2981 = vmax.f32 %v2835, 0.0
          %v2982 = vmax.f32 %v2837, 0.0
          %v2983 = vmax.f32 %v2841, 0.0
          %v2984 = vmax.f32 %v2843, 0.0
          %v2985 = vmax.f32 %v2847, 0.0
          %v2986 = vmax.f32 %v2849, 0.0
          %v2987 = vmax.f32 %v2853, 0.0
          %v2988 = vmax.f32 %v2855, 0.0
          %v2989 = vmax.f32 %v2859, 0.0
          %v2990 = vmax.f32 %v2861, 0.0
          %v2991 = vld [vmem:[#allocation14] sm:$0xff]
          %v2992 = vld [vmem:[#allocation14 + $0x8] sm:$0xff]
          %v2993 = vld [vmem:[#allocation14 + $0x10] sm:$0xff]
          %v2994 = vld [vmem:[#allocation14 + $0x18] sm:$0xff]
          %v2995 = vld [vmem:[#allocation14 + $0x20] sm:$0xff]
          %v2996 = vld [vmem:[#allocation14 + $0x28] sm:$0xff]
          %v2997 = vld [vmem:[#allocation14 + $0x30] sm:$0xff]
          %v2998 = vld [vmem:[#allocation14 + $0x38] sm:$0xff]
          %v2999 = vld [vmem:[#allocation14 + $0x40] sm:$0xff]
          %v3000 = vld [vmem:[#allocation14 + $0x48] sm:$0xff]
          %v3001 = vld [vmem:[#allocation14 + $0x50] sm:$0xff]
          %v3002 = vld [vmem:[#allocation14 + $0x58] sm:$0xff]
          %v3003 = vld [vmem:[#allocation14 + $0x60] sm:$0xff]
          %v3004 = vld [vmem:[#allocation14 + $0x68] sm:$0xff]
          %v3005 = vld [vmem:[#allocation14 + $0x70] sm:$0xff]
          %v3006 = vld [vmem:[#allocation14 + $0x78] sm:$0xff]
          %v3007 = vld [vmem:[#allocation14 + $0x80] sm:$0xff]
          %v3008 = vld [vmem:[#allocation14 + $0x88] sm:$0xff]
          %v3009 = vld [vmem:[#allocation14 + $0x90] sm:$0xff]
          %v3010 = vld [vmem:[#allocation14 + $0x98] sm:$0xff]
          %v3011 = vld [vmem:[#allocation14 + $0xa0] sm:$0xff]
          %v3012 = vld [vmem:[#allocation14 + $0xa8] sm:$0xff]
          %v3013 = vld [vmem:[#allocation14 + $0xb0] sm:$0xff]
          %v3014 = vld [vmem:[#allocation14 + $0xb8] sm:$0xff]
          %v3015 = vld [vmem:[#allocation14 + $0xc0] sm:$0xff]
          %v3016 = vld [vmem:[#allocation14 + $0xc8] sm:$0xff]
          %v3017 = vld [vmem:[#allocation14 + $0xd0] sm:$0xff]
          %v3018 = vld [vmem:[#allocation14 + $0xd8] sm:$0xff]
          %v3019 = vld [vmem:[#allocation14 + $0xe0] sm:$0xff]
          %v3020 = vld [vmem:[#allocation14 + $0xe8] sm:$0xff]
          %v3021 = vld [vmem:[#allocation14 + $0xf0] sm:$0xff]
          %v3022 = vld [vmem:[#allocation14 + $0xf8] sm:$0xff]
          %v3023 = vld [vmem:[#allocation15] sm:$0x1]
          %v3025 = vlaneseq
          %v3026 = vshrl.u32 %v3025, 7
          %v3027 = vsub.s32 0, %v3026
          %v3028 = vrot.slane %v3023, %v3027
          %3030 = vmatprep.subr.mxu0 0.0
          %3031 = vmatpush1.msra.mxu0 %v3006
          %3032 = vmatprep.subr.mxu0 0.0
          %3033 = vmatpush1.msra.mxu0 %v3005
          %3034 = vmatprep.subr.mxu0 0.0
          %3035 = vmatpush1.msra.mxu0 %v3004
          %3036 = vmatprep.subr.mxu0 0.0
          %3037 = vmatpush1.msra.mxu0 %v3003
          %3038 = vmatprep.subr.mxu0 0.0
          %3039 = vmatpush1.msra.mxu0 %v3002
          %3040 = vmatprep.subr.mxu0 0.0
          %3041 = vmatpush1.msra.mxu0 %v3001
          %3042 = vmatprep.subr.mxu0 0.0
          %3043 = vmatpush1.msra.mxu0 %v3000
          %3044 = vmatprep.subr.mxu0 0.0
          %3045 = vmatpush1.msra.mxu0 %v2999
          %3046 = vmatprep.subr.mxu0 0.0
          %3047 = vmatpush1.msra.mxu0 %v2998
          %3048 = vmatprep.subr.mxu0 0.0
          %3049 = vmatpush1.msra.mxu0 %v2997
          %3050 = vmatprep.subr.mxu0 0.0
          %3051 = vmatpush1.msra.mxu0 %v2996
          %3052 = vmatprep.subr.mxu0 0.0
          %3053 = vmatpush1.msra.mxu0 %v2995
          %3054 = vmatprep.subr.mxu0 0.0
          %3055 = vmatpush1.msra.mxu0 %v2994
          %3056 = vmatprep.subr.mxu0 0.0
          %3057 = vmatpush1.msra.mxu0 %v2993
          %3058 = vmatprep.subr.mxu0 0.0
          %3059 = vmatpush1.msra.mxu0 %v2992
          %3060 = vmatprep.subr.mxu0 0.0
          %3061 = vmatpush1.msra.mxu0 %v2991
          %3062 = vmatprep.subr.mxu0 0.0
          %3063 = vmatpush2.msra.mxu0 %v3022
          %3064 = vmatprep.subr.mxu0 0.0
          %3065 = vmatpush2.msra.mxu0 %v3021
          %3066 = vmatprep.subr.mxu0 0.0
          %3067 = vmatpush2.msra.mxu0 %v3020
          %3068 = vmatprep.subr.mxu0 0.0
          %3069 = vmatpush2.msra.mxu0 %v3019
          %3070 = vmatprep.subr.mxu0 0.0
          %3071 = vmatpush2.msra.mxu0 %v3018
          %3072 = vmatprep.subr.mxu0 0.0
          %3073 = vmatpush2.msra.mxu0 %v3017
          %3074 = vmatprep.subr.mxu0 0.0
          %3075 = vmatpush2.msra.mxu0 %v3016
          %3076 = vmatprep.subr.mxu0 0.0
          %3077 = vmatpush2.msra.mxu0 %v3015
          %3078 = vmatprep.subr.mxu0 0.0
          %3079 = vmatpush2.msra.mxu0 %v3014
          %3080 = vmatprep.subr.mxu0 0.0
          %3081 = vmatpush2.msra.mxu0 %v3013
          %3082 = vmatprep.subr.mxu0 0.0
          %3083 = vmatpush2.msra.mxu0 %v3012
          %3084 = vmatprep.subr.mxu0 0.0
          %3085 = vmatpush2.msra.mxu0 %v3011
          %3086 = vmatprep.subr.mxu0 0.0
          %3087 = vmatpush2.msra.mxu0 %v3010
          %3088 = vmatprep.subr.mxu0 0.0
          %3089 = vmatpush2.msra.mxu0 %v3009
          %3090 = vmatprep.subr.mxu0 0.0
          %3091 = vmatpush2.msra.mxu0 %v3008
          %3092 = vmatprep.subr.mxu0 0.0
          %3093 = vmatpush2.msra.mxu0 %v3007
          %3094 = vmatprep.mubr.f32.mxu0 %v2864
          %3095 = vmatmul.mubr.f32.gmra.mxu0 %v2863
          %v3096 = vpop.f32.mrf.mxu0
          %v3097 = vadd.f32 %v3028, %v3096
          %v3098 = vpop.f32.mrf.mxu0
          %3099 = vmatprep.mubr.f32.mxu0 %v2866
          %3100 = vmatmul.mubr.f32.gmra.mxu0 %v2865
          %v3101 = vpop.f32.mrf.mxu0
          %v3102 = vadd.f32 %v3028, %v3101
          %v3103 = vpop.f32.mrf.mxu0
          %3104 = vmatprep.mubr.f32.mxu0 %v2868
          %3105 = vmatmul.mubr.f32.gmra.mxu0 %v2867
          %v3106 = vpop.f32.mrf.mxu0
          %v3107 = vadd.f32 %v3028, %v3106
          %v3108 = vpop.f32.mrf.mxu0
          %3109 = vmatprep.mubr.f32.mxu0 %v2870
          %3110 = vmatmul.mubr.f32.gmra.mxu0 %v2869
          %v3111 = vpop.f32.mrf.mxu0
          %v3112 = vadd.f32 %v3028, %v3111
          %v3113 = vpop.f32.mrf.mxu0
          %3114 = vmatprep.mubr.f32.mxu0 %v2872
          %3115 = vmatmul.mubr.f32.gmra.mxu0 %v2871
          %v3116 = vpop.f32.mrf.mxu0
          %v3117 = vadd.f32 %v3028, %v3116
          %v3118 = vpop.f32.mrf.mxu0
          %3119 = vmatprep.mubr.f32.mxu0 %v2874
          %3120 = vmatmul.mubr.f32.gmra.mxu0 %v2873
          %v3121 = vpop.f32.mrf.mxu0
          %v3122 = vadd.f32 %v3028, %v3121
          %v3123 = vpop.f32.mrf.mxu0
          %3124 = vmatprep.mubr.f32.mxu0 %v2876
          %3125 = vmatmul.mubr.f32.gmra.mxu0 %v2875
          %v3126 = vpop.f32.mrf.mxu0
          %v3127 = vadd.f32 %v3028, %v3126
          %v3128 = vpop.f32.mrf.mxu0
          %3129 = vmatprep.mubr.f32.mxu0 %v2878
          %3130 = vmatmul.mubr.f32.gmra.mxu0 %v2877
          %v3131 = vpop.f32.mrf.mxu0
          %v3132 = vadd.f32 %v3028, %v3131
          %v3133 = vpop.f32.mrf.mxu0
          %3134 = vmatprep.mubr.f32.mxu0 %v2880
          %3135 = vmatmul.mubr.f32.gmra.mxu0 %v2879
          %v3136 = vpop.f32.mrf.mxu0
          %v3137 = vadd.f32 %v3028, %v3136
          %v3138 = vpop.f32.mrf.mxu0
          %3139 = vmatprep.mubr.f32.mxu0 %v2882
          %3140 = vmatmul.mubr.f32.gmra.mxu0 %v2881
          %v3141 = vpop.f32.mrf.mxu0
          %v3142 = vadd.f32 %v3028, %v3141
          %v3143 = vpop.f32.mrf.mxu0
          %3144 = vmatprep.mubr.f32.mxu0 %v2884
          %3145 = vmatmul.mubr.f32.gmra.mxu0 %v2883
          %v3146 = vpop.f32.mrf.mxu0
          %v3147 = vadd.f32 %v3028, %v3146
          %v3148 = vpop.f32.mrf.mxu0
          %3149 = vmatprep.mubr.f32.mxu0 %v2886
          %3150 = vmatmul.mubr.f32.gmra.mxu0 %v2885
          %v3151 = vpop.f32.mrf.mxu0
          %v3152 = vadd.f32 %v3028, %v3151
          %v3153 = vpop.f32.mrf.mxu0
          %3154 = vmatprep.mubr.f32.mxu0 %v2888
          %3155 = vmatmul.mubr.f32.gmra.mxu0 %v2887
          %v3156 = vpop.f32.mrf.mxu0
          %v3157 = vadd.f32 %v3028, %v3156
          %v3158 = vpop.f32.mrf.mxu0
          %3159 = vmatprep.mubr.f32.mxu0 %v2890
          %3160 = vmatmul.mubr.f32.gmra.mxu0 %v2889
          %v3161 = vpop.f32.mrf.mxu0
          %v3162 = vadd.f32 %v3028, %v3161
          %v3163 = vpop.f32.mrf.mxu0
          %3164 = vmatprep.mubr.f32.mxu0 %v2892
          %3165 = vmatmul.mubr.f32.gmra.mxu0 %v2891
          %v3166 = vpop.f32.mrf.mxu0
          %v3167 = vadd.f32 %v3028, %v3166
          %v3168 = vpop.f32.mrf.mxu0
          %3169 = vmatprep.mubr.f32.mxu0 %v2894
          %3170 = vmatmul.mubr.f32.gmra.mxu0 %v2893
          %v3171 = vpop.f32.mrf.mxu0
          %v3172 = vadd.f32 %v3028, %v3171
          %v3173 = vpop.f32.mrf.mxu0
          %3174 = vmatprep.mubr.f32.mxu0 %v2896
          %3175 = vmatmul.mubr.f32.gmra.mxu0 %v2895
          %v3176 = vpop.f32.mrf.mxu0
          %v3177 = vadd.f32 %v3028, %v3176
          %v3178 = vpop.f32.mrf.mxu0
          %3179 = vmatprep.mubr.f32.mxu0 %v2898
          %3180 = vmatmul.mubr.f32.gmra.mxu0 %v2897
          %v3181 = vpop.f32.mrf.mxu0
          %v3182 = vadd.f32 %v3028, %v3181
          %v3183 = vpop.f32.mrf.mxu0
          %3184 = vmatprep.mubr.f32.mxu0 %v2900
          %3185 = vmatmul.mubr.f32.gmra.mxu0 %v2899
          %v3186 = vpop.f32.mrf.mxu0
          %v3187 = vadd.f32 %v3028, %v3186
          %v3188 = vpop.f32.mrf.mxu0
          %3189 = vmatprep.mubr.f32.mxu0 %v2902
          %3190 = vmatmul.mubr.f32.gmra.mxu0 %v2901
          %v3191 = vpop.f32.mrf.mxu0
          %v3192 = vadd.f32 %v3028, %v3191
          %v3193 = vpop.f32.mrf.mxu0
          %3194 = vmatprep.mubr.f32.mxu0 %v2904
          %3195 = vmatmul.mubr.f32.gmra.mxu0 %v2903
          %v3196 = vpop.f32.mrf.mxu0
          %v3197 = vadd.f32 %v3028, %v3196
          %v3198 = vpop.f32.mrf.mxu0
          %3199 = vmatprep.mubr.f32.mxu0 %v2906
          %3200 = vmatmul.mubr.f32.gmra.mxu0 %v2905
          %v3201 = vpop.f32.mrf.mxu0
          %v3202 = vadd.f32 %v3028, %v3201
          %v3203 = vpop.f32.mrf.mxu0
          %3204 = vmatprep.mubr.f32.mxu0 %v2908
          %3205 = vmatmul.mubr.f32.gmra.mxu0 %v2907
          %v3206 = vpop.f32.mrf.mxu0
          %v3207 = vadd.f32 %v3028, %v3206
          %v3208 = vpop.f32.mrf.mxu0
          %3209 = vmatprep.mubr.f32.mxu0 %v2910
          %3210 = vmatmul.mubr.f32.gmra.mxu0 %v2909
          %v3211 = vpop.f32.mrf.mxu0
          %v3212 = vadd.f32 %v3028, %v3211
          %v3213 = vpop.f32.mrf.mxu0
          %3214 = vmatprep.mubr.f32.mxu0 %v2912
          %3215 = vmatmul.mubr.f32.gmra.mxu0 %v2911
          %v3216 = vpop.f32.mrf.mxu0
          %v3217 = vadd.f32 %v3028, %v3216
          %v3218 = vpop.f32.mrf.mxu0
          %3219 = vmatprep.mubr.f32.mxu0 %v2914
          %3220 = vmatmul.mubr.f32.gmra.mxu0 %v2913
          %v3221 = vpop.f32.mrf.mxu0
          %v3222 = vadd.f32 %v3028, %v3221
          %v3223 = vpop.f32.mrf.mxu0
          %3224 = vmatprep.mubr.f32.mxu0 %v2916
          %3225 = vmatmul.mubr.f32.gmra.mxu0 %v2915
          %v3226 = vpop.f32.mrf.mxu0
          %v3227 = vadd.f32 %v3028, %v3226
          %v3228 = vpop.f32.mrf.mxu0
          %3229 = vmatprep.mubr.f32.mxu0 %v2918
          %3230 = vmatmul.mubr.f32.gmra.mxu0 %v2917
          %v3231 = vpop.f32.mrf.mxu0
          %v3232 = vadd.f32 %v3028, %v3231
          %v3233 = vpop.f32.mrf.mxu0
          %3234 = vmatprep.mubr.f32.mxu0 %v2920
          %3235 = vmatmul.mubr.f32.gmra.mxu0 %v2919
          %v3236 = vpop.f32.mrf.mxu0
          %v3237 = vadd.f32 %v3028, %v3236
          %v3238 = vpop.f32.mrf.mxu0
          %3239 = vmatprep.mubr.f32.mxu0 %v2922
          %3240 = vmatmul.mubr.f32.gmra.mxu0 %v2921
          %v3241 = vpop.f32.mrf.mxu0
          %v3242 = vadd.f32 %v3028, %v3241
          %v3243 = vpop.f32.mrf.mxu0
          %3244 = vmatprep.mubr.f32.mxu0 %v2924
          %3245 = vmatmul.mubr.f32.gmra.mxu0 %v2923
          %v3246 = vpop.f32.mrf.mxu0
          %v3247 = vadd.f32 %v3028, %v3246
          %v3248 = vpop.f32.mrf.mxu0
          %3249 = vmatprep.mubr.f32.mxu0 %v2926
          %3250 = vmatmul.mubr.f32.gmra.mxu0 %v2925
          %v3251 = vpop.f32.mrf.mxu0
          %v3252 = vadd.f32 %v3028, %v3251
          %v3253 = vpop.f32.mrf.mxu0
          %3254 = vmatprep.mubr.f32.mxu0 %v2928
          %3255 = vmatmul.mubr.f32.gmra.mxu0 %v2927
          %v3256 = vpop.f32.mrf.mxu0
          %v3257 = vadd.f32 %v3028, %v3256
          %v3258 = vpop.f32.mrf.mxu0
          %3259 = vmatprep.mubr.f32.mxu0 %v2930
          %3260 = vmatmul.mubr.f32.gmra.mxu0 %v2929
          %v3261 = vpop.f32.mrf.mxu0
          %v3262 = vadd.f32 %v3028, %v3261
          %v3263 = vpop.f32.mrf.mxu0
          %3264 = vmatprep.mubr.f32.mxu0 %v2932
          %3265 = vmatmul.mubr.f32.gmra.mxu0 %v2931
          %v3266 = vpop.f32.mrf.mxu0
          %v3267 = vadd.f32 %v3028, %v3266
          %v3268 = vpop.f32.mrf.mxu0
          %3269 = vmatprep.mubr.f32.mxu0 %v2934
          %3270 = vmatmul.mubr.f32.gmra.mxu0 %v2933
          %v3271 = vpop.f32.mrf.mxu0
          %v3272 = vadd.f32 %v3028, %v3271
          %v3273 = vpop.f32.mrf.mxu0
          %3274 = vmatprep.mubr.f32.mxu0 %v2936
          %3275 = vmatmul.mubr.f32.gmra.mxu0 %v2935
          %v3276 = vpop.f32.mrf.mxu0
          %v3277 = vadd.f32 %v3028, %v3276
          %v3278 = vpop.f32.mrf.mxu0
          %3279 = vmatprep.mubr.f32.mxu0 %v2938
          %3280 = vmatmul.mubr.f32.gmra.mxu0 %v2937
          %v3281 = vpop.f32.mrf.mxu0
          %v3282 = vadd.f32 %v3028, %v3281
          %v3283 = vpop.f32.mrf.mxu0
          %3284 = vmatprep.mubr.f32.mxu0 %v2940
          %3285 = vmatmul.mubr.f32.gmra.mxu0 %v2939
          %v3286 = vpop.f32.mrf.mxu0
          %v3287 = vadd.f32 %v3028, %v3286
          %v3288 = vpop.f32.mrf.mxu0
          %3289 = vmatprep.mubr.f32.mxu0 %v2942
          %3290 = vmatmul.mubr.f32.gmra.mxu0 %v2941
          %v3291 = vpop.f32.mrf.mxu0
          %v3292 = vadd.f32 %v3028, %v3291
          %v3293 = vpop.f32.mrf.mxu0
          %3294 = vmatprep.mubr.f32.mxu0 %v2944
          %3295 = vmatmul.mubr.f32.gmra.mxu0 %v2943
          %v3296 = vpop.f32.mrf.mxu0
          %v3297 = vadd.f32 %v3028, %v3296
          %v3298 = vpop.f32.mrf.mxu0
          %3299 = vmatprep.mubr.f32.mxu0 %v2946
          %3300 = vmatmul.mubr.f32.gmra.mxu0 %v2945
          %v3301 = vpop.f32.mrf.mxu0
          %v3302 = vadd.f32 %v3028, %v3301
          %v3303 = vpop.f32.mrf.mxu0
          %3304 = vmatprep.mubr.f32.mxu0 %v2948
          %3305 = vmatmul.mubr.f32.gmra.mxu0 %v2947
          %v3306 = vpop.f32.mrf.mxu0
          %v3307 = vadd.f32 %v3028, %v3306
          %v3308 = vpop.f32.mrf.mxu0
          %3309 = vmatprep.mubr.f32.mxu0 %v2950
          %3310 = vmatmul.mubr.f32.gmra.mxu0 %v2949
          %v3311 = vpop.f32.mrf.mxu0
          %v3312 = vadd.f32 %v3028, %v3311
          %v3313 = vpop.f32.mrf.mxu0
          %3314 = vmatprep.mubr.f32.mxu0 %v2952
          %3315 = vmatmul.mubr.f32.gmra.mxu0 %v2951
          %v3316 = vpop.f32.mrf.mxu0
          %v3317 = vadd.f32 %v3028, %v3316
          %v3318 = vpop.f32.mrf.mxu0
          %3319 = vmatprep.mubr.f32.mxu0 %v2954
          %3320 = vmatmul.mubr.f32.gmra.mxu0 %v2953
          %v3321 = vpop.f32.mrf.mxu0
          %v3322 = vadd.f32 %v3028, %v3321
          %v3323 = vpop.f32.mrf.mxu0
          %3324 = vmatprep.mubr.f32.mxu0 %v2956
          %3325 = vmatmul.mubr.f32.gmra.mxu0 %v2955
          %v3326 = vpop.f32.mrf.mxu0
          %v3327 = vadd.f32 %v3028, %v3326
          %v3328 = vpop.f32.mrf.mxu0
          %3329 = vmatprep.mubr.f32.mxu0 %v2958
          %3330 = vmatmul.mubr.f32.gmra.mxu0 %v2957
          %v3331 = vpop.f32.mrf.mxu0
          %v3332 = vadd.f32 %v3028, %v3331
          %v3333 = vpop.f32.mrf.mxu0
          %3334 = vmatprep.mubr.f32.mxu0 %v2960
          %3335 = vmatmul.mubr.f32.gmra.mxu0 %v2959
          %v3336 = vpop.f32.mrf.mxu0
          %v3337 = vadd.f32 %v3028, %v3336
          %v3338 = vpop.f32.mrf.mxu0
          %3339 = vmatprep.mubr.f32.mxu0 %v2962
          %3340 = vmatmul.mubr.f32.gmra.mxu0 %v2961
          %v3341 = vpop.f32.mrf.mxu0
          %v3342 = vadd.f32 %v3028, %v3341
          %v3343 = vpop.f32.mrf.mxu0
          %3344 = vmatprep.mubr.f32.mxu0 %v2964
          %3345 = vmatmul.mubr.f32.gmra.mxu0 %v2963
          %v3346 = vpop.f32.mrf.mxu0
          %v3347 = vadd.f32 %v3028, %v3346
          %v3348 = vpop.f32.mrf.mxu0
          %3349 = vmatprep.mubr.f32.mxu0 %v2966
          %3350 = vmatmul.mubr.f32.gmra.mxu0 %v2965
          %v3351 = vpop.f32.mrf.mxu0
          %v3352 = vadd.f32 %v3028, %v3351
          %v3353 = vpop.f32.mrf.mxu0
          %3354 = vmatprep.mubr.f32.mxu0 %v2968
          %3355 = vmatmul.mubr.f32.gmra.mxu0 %v2967
          %v3356 = vpop.f32.mrf.mxu0
          %v3357 = vadd.f32 %v3028, %v3356
          %v3358 = vpop.f32.mrf.mxu0
          %3359 = vmatprep.mubr.f32.mxu0 %v2970
          %3360 = vmatmul.mubr.f32.gmra.mxu0 %v2969
          %v3361 = vpop.f32.mrf.mxu0
          %v3362 = vadd.f32 %v3028, %v3361
          %v3363 = vpop.f32.mrf.mxu0
          %3364 = vmatprep.mubr.f32.mxu0 %v2972
          %3365 = vmatmul.mubr.f32.gmra.mxu0 %v2971
          %v3366 = vpop.f32.mrf.mxu0
          %v3367 = vadd.f32 %v3028, %v3366
          %v3368 = vpop.f32.mrf.mxu0
          %3369 = vmatprep.mubr.f32.mxu0 %v2974
          %3370 = vmatmul.mubr.f32.gmra.mxu0 %v2973
          %v3371 = vpop.f32.mrf.mxu0
          %v3372 = vadd.f32 %v3028, %v3371
          %v3373 = vpop.f32.mrf.mxu0
          %3374 = vmatprep.mubr.f32.mxu0 %v2976
          %3375 = vmatmul.mubr.f32.gmra.mxu0 %v2975
          %v3376 = vpop.f32.mrf.mxu0
          %v3377 = vadd.f32 %v3028, %v3376
          %v3378 = vpop.f32.mrf.mxu0
          %3379 = vmatprep.mubr.f32.mxu0 %v2978
          %3380 = vmatmul.mubr.f32.gmra.mxu0 %v2977
          %v3381 = vpop.f32.mrf.mxu0
          %v3382 = vadd.f32 %v3028, %v3381
          %v3383 = vpop.f32.mrf.mxu0
          %3384 = vmatprep.mubr.f32.mxu0 %v2980
          %3385 = vmatmul.mubr.f32.gmra.mxu0 %v2979
          %v3386 = vpop.f32.mrf.mxu0
          %v3387 = vadd.f32 %v3028, %v3386
          %v3388 = vpop.f32.mrf.mxu0
          %3389 = vmatprep.mubr.f32.mxu0 %v2982
          %3390 = vmatmul.mubr.f32.gmra.mxu0 %v2981
          %v3391 = vpop.f32.mrf.mxu0
          %v3392 = vadd.f32 %v3028, %v3391
          %v3393 = vpop.f32.mrf.mxu0
          %3394 = vmatprep.mubr.f32.mxu0 %v2984
          %3395 = vmatmul.mubr.f32.gmra.mxu0 %v2983
          %v3396 = vpop.f32.mrf.mxu0
          %v3397 = vadd.f32 %v3028, %v3396
          %v3398 = vpop.f32.mrf.mxu0
          %3399 = vmatprep.mubr.f32.mxu0 %v2986
          %3400 = vmatmul.mubr.f32.gmra.mxu0 %v2985
          %v3401 = vpop.f32.mrf.mxu0
          %v3402 = vadd.f32 %v3028, %v3401
          %v3403 = vpop.f32.mrf.mxu0
          %3404 = vmatprep.mubr.f32.mxu0 %v2988
          %3405 = vmatmul.mubr.f32.gmra.mxu0 %v2987
          %v3406 = vpop.f32.mrf.mxu0
          %v3407 = vadd.f32 %v3028, %v3406
          %v3408 = vpop.f32.mrf.mxu0
          %3409 = vmatprep.mubr.f32.mxu0 %v2990
          %3410 = vmatmul.mubr.f32.gmra.mxu0 %v2989
          %v3411 = vpop.f32.mrf.mxu0
          %v3412 = vadd.f32 %v3028, %v3411
          %v3413 = vpop.f32.mrf.mxu0
          %3414 = vdwg.mxu0
          %3415 = vst [vmem:[%s484] sm:$0xff] %v3097
          %3416 = vst [vmem:[%s484 + $0x8] sm:$0xff] %v3102
          %3417 = vst [vmem:[%s484 + $0x10] sm:$0xff] %v3107
          %3418 = vst [vmem:[%s484 + $0x18] sm:$0xff] %v3112
          %3419 = vst [vmem:[%s484 + $0x20] sm:$0xff] %v3117
          %3420 = vst [vmem:[%s484 + $0x28] sm:$0xff] %v3122
          %3421 = vst [vmem:[%s484 + $0x30] sm:$0xff] %v3127
          %3422 = vst [vmem:[%s484 + $0x38] sm:$0xff] %v3132
          %3423 = vst [vmem:[%s484 + $0x40] sm:$0xff] %v3137
          %3424 = vst [vmem:[%s484 + $0x48] sm:$0xff] %v3142
          %3425 = vst [vmem:[%s484 + $0x50] sm:$0xff] %v3147
          %3426 = vst [vmem:[%s484 + $0x58] sm:$0xff] %v3152
          %3427 = vst [vmem:[%s484 + $0x60] sm:$0xff] %v3157
          %3428 = vst [vmem:[%s484 + $0x68] sm:$0xff] %v3162
          %3429 = vst [vmem:[%s484 + $0x70] sm:$0xff] %v3167
          %3430 = vst [vmem:[%s484 + $0x78] sm:$0xff] %v3172
          %3431 = vst [vmem:[%s484 + $0x80] sm:$0xff] %v3177
          %3432 = vst [vmem:[%s484 + $0x88] sm:$0xff] %v3182
          %3433 = vst [vmem:[%s484 + $0x90] sm:$0xff] %v3187
          %3434 = vst [vmem:[%s484 + $0x98] sm:$0xff] %v3192
          %3435 = vst [vmem:[%s484 + $0xa0] sm:$0xff] %v3197
          %3436 = vst [vmem:[%s484 + $0xa8] sm:$0xff] %v3202
          %3437 = vst [vmem:[%s484 + $0xb0] sm:$0xff] %v3207
          %3438 = vst [vmem:[%s484 + $0xb8] sm:$0xff] %v3212
          %3439 = vst [vmem:[%s484 + $0xc0] sm:$0xff] %v3217
          %3440 = vst [vmem:[%s484 + $0xc8] sm:$0xff] %v3222
          %3441 = vst [vmem:[%s484 + $0xd0] sm:$0xff] %v3227
          %3442 = vst [vmem:[%s484 + $0xd8] sm:$0xff] %v3232
          %3443 = vst [vmem:[%s484 + $0xe0] sm:$0xff] %v3237
          %3444 = vst [vmem:[%s484 + $0xe8] sm:$0xff] %v3242
          %3445 = vst [vmem:[%s484 + $0xf0] sm:$0xff] %v3247
          %3446 = vst [vmem:[%s484 + $0xf8] sm:$0xff] %v3252
          %3447 = vst [vmem:[%s484 + $0x100] sm:$0xff] %v3257
          %3448 = vst [vmem:[%s484 + $0x108] sm:$0xff] %v3262
          %3449 = vst [vmem:[%s484 + $0x110] sm:$0xff] %v3267
          %3450 = vst [vmem:[%s484 + $0x118] sm:$0xff] %v3272
          %3451 = vst [vmem:[%s484 + $0x120] sm:$0xff] %v3277
          %3452 = vst [vmem:[%s484 + $0x128] sm:$0xff] %v3282
          %3453 = vst [vmem:[%s484 + $0x130] sm:$0xff] %v3287
          %3454 = vst [vmem:[%s484 + $0x138] sm:$0xff] %v3292
          %3455 = vst [vmem:[%s484 + $0x140] sm:$0xff] %v3297
          %3456 = vst [vmem:[%s484 + $0x148] sm:$0xff] %v3302
          %3457 = vst [vmem:[%s484 + $0x150] sm:$0xff] %v3307
          %3458 = vst [vmem:[%s484 + $0x158] sm:$0xff] %v3312
          %3459 = vst [vmem:[%s484 + $0x160] sm:$0xff] %v3317
          %3460 = vst [vmem:[%s484 + $0x168] sm:$0xff] %v3322
          %3461 = vst [vmem:[%s484 + $0x170] sm:$0xff] %v3327
          %3462 = vst [vmem:[%s484 + $0x178] sm:$0xff] %v3332
          %3463 = vst [vmem:[%s484 + $0x180] sm:$0xff] %v3337
          %3464 = vst [vmem:[%s484 + $0x188] sm:$0xff] %v3342
          %3465 = vst [vmem:[%s484 + $0x190] sm:$0xff] %v3347
          %3466 = vst [vmem:[%s484 + $0x198] sm:$0xff] %v3352
          %3467 = vst [vmem:[%s484 + $0x1a0] sm:$0xff] %v3357
          %3468 = vst [vmem:[%s484 + $0x1a8] sm:$0xff] %v3362
          %3469 = vst [vmem:[%s484 + $0x1b0] sm:$0xff] %v3367
          %3470 = vst [vmem:[%s484 + $0x1b8] sm:$0xff] %v3372
          %3471 = vst [vmem:[%s484 + $0x1c0] sm:$0xff] %v3377
          %3472 = vst [vmem:[%s484 + $0x1c8] sm:$0xff] %v3382
          %3473 = vst [vmem:[%s484 + $0x1d0] sm:$0xff] %v3387
          %3474 = vst [vmem:[%s484 + $0x1d8] sm:$0xff] %v3392
          %3475 = vst [vmem:[%s484 + $0x1e0] sm:$0xff] %v3397
          %3476 = vst [vmem:[%s484 + $0x1e8] sm:$0xff] %v3402
          %3477 = vst [vmem:[%s484 + $0x1f0] sm:$0xff] %v3407
          %3478 = vst [vmem:[%s484 + $0x1f8] sm:$0xff] %v3412
        $region92: #{tpu_custom_call.1} parent=51 // pred_fallthru
          _
        %s3479 = sand.u32 %s236, 1
        %s3480 = scalar_lea.sflag [#allocation5], %s3479
        %s3481 = sand.u32 %s236, 1
        %s3482 = smul.addr %s3481, 512
        %s3483 = scalar_lea.vmem [#allocation17], %s3482
        // Predicated region
        $region93: #{tpu_custom_call.1} parent=51 // pred_check
          %p3484 = pneg %p246
        $region94: #{tpu_custom_call.1} parent=51 // pred_check_branch
          %3486 = sbr.rel (%p3484) target = $region96
        $region95: #{tpu_custom_call.1} parent=51 // pred_region
          %s3487 = smul.u32 64, %s35
          %s3489 = ssub.s32 8192, 8192
          %3490 = vsyncadd %s3480, %s3489
          %s3491 = smul.addr %s3487, 128
          %s3492 = scalar_lea.hbm %s8, %s3491
          %s3493 = sshll.u32 %s3483, 4
          %s3494 = int_to_ptr.vmem [resolvable:$true] %s3493
          %3499 = dma.vmem_to_hbm [thread:$0]  %s3494, 8192, %s3492, %s3480, 128, 128, 8
        $region96: #{tpu_custom_call.1} parent=51 // pred_fallthru
          _
      $region52: #{tpu_custom_call.1} parent=5 // pred_fallthru
        _
      %p3500 = scmp.le.s32.totalorder 2, %s26
      // Predicated region
      $region97: #{tpu_custom_call.1} parent=5 // pred_check
        %p3501 = pneg %p3500
      $region98: #{tpu_custom_call.1} parent=5 // pred_check_branch
        %3503 = sbr.rel (%p3501) target = $region100
      $region99: #{tpu_custom_call.1} parent=5 // pred_region
        %s3504 = ssub.s32 %s26, 2
        // Predicated region
        $region101: #{tpu_custom_call.1} parent=99 // pred_check
          %p3505 = pneg %p252
        $region102: #{tpu_custom_call.1} parent=99 // pred_check_branch
          %3507 = sbr.rel (%p3505) target = $region104
        $region103: #{tpu_custom_call.1} parent=99 // pred_region
          %s3508 = sand.u32 %s237, 1
          %s3509 = scalar_lea.sflag [#allocation5], %s3508
          %s3510 = sand.u32 %s237, 1
          %s3511 = smul.addr %s3510, 512
          %s3512 = scalar_lea.vmem [#allocation17], %s3511
          %3513 = dma.done %s3509, 8192
        $region104: #{tpu_custom_call.1} parent=99 // pred_fallthru
          _
      $region100: #{tpu_custom_call.1} parent=5 // pred_fallthru
        _
    $region6: #{tpu_custom_call.1} parent=1 // loop_footer
      %s30 = sadd.s32 1, %s26
    $region7: #{tpu_custom_call.1} parent=1 // loop_footer_branch
      %25 = sbr.rel target = $region3
    $region8: #{tpu_custom_call.1} parent=1 // loop_exit
      _
    %3514 = vsyncpa [#allocation4], 1
    %s3515 = scalar_lea.sflag [#allocation4], 1
    %3516 = vsyncpa %s3515, 1
    %3517 = vsyncpa [#allocation7], 1
    %s3518 = scalar_lea.sflag [#allocation7], 1
    %3519 = vsyncpa %s3518, 1
    %3520 = vsyncpa [#allocation10], 1
    %3521 = vsyncpa [#allocation13], 1
    %3522 = vsyncpa [#allocation16], 1
    %3523 = vsyncpa [#allocation5], 1
    %s3524 = scalar_lea.sflag [#allocation5], 1
    %3525 = vsyncpa %s3524, 1

</llo_original>
